<compile_context>
chip_gen: v7x
topology: tpu7x:2x2x1
jax: 0.10.0
libtpu: 0.0.40
codegen_flags: <defaults>
</compile_context>

<pallas_src>
from functools import partial

import jax
import jax.numpy as jnp
from jax.experimental import pallas as pl
from jax.experimental.pallas import tpu as pltpu

OBS_DIM = 268
ACT_DIM = 12
CFG_DIM = 18
HID = 256
HALF = HID // 2
NHEADS = 8
HEAD_DIM = HID // NHEADS
OUT_RAW = 12 * CFG_DIM          # 216
OUT_PAD = 256                   # lane-dense padded output width
EPS = 1e-5                      # PyTorch LayerNorm default
NEG_BIG = -1e9                  # additive mask value (applied before row max)

# Row indices of the packed (17, 256) parameter-vector slab.
(_B1, _G1, _E1, _B2, _G2, _E2,
 _BQ, _BK, _BV, _BO,
 _B3, _G3, _E3, _B4, _G4, _E4, _B5) = range(17)
N_VEC = 17


def _layernorm(x, g, b):
    # One-pass statistics: var = E[x^2] - mu^2 (saves a full-tensor subtract).
    mu = jnp.mean(x, axis=-1, keepdims=True)
    var = jnp.mean(x * x, axis=-1, keepdims=True) - mu * mu
    return (x - mu) * jax.lax.rsqrt(var + EPS) * g + b


def adaptive_kernel(
    obs_ref, act_ref,                 # (1, TB*S, 268), (1, TB*S, 12)  f32 (bf16 also fine)
    vec_ref,                          # (17, 256) f32 packed biases / LN params
    w1o, w1a, w2,                     # encoder weights            bf16
    wq, wk, wv, wo,                   # attention weights          bf16 (wq/bq pre-scaled)
    w3, w4, w5,                       # config-predictor weights   bf16 (w5 padded to 256)
    out_ref,                          # (1, TB, 256) f32
    *, TB, S, G,
):
    bf = jnp.bfloat16
    f32 = jnp.float32
    rows = TB * S
    GR = G * S                        # rows per attention group
    NG = TB // G                      # attention groups per grid step

    def vrow(i, width=HID):           # static slice of the packed vector slab
        return vec_ref[i:i + 1, :width]

    # ---- encoder: Linear -> LN -> ReLU -> Linear -> LN -> ReLU ----
    h = (jnp.dot(obs_ref[0].astype(bf), w1o[...], preferred_element_type=f32)
         + jnp.dot(act_ref[0].astype(bf), w1a[...], preferred_element_type=f32)
         + vrow(_B1))
    h = jnp.maximum(_layernorm(h, vrow(_G1), vrow(_E1)), 0.0)
    h = jnp.dot(h.astype(bf), w2[...], preferred_element_type=f32) + vrow(_B2)
    h = jnp.maximum(_layernorm(h, vrow(_G2), vrow(_E2)), 0.0)         # (rows, 256) f32
    h_bf = h.astype(bf)

    # ---- multi-head self-attention (batch_first, 8 heads) ----
    # Full-width QKV projections keep the MXU at 256-wide output tiles.
    q = (jnp.dot(h_bf, wq[...], preferred_element_type=f32) + vrow(_BQ)).astype(bf)
    k = (jnp.dot(h_bf, wk[...], preferred_element_type=f32) + vrow(_BK)).astype(bf)
    v = (jnp.dot(h_bf, wv[...], preferred_element_type=f32) + vrow(_BV)).astype(bf)

    # Block-diagonal additive mask: rows of different batches inside the same
    # attention group must not attend to each other.  Applied BEFORE the row
    # max so masked keys contribute exp(<= -1e9) == 0.
    if G > 1:
        ri = jax.lax.broadcasted_iota(jnp.int32, (GR, GR), 0) // S
        ci = jax.lax.broadcasted_iota(jnp.int32, (GR, GR), 1) // S
        neg = jnp.where(ri == ci, 0.0, NEG_BIG).astype(f32)

    # TODO(synk): the per-head 32-lane slices of q/k/v below still relayout
    # inside a 128-lane tile (8x3 per grid step); revisit a head-major
    # relayout or head-blocked QKV weight prep if profiling shows XLU/copy
    # pressure here.
    attn = None
    for hh in range(NHEADS):                        # static unroll over heads
        lo = hh * HEAD_DIM
        qh = q[:, lo:lo + HEAD_DIM].reshape(NG, GR, HEAD_DIM)
        kh = k[:, lo:lo + HEAD_DIM].reshape(NG, GR, HEAD_DIM)
        vh = v[:, lo:lo + HEAD_DIM].reshape(NG, GR, HEAD_DIM)
        s = jnp.einsum('gqd,gkd->gqk', qh, kh, preferred_element_type=f32)
        if G > 1:
            s = s + neg                             # mask before max / exp
        s = s - jnp.max(s, axis=-1, keepdims=True)
        p = jnp.exp(s)
        p = p * pl.reciprocal(jnp.sum(p, axis=-1, keepdims=True), approx=True)
        o = jnp.einsum('gqk,gkd->gqd', p.astype(bf), vh,
                       preferred_element_type=f32).reshape(rows, HEAD_DIM)
        # Fold the output projection per head: no 8-way lane concat.
        contrib = jnp.dot(o.astype(bf), wo[lo:lo + HEAD_DIM, :],
                          preferred_element_type=f32)
        attn = contrib if attn is None else attn + contrib
    attn = attn + vrow(_BO)                         # (rows, 256) f32

    # ---- mean pooling over the sequence dimension ----
    pooled = jnp.mean(attn.reshape(TB, S, HID), axis=1)               # (TB, 256)

    # ---- config predictor MLP ----
    c = jnp.dot(pooled.astype(bf), w3[...], preferred_element_type=f32) + vrow(_B3)
    c = jnp.maximum(_layernorm(c, vrow(_G3), vrow(_E3)), 0.0)
    c = jnp.dot(c.astype(bf), w4[...], preferred_element_type=f32) + vrow(_B4, HALF)
    c = jnp.maximum(_layernorm(c, vrow(_G4, HALF), vrow(_E4, HALF)), 0.0)
    c = jnp.dot(c.astype(bf), w5[...], preferred_element_type=f32) + vrow(_B5)

    out_ref[...] = c.reshape(1, TB, OUT_PAD)        # lane-dense (TB, 256) store


def init_params(key):
    """Deterministic synthetic parameters (Linear weights stored as (in, out))."""
    keys = jax.random.split(key, 32)
    ki = iter(keys)

    def lin(din, dout):
        w = jax.random.normal(next(ki), (din, dout), jnp.float32) * (1.0 / (din ** 0.5))
        b = jax.random.normal(next(ki), (1, dout), jnp.float32) * 0.01
        return w, b

    def ln(d):
        return jnp.ones((1, d), jnp.float32), jnp.zeros((1, d), jnp.float32)

    din = OBS_DIM + ACT_DIM
    w1, b1 = lin(din, HID); g1, e1 = ln(HID)
    w2, b2 = lin(HID, HID); g2, e2 = ln(HID)
    wq, bq = lin(HID, HID)
    wk, bk = lin(HID, HID)
    wv, bv = lin(HID, HID)
    wo, bo = lin(HID, HID)
    w3, b3 = lin(HID, HID); g3, e3 = ln(HID)
    w4, b4 = lin(HID, HALF); g4, e4 = ln(HALF)
    w5, b5 = lin(HALF, OUT_RAW)

    return (w1, b1, g1, e1, w2, b2, g2, e2,
            wq, bq, wk, bk, wv, bv, wo, bo,
            w3, b3, g3, e3, w4, b4, g4, e4, w5, b5)


def prepare_params(raw):
    """Split / scale / pad / cast PyTorch-layout parameters for the kernel."""
    (w1, b1, g1, e1, w2, b2, g2, e2,
     wq, bq, wk, bk, wv, bv, wo, bo,
     w3, b3, g3, e3, w4, b4, g4, e4, w5, b5) = raw

    scale = 1.0 / (HEAD_DIM ** 0.5)

    def pad_cols(a, width):
        return jnp.pad(a, ((0, 0), (0, width - a.shape[-1])))

    # Packed (17, 256) f32 slab of biases / LayerNorm params (narrow ones zero-padded).
    rows = [b1, g1, e1, b2, g2, e2,
            bq * scale, bk, bv, bo,
            b3, g3, e3, b4, g4, e4, b5]
    vec = jnp.concatenate([pad_cols(r.reshape(1, -1), HID) for r in rows], axis=0)
    assert vec.shape == (N_VEC, HID)

    bf = jnp.bfloat16
    weights = (
        w1[:OBS_DIM].astype(bf),            # w1o (268, 256)
        w1[OBS_DIM:].astype(bf),            # w1a (12, 256)
        w2.astype(bf),
        (wq * scale).astype(bf), wk.astype(bf), wv.astype(bf), wo.astype(bf),
        w3.astype(bf), w4.astype(bf),
        pad_cols(w5, OUT_PAD).astype(bf),   # w5 padded 216 -> 256 output columns
    )
    return (vec,) + weights


def _pick_batch_tile(B, S, rows_target=1024):
    """Largest batch tile TB (divisor of B) with TB*S <= rows_target rows per
    grid step, while keeping the grid length >= 2 (and even when possible) so
    a v7x megacore can shard the batch axis across both TensorCores."""
    if B == 1:
        return 1
    cands = [d for d in range(B, 0, -1)
             if B % d == 0 and d * S <= rows_target and B // d >= 2]
    if not cands:
        return 1
    for d in cands:                       # prefer an even grid length
        if (B // d) % 2 == 0:
            return d
    return cands[0]


def _pick_attn_group(TB, S, gr_target=128):
    """Largest divisor G of TB with G*S <= gr_target: G batches share one dense
    (G*S x G*S) attention block per head (block-diagonal masked)."""
    best = 1
    for d in range(1, TB + 1):
        if TB % d == 0 and d * S <= gr_target:
            best = d
    return best


def adaptive_configure_net(obs, actions, packed_params):
    B, S, _ = obs.shape
    TB = _pick_batch_tile(B, S)
    assert B % TB == 0
    G = _pick_attn_group(TB, S)
    n_steps = B // TB
    rows = TB * S

    # 3-D (grid, tile-rows, feature) slabs: each block's trailing dims equal
    # the full array dims, so any TB / S choice is tile-legal.
    obs_t = obs.reshape(n_steps, rows, OBS_DIM)
    act_t = actions.reshape(n_steps, rows, ACT_DIM)

    vec, w1o, w1a, w2, wq, wk, wv, wo, w3, w4, w5 = packed_params

    tile_map = lambda i: (i, 0, 0)        # stream activation / output tiles
    const_map = lambda i: (0, 0)          # weights stay VMEM-resident
    # TODO(synk): mark the constant weight specs pipeline_mode=pl.Buffered(1)
    # once single-buffered constant operands are confirmed supported; would
    # save ~1.2 MiB of VMEM and a few prologue DMA descriptors.
    weight_specs = [pl.BlockSpec(w.shape, const_map)
                    for w in (vec, w1o, w1a, w2, wq, wk, wv, wo, w3, w4, w5)]

    vmem_limit = (24 if rows <= 512 else 40) * 1024 * 1024

    out = pl.pallas_call(
        partial(adaptive_kernel, TB=TB, S=S, G=G),
        out_shape=jax.ShapeDtypeStruct((n_steps, TB, OUT_PAD), jnp.float32),
        grid=(n_steps,),
        in_specs=[
            pl.BlockSpec((1, rows, OBS_DIM), tile_map),
            pl.BlockSpec((1, rows, ACT_DIM), tile_map),
        ] + weight_specs,
        out_specs=pl.BlockSpec((1, TB, OUT_PAD), tile_map),
        compiler_params=pltpu.CompilerParams(
            dimension_semantics=("parallel",),
            vmem_limit_bytes=vmem_limit,
        ),
    )(obs_t, act_t, vec, w1o, w1a, w2, wq, wk, wv, wo, w3, w4, w5)

    return out.reshape(B, OUT_PAD)[:, :OUT_RAW].reshape(B, 12, CFG_DIM)


if __name__ == "__main__":
    key = jax.random.PRNGKey(0)
    k_obs, k_act, k_param = jax.random.split(key, 3)

    B, S = 2, 8
    obs = jax.random.normal(k_obs, (B, S, OBS_DIM), jnp.float32)
    actions = jax.random.normal(k_act, (B, S, ACT_DIM), jnp.float32)
    params = prepare_params(init_params(k_param))

    config = adaptive_configure_net(obs, actions, params)
    jax.block_until_ready(config)
    assert config.shape == (B, 12, CFG_DIM)
    print("KERNEL_OK")
</pallas_src>

<mosaic_0001>
module attributes {stable_mosaic.version = 11 : i64} {
  func.func @adaptive_kernel(%arg0: i32, %arg1: memref<1x8x268xf32, #tpu.memory_space<vmem>>, %arg2: memref<1x8x12xf32, #tpu.memory_space<vmem>>, %arg3: memref<17x256xf32, #tpu.memory_space<vmem>>, %arg4: memref<268x256xbf16, #tpu.memory_space<vmem>>, %arg5: memref<12x256xbf16, #tpu.memory_space<vmem>>, %arg6: memref<256x256xbf16, #tpu.memory_space<vmem>>, %arg7: memref<256x256xbf16, #tpu.memory_space<vmem>>, %arg8: memref<256x256xbf16, #tpu.memory_space<vmem>>, %arg9: memref<256x256xbf16, #tpu.memory_space<vmem>>, %arg10: memref<256x256xbf16, #tpu.memory_space<vmem>>, %arg11: memref<256x256xbf16, #tpu.memory_space<vmem>>, %arg12: memref<256x128xbf16, #tpu.memory_space<vmem>>, %arg13: memref<128x256xbf16, #tpu.memory_space<vmem>>, %arg14: memref<1x1x256xf32, #tpu.memory_space<vmem>>) attributes {dimension_semantics = [#tpu.dimension_semantics<parallel>], iteration_bounds = array<i64: 2>, scalar_prefetch = 0 : i64, scratch_operands = 0 : i64, tpu.core_type = #tpu.core_type<tc>, window_params = [{transform_indices = @transform_0, window_bounds = array<i64: 1, 8, 268>}, {transform_indices = @transform_1, window_bounds = array<i64: 1, 8, 12>}, {pipeline_mode = #tpu.pipeline_mode<synchronous>, transform_indices = @transform_2, window_bounds = array<i64: 17, 256>}, {pipeline_mode = #tpu.pipeline_mode<synchronous>, transform_indices = @transform_3, window_bounds = array<i64: 268, 256>}, {pipeline_mode = #tpu.pipeline_mode<synchronous>, transform_indices = @transform_4, window_bounds = array<i64: 12, 256>}, {pipeline_mode = #tpu.pipeline_mode<synchronous>, transform_indices = @transform_5, window_bounds = array<i64: 256, 256>}, {pipeline_mode = #tpu.pipeline_mode<synchronous>, transform_indices = @transform_6, window_bounds = array<i64: 256, 256>}, {pipeline_mode = #tpu.pipeline_mode<synchronous>, transform_indices = @transform_7, window_bounds = array<i64: 256, 256>}, {pipeline_mode = #tpu.pipeline_mode<synchronous>, transform_indices = @transform_8, window_bounds = array<i64: 256, 256>}, {pipeline_mode = #tpu.pipeline_mode<synchronous>, transform_indices = @transform_9, window_bounds = array<i64: 256, 256>}, {pipeline_mode = #tpu.pipeline_mode<synchronous>, transform_indices = @transform_10, window_bounds = array<i64: 256, 256>}, {pipeline_mode = #tpu.pipeline_mode<synchronous>, transform_indices = @transform_11, window_bounds = array<i64: 256, 128>}, {pipeline_mode = #tpu.pipeline_mode<synchronous>, transform_indices = @transform_12, window_bounds = array<i64: 128, 256>}, {transform_indices = @transform_13, window_bounds = array<i64: 1, 1, 256>}]} {
    %c0 = arith.constant 0 : index
    %c0_0 = arith.constant 0 : index
    %c0_1 = arith.constant 0 : index
    %0 = vector.load %arg1[%c0, %c0_0, %c0_1] : memref<1x8x268xf32, #tpu.memory_space<vmem>>, vector<1x8x268xf32>
    %1 = vector.shape_cast %0 : vector<1x8x268xf32> to vector<8x268xf32>
    %2 = arith.truncf %1 : vector<8x268xf32> to vector<8x268xbf16>
    %c0_2 = arith.constant 0 : index
    %c0_3 = arith.constant 0 : index
    %3 = vector.load %arg4[%c0_2, %c0_3] : memref<268x256xbf16, #tpu.memory_space<vmem>>, vector<268x256xbf16>
    %cst = arith.constant dense<0.000000e+00> : vector<8x256xf32>
    %4 = tpu.matmul %2, %3, %cst {dimension_numbers = #tpu.dot_dimension_numbers<[1], [0], [0], [1], [0, 0, 1, 1], [], []>} : vector<8x268xbf16>, vector<268x256xbf16>, vector<8x256xf32> -> vector<8x256xf32>
    %c0_4 = arith.constant 0 : index
    %c0_5 = arith.constant 0 : index
    %c0_6 = arith.constant 0 : index
    %5 = vector.load %arg2[%c0_4, %c0_5, %c0_6] : memref<1x8x12xf32, #tpu.memory_space<vmem>>, vector<1x8x12xf32>
    %6 = vector.shape_cast %5 : vector<1x8x12xf32> to vector<8x12xf32>
    %7 = arith.truncf %6 : vector<8x12xf32> to vector<8x12xbf16>
    %c0_7 = arith.constant 0 : index
    %c0_8 = arith.constant 0 : index
    %8 = vector.load %arg5[%c0_7, %c0_8] : memref<12x256xbf16, #tpu.memory_space<vmem>>, vector<12x256xbf16>
    %cst_9 = arith.constant dense<0.000000e+00> : vector<8x256xf32>
    %9 = tpu.matmul %7, %8, %cst_9 {dimension_numbers = #tpu.dot_dimension_numbers<[1], [0], [0], [1], [0, 0, 1, 1], [], []>} : vector<8x12xbf16>, vector<12x256xbf16>, vector<8x256xf32> -> vector<8x256xf32>
    %10 = arith.addf %4, %9 : vector<8x256xf32>
    %c0_10 = arith.constant 0 : index
    %c0_11 = arith.constant 0 : index
    %11 = vector.load %arg3[%c0_10, %c0_11] : memref<17x256xf32, #tpu.memory_space<vmem>>, vector<1x256xf32>
    %12 = vector.broadcast %11 : vector<1x256xf32> to vector<8x256xf32>
    %13 = arith.addf %10, %12 : vector<8x256xf32>
    %c1 = arith.constant 1 : index
    %c0_12 = arith.constant 0 : index
    %14 = vector.load %arg3[%c1, %c0_12] : memref<17x256xf32, #tpu.memory_space<vmem>>, vector<1x256xf32>
    %c2 = arith.constant 2 : index
    %c0_13 = arith.constant 0 : index
    %15 = vector.load %arg3[%c2, %c0_13] : memref<17x256xf32, #tpu.memory_space<vmem>>, vector<1x256xf32>
    %cst_14 = arith.constant dense<0.000000e+00> : vector<8xf32>
    %16 = vector.multi_reduction <add>, %13, %cst_14 [1] : vector<8x256xf32> to vector<8xf32>
    %17 = vector.shape_cast %16 : vector<8xf32> to vector<8x1xf32>
    %cst_15 = arith.constant 2.560000e+02 : f32
    %18 = vector.broadcast %cst_15 : f32 to vector<8x1xf32>
    %19 = arith.divf %17, %18 : vector<8x1xf32>
    %20 = arith.mulf %13, %13 : vector<8x256xf32>
    %cst_16 = arith.constant dense<0.000000e+00> : vector<8xf32>
    %21 = vector.multi_reduction <add>, %20, %cst_16 [1] : vector<8x256xf32> to vector<8xf32>
    %22 = vector.shape_cast %21 : vector<8xf32> to vector<8x1xf32>
    %cst_17 = arith.constant 2.560000e+02 : f32
    %23 = vector.broadcast %cst_17 : f32 to vector<8x1xf32>
    %24 = arith.divf %22, %23 : vector<8x1xf32>
    %25 = arith.mulf %19, %19 : vector<8x1xf32>
    %26 = arith.subf %24, %25 : vector<8x1xf32>
    %27 = vector.broadcast %19 : vector<8x1xf32> to vector<8x256xf32>
    %28 = arith.subf %13, %27 : vector<8x256xf32>
    %cst_18 = arith.constant 9.99999974E-6 : f32
    %29 = vector.broadcast %cst_18 : f32 to vector<8x1xf32>
    %30 = arith.addf %26, %29 : vector<8x1xf32>
    %31 = math.rsqrt %30 : vector<8x1xf32>
    %32 = vector.broadcast %31 : vector<8x1xf32> to vector<8x256xf32>
    %33 = arith.mulf %28, %32 : vector<8x256xf32>
    %34 = vector.broadcast %14 : vector<1x256xf32> to vector<8x256xf32>
    %35 = arith.mulf %33, %34 : vector<8x256xf32>
    %36 = vector.broadcast %15 : vector<1x256xf32> to vector<8x256xf32>
    %37 = arith.addf %35, %36 : vector<8x256xf32>
    %cst_19 = arith.constant 0.000000e+00 : f32
    %38 = vector.broadcast %cst_19 : f32 to vector<8x256xf32>
    %39 = arith.maximumf %37, %38 : vector<8x256xf32>
    %40 = arith.truncf %39 : vector<8x256xf32> to vector<8x256xbf16>
    %c0_20 = arith.constant 0 : index
    %c0_21 = arith.constant 0 : index
    %41 = vector.load %arg6[%c0_20, %c0_21] : memref<256x256xbf16, #tpu.memory_space<vmem>>, vector<256x256xbf16>
    %cst_22 = arith.constant dense<0.000000e+00> : vector<8x256xf32>
    %42 = tpu.matmul %40, %41, %cst_22 {dimension_numbers = #tpu.dot_dimension_numbers<[1], [0], [0], [1], [0, 0, 1, 1], [], []>} : vector<8x256xbf16>, vector<256x256xbf16>, vector<8x256xf32> -> vector<8x256xf32>
    %c3 = arith.constant 3 : index
    %c0_23 = arith.constant 0 : index
    %43 = vector.load %arg3[%c3, %c0_23] : memref<17x256xf32, #tpu.memory_space<vmem>>, vector<1x256xf32>
    %44 = vector.broadcast %43 : vector<1x256xf32> to vector<8x256xf32>
    %45 = arith.addf %42, %44 : vector<8x256xf32>
    %c4 = arith.constant 4 : index
    %c0_24 = arith.constant 0 : index
    %46 = vector.load %arg3[%c4, %c0_24] : memref<17x256xf32, #tpu.memory_space<vmem>>, vector<1x256xf32>
    %c5 = arith.constant 5 : index
    %c0_25 = arith.constant 0 : index
    %47 = vector.load %arg3[%c5, %c0_25] : memref<17x256xf32, #tpu.memory_space<vmem>>, vector<1x256xf32>
    %cst_26 = arith.constant dense<0.000000e+00> : vector<8xf32>
    %48 = vector.multi_reduction <add>, %45, %cst_26 [1] : vector<8x256xf32> to vector<8xf32>
    %49 = vector.shape_cast %48 : vector<8xf32> to vector<8x1xf32>
    %cst_27 = arith.constant 2.560000e+02 : f32
    %50 = vector.broadcast %cst_27 : f32 to vector<8x1xf32>
    %51 = arith.divf %49, %50 : vector<8x1xf32>
    %52 = arith.mulf %45, %45 : vector<8x256xf32>
    %cst_28 = arith.constant dense<0.000000e+00> : vector<8xf32>
    %53 = vector.multi_reduction <add>, %52, %cst_28 [1] : vector<8x256xf32> to vector<8xf32>
    %54 = vector.shape_cast %53 : vector<8xf32> to vector<8x1xf32>
    %cst_29 = arith.constant 2.560000e+02 : f32
    %55 = vector.broadcast %cst_29 : f32 to vector<8x1xf32>
    %56 = arith.divf %54, %55 : vector<8x1xf32>
    %57 = arith.mulf %51, %51 : vector<8x1xf32>
    %58 = arith.subf %56, %57 : vector<8x1xf32>
    %59 = vector.broadcast %51 : vector<8x1xf32> to vector<8x256xf32>
    %60 = arith.subf %45, %59 : vector<8x256xf32>
    %cst_30 = arith.constant 9.99999974E-6 : f32
    %61 = vector.broadcast %cst_30 : f32 to vector<8x1xf32>
    %62 = arith.addf %58, %61 : vector<8x1xf32>
    %63 = math.rsqrt %62 : vector<8x1xf32>
    %64 = vector.broadcast %63 : vector<8x1xf32> to vector<8x256xf32>
    %65 = arith.mulf %60, %64 : vector<8x256xf32>
    %66 = vector.broadcast %46 : vector<1x256xf32> to vector<8x256xf32>
    %67 = arith.mulf %65, %66 : vector<8x256xf32>
    %68 = vector.broadcast %47 : vector<1x256xf32> to vector<8x256xf32>
    %69 = arith.addf %67, %68 : vector<8x256xf32>
    %cst_31 = arith.constant 0.000000e+00 : f32
    %70 = vector.broadcast %cst_31 : f32 to vector<8x256xf32>
    %71 = arith.maximumf %69, %70 : vector<8x256xf32>
    %72 = arith.truncf %71 : vector<8x256xf32> to vector<8x256xbf16>
    %c0_32 = arith.constant 0 : index
    %c0_33 = arith.constant 0 : index
    %73 = vector.load %arg7[%c0_32, %c0_33] : memref<256x256xbf16, #tpu.memory_space<vmem>>, vector<256x256xbf16>
    %cst_34 = arith.constant dense<0.000000e+00> : vector<8x256xf32>
    %74 = tpu.matmul %72, %73, %cst_34 {dimension_numbers = #tpu.dot_dimension_numbers<[1], [0], [0], [1], [0, 0, 1, 1], [], []>} : vector<8x256xbf16>, vector<256x256xbf16>, vector<8x256xf32> -> vector<8x256xf32>
    %c6 = arith.constant 6 : index
    %c0_35 = arith.constant 0 : index
    %75 = vector.load %arg3[%c6, %c0_35] : memref<17x256xf32, #tpu.memory_space<vmem>>, vector<1x256xf32>
    %76 = vector.broadcast %75 : vector<1x256xf32> to vector<8x256xf32>
    %77 = arith.addf %74, %76 : vector<8x256xf32>
    %78 = arith.truncf %77 : vector<8x256xf32> to vector<8x256xbf16>
    %c0_36 = arith.constant 0 : index
    %c0_37 = arith.constant 0 : index
    %79 = vector.load %arg8[%c0_36, %c0_37] : memref<256x256xbf16, #tpu.memory_space<vmem>>, vector<256x256xbf16>
    %cst_38 = arith.constant dense<0.000000e+00> : vector<8x256xf32>
    %80 = tpu.matmul %72, %79, %cst_38 {dimension_numbers = #tpu.dot_dimension_numbers<[1], [0], [0], [1], [0, 0, 1, 1], [], []>} : vector<8x256xbf16>, vector<256x256xbf16>, vector<8x256xf32> -> vector<8x256xf32>
    %c7 = arith.constant 7 : index
    %c0_39 = arith.constant 0 : index
    %81 = vector.load %arg3[%c7, %c0_39] : memref<17x256xf32, #tpu.memory_space<vmem>>, vector<1x256xf32>
    %82 = vector.broadcast %81 : vector<1x256xf32> to vector<8x256xf32>
    %83 = arith.addf %80, %82 : vector<8x256xf32>
    %84 = arith.truncf %83 : vector<8x256xf32> to vector<8x256xbf16>
    %c0_40 = arith.constant 0 : index
    %c0_41 = arith.constant 0 : index
    %85 = vector.load %arg9[%c0_40, %c0_41] : memref<256x256xbf16, #tpu.memory_space<vmem>>, vector<256x256xbf16>
    %cst_42 = arith.constant dense<0.000000e+00> : vector<8x256xf32>
    %86 = tpu.matmul %72, %85, %cst_42 {dimension_numbers = #tpu.dot_dimension_numbers<[1], [0], [0], [1], [0, 0, 1, 1], [], []>} : vector<8x256xbf16>, vector<256x256xbf16>, vector<8x256xf32> -> vector<8x256xf32>
    %c8 = arith.constant 8 : index
    %c0_43 = arith.constant 0 : index
    %87 = vector.load %arg3[%c8, %c0_43] : memref<17x256xf32, #tpu.memory_space<vmem>>, vector<1x256xf32>
    %88 = vector.broadcast %87 : vector<1x256xf32> to vector<8x256xf32>
    %89 = arith.addf %86, %88 : vector<8x256xf32>
    %90 = arith.truncf %89 : vector<8x256xf32> to vector<8x256xbf16>
    %91 = vector.extract_strided_slice %78 {offsets = [0, 0], sizes = [8, 32], strides = [1, 1]} : vector<8x256xbf16> to vector<8x32xbf16>
    %92 = vector.shape_cast %91 : vector<8x32xbf16> to vector<1x8x32xbf16>
    %93 = vector.extract_strided_slice %84 {offsets = [0, 0], sizes = [8, 32], strides = [1, 1]} : vector<8x256xbf16> to vector<8x32xbf16>
    %94 = vector.shape_cast %93 : vector<8x32xbf16> to vector<1x8x32xbf16>
    %95 = vector.extract_strided_slice %90 {offsets = [0, 0], sizes = [8, 32], strides = [1, 1]} : vector<8x256xbf16> to vector<8x32xbf16>
    %96 = vector.shape_cast %95 : vector<8x32xbf16> to vector<1x8x32xbf16>
    "tpu.trace_start"() <{level = 10 : i32, message = "gqd,gkd->gqk"}> : () -> ()
    %cst_44 = arith.constant dense<0.000000e+00> : vector<1x8x8xf32>
    %97 = tpu.matmul %92, %94, %cst_44 {dimension_numbers = #tpu.dot_dimension_numbers<[2], [2], [1], [1], [0, 0, 0, 1, 1, 1], [0], [0]>} : vector<1x8x32xbf16>, vector<1x8x32xbf16>, vector<1x8x8xf32> -> vector<1x8x8xf32>
    "tpu.trace_stop"() : () -> ()
    %cst_45 = arith.constant dense<0xFF800000> : vector<1x8xf32>
    %98 = vector.multi_reduction <maximumf>, %97, %cst_45 [2] : vector<1x8x8xf32> to vector<1x8xf32>
    %99 = vector.shape_cast %98 : vector<1x8xf32> to vector<1x8x1xf32>
    %100 = vector.broadcast %99 : vector<1x8x1xf32> to vector<1x8x8xf32>
    %101 = arith.subf %97, %100 : vector<1x8x8xf32>
    %102 = math.exp %101 : vector<1x8x8xf32>
    %cst_46 = arith.constant dense<0.000000e+00> : vector<1x8xf32>
    %103 = vector.multi_reduction <add>, %102, %cst_46 [2] : vector<1x8x8xf32> to vector<1x8xf32>
    %104 = vector.shape_cast %103 : vector<1x8xf32> to vector<1x8x1xf32>
    %105 = tpu.reciprocal %104 {approx = true} : vector<1x8x1xf32> -> vector<1x8x1xf32>
    %106 = vector.broadcast %105 : vector<1x8x1xf32> to vector<1x8x8xf32>
    %107 = arith.mulf %102, %106 : vector<1x8x8xf32>
    %108 = arith.truncf %107 : vector<1x8x8xf32> to vector<1x8x8xbf16>
    "tpu.trace_start"() <{level = 10 : i32, message = "gqk,gkd->gqd"}> : () -> ()
    %cst_47 = arith.constant dense<0.000000e+00> : vector<1x8x32xf32>
    %109 = tpu.matmul %108, %96, %cst_47 {dimension_numbers = #tpu.dot_dimension_numbers<[2], [1], [1], [2], [0, 0, 0, 1, 1, 2], [0], [0]>} : vector<1x8x8xbf16>, vector<1x8x32xbf16>, vector<1x8x32xf32> -> vector<1x8x32xf32>
    "tpu.trace_stop"() : () -> ()
    %110 = vector.shape_cast %109 : vector<1x8x32xf32> to vector<8x32xf32>
    %111 = arith.truncf %110 : vector<8x32xf32> to vector<8x32xbf16>
    %c0_48 = arith.constant 0 : index
    %c0_49 = arith.constant 0 : index
    %112 = vector.load %arg10[%c0_48, %c0_49] : memref<256x256xbf16, #tpu.memory_space<vmem>>, vector<32x256xbf16>
    %cst_50 = arith.constant dense<0.000000e+00> : vector<8x256xf32>
    %113 = tpu.matmul %111, %112, %cst_50 {dimension_numbers = #tpu.dot_dimension_numbers<[1], [0], [0], [1], [0, 0, 1, 1], [], []>} : vector<8x32xbf16>, vector<32x256xbf16>, vector<8x256xf32> -> vector<8x256xf32>
    %114 = vector.extract_strided_slice %78 {offsets = [0, 32], sizes = [8, 32], strides = [1, 1]} : vector<8x256xbf16> to vector<8x32xbf16>
    %115 = vector.shape_cast %114 : vector<8x32xbf16> to vector<1x8x32xbf16>
    %116 = vector.extract_strided_slice %84 {offsets = [0, 32], sizes = [8, 32], strides = [1, 1]} : vector<8x256xbf16> to vector<8x32xbf16>
    %117 = vector.shape_cast %116 : vector<8x32xbf16> to vector<1x8x32xbf16>
    %118 = vector.extract_strided_slice %90 {offsets = [0, 32], sizes = [8, 32], strides = [1, 1]} : vector<8x256xbf16> to vector<8x32xbf16>
    %119 = vector.shape_cast %118 : vector<8x32xbf16> to vector<1x8x32xbf16>
    "tpu.trace_start"() <{level = 10 : i32, message = "gqd,gkd->gqk"}> : () -> ()
    %cst_51 = arith.constant dense<0.000000e+00> : vector<1x8x8xf32>
    %120 = tpu.matmul %115, %117, %cst_51 {dimension_numbers = #tpu.dot_dimension_numbers<[2], [2], [1], [1], [0, 0, 0, 1, 1, 1], [0], [0]>} : vector<1x8x32xbf16>, vector<1x8x32xbf16>, vector<1x8x8xf32> -> vector<1x8x8xf32>
    "tpu.trace_stop"() : () -> ()
    %cst_52 = arith.constant dense<0xFF800000> : vector<1x8xf32>
    %121 = vector.multi_reduction <maximumf>, %120, %cst_52 [2] : vector<1x8x8xf32> to vector<1x8xf32>
    %122 = vector.shape_cast %121 : vector<1x8xf32> to vector<1x8x1xf32>
    %123 = vector.broadcast %122 : vector<1x8x1xf32> to vector<1x8x8xf32>
    %124 = arith.subf %120, %123 : vector<1x8x8xf32>
    %125 = math.exp %124 : vector<1x8x8xf32>
    %cst_53 = arith.constant dense<0.000000e+00> : vector<1x8xf32>
    %126 = vector.multi_reduction <add>, %125, %cst_53 [2] : vector<1x8x8xf32> to vector<1x8xf32>
    %127 = vector.shape_cast %126 : vector<1x8xf32> to vector<1x8x1xf32>
    %128 = tpu.reciprocal %127 {approx = true} : vector<1x8x1xf32> -> vector<1x8x1xf32>
    %129 = vector.broadcast %128 : vector<1x8x1xf32> to vector<1x8x8xf32>
    %130 = arith.mulf %125, %129 : vector<1x8x8xf32>
    %131 = arith.truncf %130 : vector<1x8x8xf32> to vector<1x8x8xbf16>
    "tpu.trace_start"() <{level = 10 : i32, message = "gqk,gkd->gqd"}> : () -> ()
    %cst_54 = arith.constant dense<0.000000e+00> : vector<1x8x32xf32>
    %132 = tpu.matmul %131, %119, %cst_54 {dimension_numbers = #tpu.dot_dimension_numbers<[2], [1], [1], [2], [0, 0, 0, 1, 1, 2], [0], [0]>} : vector<1x8x8xbf16>, vector<1x8x32xbf16>, vector<1x8x32xf32> -> vector<1x8x32xf32>
    "tpu.trace_stop"() : () -> ()
    %133 = vector.shape_cast %132 : vector<1x8x32xf32> to vector<8x32xf32>
    %134 = arith.truncf %133 : vector<8x32xf32> to vector<8x32xbf16>
    %c32 = arith.constant 32 : index
    %c0_55 = arith.constant 0 : index
    %135 = vector.load %arg10[%c32, %c0_55] : memref<256x256xbf16, #tpu.memory_space<vmem>>, vector<32x256xbf16>
    %cst_56 = arith.constant dense<0.000000e+00> : vector<8x256xf32>
    %136 = tpu.matmul %134, %135, %cst_56 {dimension_numbers = #tpu.dot_dimension_numbers<[1], [0], [0], [1], [0, 0, 1, 1], [], []>} : vector<8x32xbf16>, vector<32x256xbf16>, vector<8x256xf32> -> vector<8x256xf32>
    %137 = arith.addf %113, %136 : vector<8x256xf32>
    %138 = vector.extract_strided_slice %78 {offsets = [0, 64], sizes = [8, 32], strides = [1, 1]} : vector<8x256xbf16> to vector<8x32xbf16>
    %139 = vector.shape_cast %138 : vector<8x32xbf16> to vector<1x8x32xbf16>
    %140 = vector.extract_strided_slice %84 {offsets = [0, 64], sizes = [8, 32], strides = [1, 1]} : vector<8x256xbf16> to vector<8x32xbf16>
    %141 = vector.shape_cast %140 : vector<8x32xbf16> to vector<1x8x32xbf16>
    %142 = vector.extract_strided_slice %90 {offsets = [0, 64], sizes = [8, 32], strides = [1, 1]} : vector<8x256xbf16> to vector<8x32xbf16>
    %143 = vector.shape_cast %142 : vector<8x32xbf16> to vector<1x8x32xbf16>
    "tpu.trace_start"() <{level = 10 : i32, message = "gqd,gkd->gqk"}> : () -> ()
    %cst_57 = arith.constant dense<0.000000e+00> : vector<1x8x8xf32>
    %144 = tpu.matmul %139, %141, %cst_57 {dimension_numbers = #tpu.dot_dimension_numbers<[2], [2], [1], [1], [0, 0, 0, 1, 1, 1], [0], [0]>} : vector<1x8x32xbf16>, vector<1x8x32xbf16>, vector<1x8x8xf32> -> vector<1x8x8xf32>
    "tpu.trace_stop"() : () -> ()
    %cst_58 = arith.constant dense<0xFF800000> : vector<1x8xf32>
    %145 = vector.multi_reduction <maximumf>, %144, %cst_58 [2] : vector<1x8x8xf32> to vector<1x8xf32>
    %146 = vector.shape_cast %145 : vector<1x8xf32> to vector<1x8x1xf32>
    %147 = vector.broadcast %146 : vector<1x8x1xf32> to vector<1x8x8xf32>
    %148 = arith.subf %144, %147 : vector<1x8x8xf32>
    %149 = math.exp %148 : vector<1x8x8xf32>
    %cst_59 = arith.constant dense<0.000000e+00> : vector<1x8xf32>
    %150 = vector.multi_reduction <add>, %149, %cst_59 [2] : vector<1x8x8xf32> to vector<1x8xf32>
    %151 = vector.shape_cast %150 : vector<1x8xf32> to vector<1x8x1xf32>
    %152 = tpu.reciprocal %151 {approx = true} : vector<1x8x1xf32> -> vector<1x8x1xf32>
    %153 = vector.broadcast %152 : vector<1x8x1xf32> to vector<1x8x8xf32>
    %154 = arith.mulf %149, %153 : vector<1x8x8xf32>
    %155 = arith.truncf %154 : vector<1x8x8xf32> to vector<1x8x8xbf16>
    "tpu.trace_start"() <{level = 10 : i32, message = "gqk,gkd->gqd"}> : () -> ()
    %cst_60 = arith.constant dense<0.000000e+00> : vector<1x8x32xf32>
    %156 = tpu.matmul %155, %143, %cst_60 {dimension_numbers = #tpu.dot_dimension_numbers<[2], [1], [1], [2], [0, 0, 0, 1, 1, 2], [0], [0]>} : vector<1x8x8xbf16>, vector<1x8x32xbf16>, vector<1x8x32xf32> -> vector<1x8x32xf32>
    "tpu.trace_stop"() : () -> ()
    %157 = vector.shape_cast %156 : vector<1x8x32xf32> to vector<8x32xf32>
    %158 = arith.truncf %157 : vector<8x32xf32> to vector<8x32xbf16>
    %c64 = arith.constant 64 : index
    %c0_61 = arith.constant 0 : index
    %159 = vector.load %arg10[%c64, %c0_61] : memref<256x256xbf16, #tpu.memory_space<vmem>>, vector<32x256xbf16>
    %cst_62 = arith.constant dense<0.000000e+00> : vector<8x256xf32>
    %160 = tpu.matmul %158, %159, %cst_62 {dimension_numbers = #tpu.dot_dimension_numbers<[1], [0], [0], [1], [0, 0, 1, 1], [], []>} : vector<8x32xbf16>, vector<32x256xbf16>, vector<8x256xf32> -> vector<8x256xf32>
    %161 = arith.addf %137, %160 : vector<8x256xf32>
    %162 = vector.extract_strided_slice %78 {offsets = [0, 96], sizes = [8, 32], strides = [1, 1]} : vector<8x256xbf16> to vector<8x32xbf16>
    %163 = vector.shape_cast %162 : vector<8x32xbf16> to vector<1x8x32xbf16>
    %164 = vector.extract_strided_slice %84 {offsets = [0, 96], sizes = [8, 32], strides = [1, 1]} : vector<8x256xbf16> to vector<8x32xbf16>
    %165 = vector.shape_cast %164 : vector<8x32xbf16> to vector<1x8x32xbf16>
    %166 = vector.extract_strided_slice %90 {offsets = [0, 96], sizes = [8, 32], strides = [1, 1]} : vector<8x256xbf16> to vector<8x32xbf16>
    %167 = vector.shape_cast %166 : vector<8x32xbf16> to vector<1x8x32xbf16>
    "tpu.trace_start"() <{level = 10 : i32, message = "gqd,gkd->gqk"}> : () -> ()
    %cst_63 = arith.constant dense<0.000000e+00> : vector<1x8x8xf32>
    %168 = tpu.matmul %163, %165, %cst_63 {dimension_numbers = #tpu.dot_dimension_numbers<[2], [2], [1], [1], [0, 0, 0, 1, 1, 1], [0], [0]>} : vector<1x8x32xbf16>, vector<1x8x32xbf16>, vector<1x8x8xf32> -> vector<1x8x8xf32>
    "tpu.trace_stop"() : () -> ()
    %cst_64 = arith.constant dense<0xFF800000> : vector<1x8xf32>
    %169 = vector.multi_reduction <maximumf>, %168, %cst_64 [2] : vector<1x8x8xf32> to vector<1x8xf32>
    %170 = vector.shape_cast %169 : vector<1x8xf32> to vector<1x8x1xf32>
    %171 = vector.broadcast %170 : vector<1x8x1xf32> to vector<1x8x8xf32>
    %172 = arith.subf %168, %171 : vector<1x8x8xf32>
    %173 = math.exp %172 : vector<1x8x8xf32>
    %cst_65 = arith.constant dense<0.000000e+00> : vector<1x8xf32>
    %174 = vector.multi_reduction <add>, %173, %cst_65 [2] : vector<1x8x8xf32> to vector<1x8xf32>
    %175 = vector.shape_cast %174 : vector<1x8xf32> to vector<1x8x1xf32>
    %176 = tpu.reciprocal %175 {approx = true} : vector<1x8x1xf32> -> vector<1x8x1xf32>
    %177 = vector.broadcast %176 : vector<1x8x1xf32> to vector<1x8x8xf32>
    %178 = arith.mulf %173, %177 : vector<1x8x8xf32>
    %179 = arith.truncf %178 : vector<1x8x8xf32> to vector<1x8x8xbf16>
    "tpu.trace_start"() <{level = 10 : i32, message = "gqk,gkd->gqd"}> : () -> ()
    %cst_66 = arith.constant dense<0.000000e+00> : vector<1x8x32xf32>
    %180 = tpu.matmul %179, %167, %cst_66 {dimension_numbers = #tpu.dot_dimension_numbers<[2], [1], [1], [2], [0, 0, 0, 1, 1, 2], [0], [0]>} : vector<1x8x8xbf16>, vector<1x8x32xbf16>, vector<1x8x32xf32> -> vector<1x8x32xf32>
    "tpu.trace_stop"() : () -> ()
    %181 = vector.shape_cast %180 : vector<1x8x32xf32> to vector<8x32xf32>
    %182 = arith.truncf %181 : vector<8x32xf32> to vector<8x32xbf16>
    %c96 = arith.constant 96 : index
    %c0_67 = arith.constant 0 : index
    %183 = vector.load %arg10[%c96, %c0_67] : memref<256x256xbf16, #tpu.memory_space<vmem>>, vector<32x256xbf16>
    %cst_68 = arith.constant dense<0.000000e+00> : vector<8x256xf32>
    %184 = tpu.matmul %182, %183, %cst_68 {dimension_numbers = #tpu.dot_dimension_numbers<[1], [0], [0], [1], [0, 0, 1, 1], [], []>} : vector<8x32xbf16>, vector<32x256xbf16>, vector<8x256xf32> -> vector<8x256xf32>
    %185 = arith.addf %161, %184 : vector<8x256xf32>
    %186 = vector.extract_strided_slice %78 {offsets = [0, 128], sizes = [8, 32], strides = [1, 1]} : vector<8x256xbf16> to vector<8x32xbf16>
    %187 = vector.shape_cast %186 : vector<8x32xbf16> to vector<1x8x32xbf16>
    %188 = vector.extract_strided_slice %84 {offsets = [0, 128], sizes = [8, 32], strides = [1, 1]} : vector<8x256xbf16> to vector<8x32xbf16>
    %189 = vector.shape_cast %188 : vector<8x32xbf16> to vector<1x8x32xbf16>
    %190 = vector.extract_strided_slice %90 {offsets = [0, 128], sizes = [8, 32], strides = [1, 1]} : vector<8x256xbf16> to vector<8x32xbf16>
    %191 = vector.shape_cast %190 : vector<8x32xbf16> to vector<1x8x32xbf16>
    "tpu.trace_start"() <{level = 10 : i32, message = "gqd,gkd->gqk"}> : () -> ()
    %cst_69 = arith.constant dense<0.000000e+00> : vector<1x8x8xf32>
    %192 = tpu.matmul %187, %189, %cst_69 {dimension_numbers = #tpu.dot_dimension_numbers<[2], [2], [1], [1], [0, 0, 0, 1, 1, 1], [0], [0]>} : vector<1x8x32xbf16>, vector<1x8x32xbf16>, vector<1x8x8xf32> -> vector<1x8x8xf32>
    "tpu.trace_stop"() : () -> ()
    %cst_70 = arith.constant dense<0xFF800000> : vector<1x8xf32>
    %193 = vector.multi_reduction <maximumf>, %192, %cst_70 [2] : vector<1x8x8xf32> to vector<1x8xf32>
    %194 = vector.shape_cast %193 : vector<1x8xf32> to vector<1x8x1xf32>
    %195 = vector.broadcast %194 : vector<1x8x1xf32> to vector<1x8x8xf32>
    %196 = arith.subf %192, %195 : vector<1x8x8xf32>
    %197 = math.exp %196 : vector<1x8x8xf32>
    %cst_71 = arith.constant dense<0.000000e+00> : vector<1x8xf32>
    %198 = vector.multi_reduction <add>, %197, %cst_71 [2] : vector<1x8x8xf32> to vector<1x8xf32>
    %199 = vector.shape_cast %198 : vector<1x8xf32> to vector<1x8x1xf32>
    %200 = tpu.reciprocal %199 {approx = true} : vector<1x8x1xf32> -> vector<1x8x1xf32>
    %201 = vector.broadcast %200 : vector<1x8x1xf32> to vector<1x8x8xf32>
    %202 = arith.mulf %197, %201 : vector<1x8x8xf32>
    %203 = arith.truncf %202 : vector<1x8x8xf32> to vector<1x8x8xbf16>
    "tpu.trace_start"() <{level = 10 : i32, message = "gqk,gkd->gqd"}> : () -> ()
    %cst_72 = arith.constant dense<0.000000e+00> : vector<1x8x32xf32>
    %204 = tpu.matmul %203, %191, %cst_72 {dimension_numbers = #tpu.dot_dimension_numbers<[2], [1], [1], [2], [0, 0, 0, 1, 1, 2], [0], [0]>} : vector<1x8x8xbf16>, vector<1x8x32xbf16>, vector<1x8x32xf32> -> vector<1x8x32xf32>
    "tpu.trace_stop"() : () -> ()
    %205 = vector.shape_cast %204 : vector<1x8x32xf32> to vector<8x32xf32>
    %206 = arith.truncf %205 : vector<8x32xf32> to vector<8x32xbf16>
    %c128 = arith.constant 128 : index
    %c0_73 = arith.constant 0 : index
    %207 = vector.load %arg10[%c128, %c0_73] : memref<256x256xbf16, #tpu.memory_space<vmem>>, vector<32x256xbf16>
    %cst_74 = arith.constant dense<0.000000e+00> : vector<8x256xf32>
    %208 = tpu.matmul %206, %207, %cst_74 {dimension_numbers = #tpu.dot_dimension_numbers<[1], [0], [0], [1], [0, 0, 1, 1], [], []>} : vector<8x32xbf16>, vector<32x256xbf16>, vector<8x256xf32> -> vector<8x256xf32>
    %209 = arith.addf %185, %208 : vector<8x256xf32>
    %210 = vector.extract_strided_slice %78 {offsets = [0, 160], sizes = [8, 32], strides = [1, 1]} : vector<8x256xbf16> to vector<8x32xbf16>
    %211 = vector.shape_cast %210 : vector<8x32xbf16> to vector<1x8x32xbf16>
    %212 = vector.extract_strided_slice %84 {offsets = [0, 160], sizes = [8, 32], strides = [1, 1]} : vector<8x256xbf16> to vector<8x32xbf16>
    %213 = vector.shape_cast %212 : vector<8x32xbf16> to vector<1x8x32xbf16>
    %214 = vector.extract_strided_slice %90 {offsets = [0, 160], sizes = [8, 32], strides = [1, 1]} : vector<8x256xbf16> to vector<8x32xbf16>
    %215 = vector.shape_cast %214 : vector<8x32xbf16> to vector<1x8x32xbf16>
    "tpu.trace_start"() <{level = 10 : i32, message = "gqd,gkd->gqk"}> : () -> ()
    %cst_75 = arith.constant dense<0.000000e+00> : vector<1x8x8xf32>
    %216 = tpu.matmul %211, %213, %cst_75 {dimension_numbers = #tpu.dot_dimension_numbers<[2], [2], [1], [1], [0, 0, 0, 1, 1, 1], [0], [0]>} : vector<1x8x32xbf16>, vector<1x8x32xbf16>, vector<1x8x8xf32> -> vector<1x8x8xf32>
    "tpu.trace_stop"() : () -> ()
    %cst_76 = arith.constant dense<0xFF800000> : vector<1x8xf32>
    %217 = vector.multi_reduction <maximumf>, %216, %cst_76 [2] : vector<1x8x8xf32> to vector<1x8xf32>
    %218 = vector.shape_cast %217 : vector<1x8xf32> to vector<1x8x1xf32>
    %219 = vector.broadcast %218 : vector<1x8x1xf32> to vector<1x8x8xf32>
    %220 = arith.subf %216, %219 : vector<1x8x8xf32>
    %221 = math.exp %220 : vector<1x8x8xf32>
    %cst_77 = arith.constant dense<0.000000e+00> : vector<1x8xf32>
    %222 = vector.multi_reduction <add>, %221, %cst_77 [2] : vector<1x8x8xf32> to vector<1x8xf32>
    %223 = vector.shape_cast %222 : vector<1x8xf32> to vector<1x8x1xf32>
    %224 = tpu.reciprocal %223 {approx = true} : vector<1x8x1xf32> -> vector<1x8x1xf32>
    %225 = vector.broadcast %224 : vector<1x8x1xf32> to vector<1x8x8xf32>
    %226 = arith.mulf %221, %225 : vector<1x8x8xf32>
    %227 = arith.truncf %226 : vector<1x8x8xf32> to vector<1x8x8xbf16>
    "tpu.trace_start"() <{level = 10 : i32, message = "gqk,gkd->gqd"}> : () -> ()
    %cst_78 = arith.constant dense<0.000000e+00> : vector<1x8x32xf32>
    %228 = tpu.matmul %227, %215, %cst_78 {dimension_numbers = #tpu.dot_dimension_numbers<[2], [1], [1], [2], [0, 0, 0, 1, 1, 2], [0], [0]>} : vector<1x8x8xbf16>, vector<1x8x32xbf16>, vector<1x8x32xf32> -> vector<1x8x32xf32>
    "tpu.trace_stop"() : () -> ()
    %229 = vector.shape_cast %228 : vector<1x8x32xf32> to vector<8x32xf32>
    %230 = arith.truncf %229 : vector<8x32xf32> to vector<8x32xbf16>
    %c160 = arith.constant 160 : index
    %c0_79 = arith.constant 0 : index
    %231 = vector.load %arg10[%c160, %c0_79] : memref<256x256xbf16, #tpu.memory_space<vmem>>, vector<32x256xbf16>
    %cst_80 = arith.constant dense<0.000000e+00> : vector<8x256xf32>
    %232 = tpu.matmul %230, %231, %cst_80 {dimension_numbers = #tpu.dot_dimension_numbers<[1], [0], [0], [1], [0, 0, 1, 1], [], []>} : vector<8x32xbf16>, vector<32x256xbf16>, vector<8x256xf32> -> vector<8x256xf32>
    %233 = arith.addf %209, %232 : vector<8x256xf32>
    %234 = vector.extract_strided_slice %78 {offsets = [0, 192], sizes = [8, 32], strides = [1, 1]} : vector<8x256xbf16> to vector<8x32xbf16>
    %235 = vector.shape_cast %234 : vector<8x32xbf16> to vector<1x8x32xbf16>
    %236 = vector.extract_strided_slice %84 {offsets = [0, 192], sizes = [8, 32], strides = [1, 1]} : vector<8x256xbf16> to vector<8x32xbf16>
    %237 = vector.shape_cast %236 : vector<8x32xbf16> to vector<1x8x32xbf16>
    %238 = vector.extract_strided_slice %90 {offsets = [0, 192], sizes = [8, 32], strides = [1, 1]} : vector<8x256xbf16> to vector<8x32xbf16>
    %239 = vector.shape_cast %238 : vector<8x32xbf16> to vector<1x8x32xbf16>
    "tpu.trace_start"() <{level = 10 : i32, message = "gqd,gkd->gqk"}> : () -> ()
    %cst_81 = arith.constant dense<0.000000e+00> : vector<1x8x8xf32>
    %240 = tpu.matmul %235, %237, %cst_81 {dimension_numbers = #tpu.dot_dimension_numbers<[2], [2], [1], [1], [0, 0, 0, 1, 1, 1], [0], [0]>} : vector<1x8x32xbf16>, vector<1x8x32xbf16>, vector<1x8x8xf32> -> vector<1x8x8xf32>
    "tpu.trace_stop"() : () -> ()
    %cst_82 = arith.constant dense<0xFF800000> : vector<1x8xf32>
    %241 = vector.multi_reduction <maximumf>, %240, %cst_82 [2] : vector<1x8x8xf32> to vector<1x8xf32>
    %242 = vector.shape_cast %241 : vector<1x8xf32> to vector<1x8x1xf32>
    %243 = vector.broadcast %242 : vector<1x8x1xf32> to vector<1x8x8xf32>
    %244 = arith.subf %240, %243 : vector<1x8x8xf32>
    %245 = math.exp %244 : vector<1x8x8xf32>
    %cst_83 = arith.constant dense<0.000000e+00> : vector<1x8xf32>
    %246 = vector.multi_reduction <add>, %245, %cst_83 [2] : vector<1x8x8xf32> to vector<1x8xf32>
    %247 = vector.shape_cast %246 : vector<1x8xf32> to vector<1x8x1xf32>
    %248 = tpu.reciprocal %247 {approx = true} : vector<1x8x1xf32> -> vector<1x8x1xf32>
    %249 = vector.broadcast %248 : vector<1x8x1xf32> to vector<1x8x8xf32>
    %250 = arith.mulf %245, %249 : vector<1x8x8xf32>
    %251 = arith.truncf %250 : vector<1x8x8xf32> to vector<1x8x8xbf16>
    "tpu.trace_start"() <{level = 10 : i32, message = "gqk,gkd->gqd"}> : () -> ()
    %cst_84 = arith.constant dense<0.000000e+00> : vector<1x8x32xf32>
    %252 = tpu.matmul %251, %239, %cst_84 {dimension_numbers = #tpu.dot_dimension_numbers<[2], [1], [1], [2], [0, 0, 0, 1, 1, 2], [0], [0]>} : vector<1x8x8xbf16>, vector<1x8x32xbf16>, vector<1x8x32xf32> -> vector<1x8x32xf32>
    "tpu.trace_stop"() : () -> ()
    %253 = vector.shape_cast %252 : vector<1x8x32xf32> to vector<8x32xf32>
    %254 = arith.truncf %253 : vector<8x32xf32> to vector<8x32xbf16>
    %c192 = arith.constant 192 : index
    %c0_85 = arith.constant 0 : index
    %255 = vector.load %arg10[%c192, %c0_85] : memref<256x256xbf16, #tpu.memory_space<vmem>>, vector<32x256xbf16>
    %cst_86 = arith.constant dense<0.000000e+00> : vector<8x256xf32>
    %256 = tpu.matmul %254, %255, %cst_86 {dimension_numbers = #tpu.dot_dimension_numbers<[1], [0], [0], [1], [0, 0, 1, 1], [], []>} : vector<8x32xbf16>, vector<32x256xbf16>, vector<8x256xf32> -> vector<8x256xf32>
    %257 = arith.addf %233, %256 : vector<8x256xf32>
    %258 = vector.extract_strided_slice %78 {offsets = [0, 224], sizes = [8, 32], strides = [1, 1]} : vector<8x256xbf16> to vector<8x32xbf16>
    %259 = vector.shape_cast %258 : vector<8x32xbf16> to vector<1x8x32xbf16>
    %260 = vector.extract_strided_slice %84 {offsets = [0, 224], sizes = [8, 32], strides = [1, 1]} : vector<8x256xbf16> to vector<8x32xbf16>
    %261 = vector.shape_cast %260 : vector<8x32xbf16> to vector<1x8x32xbf16>
    %262 = vector.extract_strided_slice %90 {offsets = [0, 224], sizes = [8, 32], strides = [1, 1]} : vector<8x256xbf16> to vector<8x32xbf16>
    %263 = vector.shape_cast %262 : vector<8x32xbf16> to vector<1x8x32xbf16>
    "tpu.trace_start"() <{level = 10 : i32, message = "gqd,gkd->gqk"}> : () -> ()
    %cst_87 = arith.constant dense<0.000000e+00> : vector<1x8x8xf32>
    %264 = tpu.matmul %259, %261, %cst_87 {dimension_numbers = #tpu.dot_dimension_numbers<[2], [2], [1], [1], [0, 0, 0, 1, 1, 1], [0], [0]>} : vector<1x8x32xbf16>, vector<1x8x32xbf16>, vector<1x8x8xf32> -> vector<1x8x8xf32>
    "tpu.trace_stop"() : () -> ()
    %cst_88 = arith.constant dense<0xFF800000> : vector<1x8xf32>
    %265 = vector.multi_reduction <maximumf>, %264, %cst_88 [2] : vector<1x8x8xf32> to vector<1x8xf32>
    %266 = vector.shape_cast %265 : vector<1x8xf32> to vector<1x8x1xf32>
    %267 = vector.broadcast %266 : vector<1x8x1xf32> to vector<1x8x8xf32>
    %268 = arith.subf %264, %267 : vector<1x8x8xf32>
    %269 = math.exp %268 : vector<1x8x8xf32>
    %cst_89 = arith.constant dense<0.000000e+00> : vector<1x8xf32>
    %270 = vector.multi_reduction <add>, %269, %cst_89 [2] : vector<1x8x8xf32> to vector<1x8xf32>
    %271 = vector.shape_cast %270 : vector<1x8xf32> to vector<1x8x1xf32>
    %272 = tpu.reciprocal %271 {approx = true} : vector<1x8x1xf32> -> vector<1x8x1xf32>
    %273 = vector.broadcast %272 : vector<1x8x1xf32> to vector<1x8x8xf32>
    %274 = arith.mulf %269, %273 : vector<1x8x8xf32>
    %275 = arith.truncf %274 : vector<1x8x8xf32> to vector<1x8x8xbf16>
    "tpu.trace_start"() <{level = 10 : i32, message = "gqk,gkd->gqd"}> : () -> ()
    %cst_90 = arith.constant dense<0.000000e+00> : vector<1x8x32xf32>
    %276 = tpu.matmul %275, %263, %cst_90 {dimension_numbers = #tpu.dot_dimension_numbers<[2], [1], [1], [2], [0, 0, 0, 1, 1, 2], [0], [0]>} : vector<1x8x8xbf16>, vector<1x8x32xbf16>, vector<1x8x32xf32> -> vector<1x8x32xf32>
    "tpu.trace_stop"() : () -> ()
    %277 = vector.shape_cast %276 : vector<1x8x32xf32> to vector<8x32xf32>
    %278 = arith.truncf %277 : vector<8x32xf32> to vector<8x32xbf16>
    %c224 = arith.constant 224 : index
    %c0_91 = arith.constant 0 : index
    %279 = vector.load %arg10[%c224, %c0_91] : memref<256x256xbf16, #tpu.memory_space<vmem>>, vector<32x256xbf16>
    %cst_92 = arith.constant dense<0.000000e+00> : vector<8x256xf32>
    %280 = tpu.matmul %278, %279, %cst_92 {dimension_numbers = #tpu.dot_dimension_numbers<[1], [0], [0], [1], [0, 0, 1, 1], [], []>} : vector<8x32xbf16>, vector<32x256xbf16>, vector<8x256xf32> -> vector<8x256xf32>
    %281 = arith.addf %257, %280 : vector<8x256xf32>
    %c9 = arith.constant 9 : index
    %c0_93 = arith.constant 0 : index
    %282 = vector.load %arg3[%c9, %c0_93] : memref<17x256xf32, #tpu.memory_space<vmem>>, vector<1x256xf32>
    %283 = vector.broadcast %282 : vector<1x256xf32> to vector<8x256xf32>
    %284 = arith.addf %281, %283 : vector<8x256xf32>
    %285 = vector.shape_cast %284 : vector<8x256xf32> to vector<1x8x256xf32>
    %cst_94 = arith.constant dense<0.000000e+00> : vector<1x256xf32>
    %286 = vector.multi_reduction <add>, %285, %cst_94 [1] : vector<1x8x256xf32> to vector<1x256xf32>
    %cst_95 = arith.constant 8.000000e+00 : f32
    %287 = vector.broadcast %cst_95 : f32 to vector<1x256xf32>
    %288 = arith.divf %286, %287 : vector<1x256xf32>
    %289 = arith.truncf %288 : vector<1x256xf32> to vector<1x256xbf16>
    %c0_96 = arith.constant 0 : index
    %c0_97 = arith.constant 0 : index
    %290 = vector.load %arg11[%c0_96, %c0_97] : memref<256x256xbf16, #tpu.memory_space<vmem>>, vector<256x256xbf16>
    %cst_98 = arith.constant dense<0.000000e+00> : vector<1x256xf32>
    %291 = tpu.matmul %289, %290, %cst_98 {dimension_numbers = #tpu.dot_dimension_numbers<[1], [0], [0], [1], [0, 0, 1, 1], [], []>} : vector<1x256xbf16>, vector<256x256xbf16>, vector<1x256xf32> -> vector<1x256xf32>
    %c10 = arith.constant 10 : index
    %c0_99 = arith.constant 0 : index
    %292 = vector.load %arg3[%c10, %c0_99] : memref<17x256xf32, #tpu.memory_space<vmem>>, vector<1x256xf32>
    %293 = arith.addf %291, %292 : vector<1x256xf32>
    %c11 = arith.constant 11 : index
    %c0_100 = arith.constant 0 : index
    %294 = vector.load %arg3[%c11, %c0_100] : memref<17x256xf32, #tpu.memory_space<vmem>>, vector<1x256xf32>
    %c12 = arith.constant 12 : index
    %c0_101 = arith.constant 0 : index
    %295 = vector.load %arg3[%c12, %c0_101] : memref<17x256xf32, #tpu.memory_space<vmem>>, vector<1x256xf32>
    %cst_102 = arith.constant dense<0.000000e+00> : vector<1xf32>
    %296 = vector.multi_reduction <add>, %293, %cst_102 [1] : vector<1x256xf32> to vector<1xf32>
    %297 = vector.shape_cast %296 : vector<1xf32> to vector<1x1xf32>
    %cst_103 = arith.constant 2.560000e+02 : f32
    %298 = vector.broadcast %cst_103 : f32 to vector<1x1xf32>
    %299 = arith.divf %297, %298 : vector<1x1xf32>
    %300 = arith.mulf %293, %293 : vector<1x256xf32>
    %cst_104 = arith.constant dense<0.000000e+00> : vector<1xf32>
    %301 = vector.multi_reduction <add>, %300, %cst_104 [1] : vector<1x256xf32> to vector<1xf32>
    %302 = vector.shape_cast %301 : vector<1xf32> to vector<1x1xf32>
    %cst_105 = arith.constant 2.560000e+02 : f32
    %303 = vector.broadcast %cst_105 : f32 to vector<1x1xf32>
    %304 = arith.divf %302, %303 : vector<1x1xf32>
    %305 = arith.mulf %299, %299 : vector<1x1xf32>
    %306 = arith.subf %304, %305 : vector<1x1xf32>
    %307 = vector.broadcast %299 : vector<1x1xf32> to vector<1x256xf32>
    %308 = arith.subf %293, %307 : vector<1x256xf32>
    %cst_106 = arith.constant 9.99999974E-6 : f32
    %309 = vector.broadcast %cst_106 : f32 to vector<1x1xf32>
    %310 = arith.addf %306, %309 : vector<1x1xf32>
    %311 = math.rsqrt %310 : vector<1x1xf32>
    %312 = vector.broadcast %311 : vector<1x1xf32> to vector<1x256xf32>
    %313 = arith.mulf %308, %312 : vector<1x256xf32>
    %314 = arith.mulf %313, %294 : vector<1x256xf32>
    %315 = arith.addf %314, %295 : vector<1x256xf32>
    %cst_107 = arith.constant 0.000000e+00 : f32
    %316 = vector.broadcast %cst_107 : f32 to vector<1x256xf32>
    %317 = arith.maximumf %315, %316 : vector<1x256xf32>
    %318 = arith.truncf %317 : vector<1x256xf32> to vector<1x256xbf16>
    %c0_108 = arith.constant 0 : index
    %c0_109 = arith.constant 0 : index
    %319 = vector.load %arg12[%c0_108, %c0_109] : memref<256x128xbf16, #tpu.memory_space<vmem>>, vector<256x128xbf16>
    %cst_110 = arith.constant dense<0.000000e+00> : vector<1x128xf32>
    %320 = tpu.matmul %318, %319, %cst_110 {dimension_numbers = #tpu.dot_dimension_numbers<[1], [0], [0], [1], [0, 0, 1, 1], [], []>} : vector<1x256xbf16>, vector<256x128xbf16>, vector<1x128xf32> -> vector<1x128xf32>
    %c13 = arith.constant 13 : index
    %c0_111 = arith.constant 0 : index
    %321 = vector.load %arg3[%c13, %c0_111] : memref<17x256xf32, #tpu.memory_space<vmem>>, vector<1x128xf32>
    %322 = arith.addf %320, %321 : vector<1x128xf32>
    %c14 = arith.constant 14 : index
    %c0_112 = arith.constant 0 : index
    %323 = vector.load %arg3[%c14, %c0_112] : memref<17x256xf32, #tpu.memory_space<vmem>>, vector<1x128xf32>
    %c15 = arith.constant 15 : index
    %c0_113 = arith.constant 0 : index
    %324 = vector.load %arg3[%c15, %c0_113] : memref<17x256xf32, #tpu.memory_space<vmem>>, vector<1x128xf32>
    %cst_114 = arith.constant dense<0.000000e+00> : vector<1xf32>
    %325 = vector.multi_reduction <add>, %322, %cst_114 [1] : vector<1x128xf32> to vector<1xf32>
    %326 = vector.shape_cast %325 : vector<1xf32> to vector<1x1xf32>
    %cst_115 = arith.constant 1.280000e+02 : f32
    %327 = vector.broadcast %cst_115 : f32 to vector<1x1xf32>
    %328 = arith.divf %326, %327 : vector<1x1xf32>
    %329 = arith.mulf %322, %322 : vector<1x128xf32>
    %cst_116 = arith.constant dense<0.000000e+00> : vector<1xf32>
    %330 = vector.multi_reduction <add>, %329, %cst_116 [1] : vector<1x128xf32> to vector<1xf32>
    %331 = vector.shape_cast %330 : vector<1xf32> to vector<1x1xf32>
    %cst_117 = arith.constant 1.280000e+02 : f32
    %332 = vector.broadcast %cst_117 : f32 to vector<1x1xf32>
    %333 = arith.divf %331, %332 : vector<1x1xf32>
    %334 = arith.mulf %328, %328 : vector<1x1xf32>
    %335 = arith.subf %333, %334 : vector<1x1xf32>
    %336 = vector.broadcast %328 : vector<1x1xf32> to vector<1x128xf32>
    %337 = arith.subf %322, %336 : vector<1x128xf32>
    %cst_118 = arith.constant 9.99999974E-6 : f32
    %338 = vector.broadcast %cst_118 : f32 to vector<1x1xf32>
    %339 = arith.addf %335, %338 : vector<1x1xf32>
    %340 = math.rsqrt %339 : vector<1x1xf32>
    %341 = vector.broadcast %340 : vector<1x1xf32> to vector<1x128xf32>
    %342 = arith.mulf %337, %341 : vector<1x128xf32>
    %343 = arith.mulf %342, %323 : vector<1x128xf32>
    %344 = arith.addf %343, %324 : vector<1x128xf32>
    %cst_119 = arith.constant 0.000000e+00 : f32
    %345 = vector.broadcast %cst_119 : f32 to vector<1x128xf32>
    %346 = arith.maximumf %344, %345 : vector<1x128xf32>
    %347 = arith.truncf %346 : vector<1x128xf32> to vector<1x128xbf16>
    %c0_120 = arith.constant 0 : index
    %c0_121 = arith.constant 0 : index
    %348 = vector.load %arg13[%c0_120, %c0_121] : memref<128x256xbf16, #tpu.memory_space<vmem>>, vector<128x256xbf16>
    %cst_122 = arith.constant dense<0.000000e+00> : vector<1x256xf32>
    %349 = tpu.matmul %347, %348, %cst_122 {dimension_numbers = #tpu.dot_dimension_numbers<[1], [0], [0], [1], [0, 0, 1, 1], [], []>} : vector<1x128xbf16>, vector<128x256xbf16>, vector<1x256xf32> -> vector<1x256xf32>
    %c16 = arith.constant 16 : index
    %c0_123 = arith.constant 0 : index
    %350 = vector.load %arg3[%c16, %c0_123] : memref<17x256xf32, #tpu.memory_space<vmem>>, vector<1x256xf32>
    %351 = arith.addf %349, %350 : vector<1x256xf32>
    %352 = vector.shape_cast %351 : vector<1x256xf32> to vector<1x1x256xf32>
    %c0_124 = arith.constant 0 : index
    %c0_125 = arith.constant 0 : index
    %c0_126 = arith.constant 0 : index
    %353 = vector.load %arg14[%c0_124, %c0_125, %c0_126] : memref<1x1x256xf32, #tpu.memory_space<vmem>>, vector<1x1x256xf32>
    tpu.vector_store %arg14[%c0_124, %c0_125, %c0_126], %352 {strides = array<i32>} : memref<1x1x256xf32, #tpu.memory_space<vmem>>, vector<1x1x256xf32>,
    return
  }
  func.func @transform_0(%arg0: i32) -> (i32, i32, i32) {
    %c0_i32 = arith.constant 0 : i32
    %c0_i32_0 = arith.constant 0 : i32
    %c0_i32_1 = arith.constant 0 : i32
    return %arg0, %c0_i32, %c0_i32_0 : i32, i32, i32
  }
  func.func @transform_1(%arg0: i32) -> (i32, i32, i32) {
    %c0_i32 = arith.constant 0 : i32
    %c0_i32_0 = arith.constant 0 : i32
    %c0_i32_1 = arith.constant 0 : i32
    return %arg0, %c0_i32, %c0_i32_0 : i32, i32, i32
  }
  func.func @transform_2(%arg0: i32) -> (i32, i32) {
    %c0_i32 = arith.constant 0 : i32
    %c0_i32_0 = arith.constant 0 : i32
    %c0_i32_1 = arith.constant 0 : i32
    return %c0_i32, %c0_i32_0 : i32, i32
  }
  func.func @transform_3(%arg0: i32) -> (i32, i32) {
    %c0_i32 = arith.constant 0 : i32
    %c0_i32_0 = arith.constant 0 : i32
    %c0_i32_1 = arith.constant 0 : i32
    return %c0_i32, %c0_i32_0 : i32, i32
  }
  func.func @transform_4(%arg0: i32) -> (i32, i32) {
    %c0_i32 = arith.constant 0 : i32
    %c0_i32_0 = arith.constant 0 : i32
    %c0_i32_1 = arith.constant 0 : i32
    return %c0_i32, %c0_i32_0 : i32, i32
  }
  func.func @transform_5(%arg0: i32) -> (i32, i32) {
    %c0_i32 = arith.constant 0 : i32
    %c0_i32_0 = arith.constant 0 : i32
    %c0_i32_1 = arith.constant 0 : i32
    return %c0_i32, %c0_i32_0 : i32, i32
  }
  func.func @transform_6(%arg0: i32) -> (i32, i32) {
    %c0_i32 = arith.constant 0 : i32
    %c0_i32_0 = arith.constant 0 : i32
    %c0_i32_1 = arith.constant 0 : i32
    return %c0_i32, %c0_i32_0 : i32, i32
  }
  func.func @transform_7(%arg0: i32) -> (i32, i32) {
    %c0_i32 = arith.constant 0 : i32
    %c0_i32_0 = arith.constant 0 : i32
    %c0_i32_1 = arith.constant 0 : i32
    return %c0_i32, %c0_i32_0 : i32, i32
  }
  func.func @transform_8(%arg0: i32) -> (i32, i32) {
    %c0_i32 = arith.constant 0 : i32
    %c0_i32_0 = arith.constant 0 : i32
    %c0_i32_1 = arith.constant 0 : i32
    return %c0_i32, %c0_i32_0 : i32, i32
  }
  func.func @transform_9(%arg0: i32) -> (i32, i32) {
    %c0_i32 = arith.constant 0 : i32
    %c0_i32_0 = arith.constant 0 : i32
    %c0_i32_1 = arith.constant 0 : i32
    return %c0_i32, %c0_i32_0 : i32, i32
  }
  func.func @transform_10(%arg0: i32) -> (i32, i32) {
    %c0_i32 = arith.constant 0 : i32
    %c0_i32_0 = arith.constant 0 : i32
    %c0_i32_1 = arith.constant 0 : i32
    return %c0_i32, %c0_i32_0 : i32, i32
  }
  func.func @transform_11(%arg0: i32) -> (i32, i32) {
    %c0_i32 = arith.constant 0 : i32
    %c0_i32_0 = arith.constant 0 : i32
    %c0_i32_1 = arith.constant 0 : i32
    return %c0_i32, %c0_i32_0 : i32, i32
  }
  func.func @transform_12(%arg0: i32) -> (i32, i32) {
    %c0_i32 = arith.constant 0 : i32
    %c0_i32_0 = arith.constant 0 : i32
    %c0_i32_1 = arith.constant 0 : i32
    return %c0_i32, %c0_i32_0 : i32, i32
  }
  func.func @transform_13(%arg0: i32) -> (i32, i32, i32) {
    %c0_i32 = arith.constant 0 : i32
    %c0_i32_0 = arith.constant 0 : i32
    %c0_i32_1 = arith.constant 0 : i32
    return %arg0, %c0_i32, %c0_i32_0 : i32, i32, i32
  }
}

</mosaic_0001>

<llo_original>
// kernel: tpu_custom_call.1
$region0: #{tpu_custom_call.1}
  #allocation0 [shape = 'u32[]', space=smem, size = 0x4, offset = 0x4, fixed_abs, tag = 'smem constant byte address 0x4 - core index']
  #allocation1 [shape = 'u32[144,128]{1,0:T(1,128)}', space=vmem, size = 0x12000, scoped, tag = 'internal scratch']
  %s0 = inlined_call_operand.hbm [shape: f32[2,8,268], index: 0, kind: input, shape index: {}]
  %s1 = inlined_call_operand.hbm [shape: f32[2,8,12], index: 1, kind: input, shape index: {}]
  %s2 = inlined_call_operand.hbm [shape: f32[17,256], index: 2, kind: input, shape index: {}]
  %s3 = inlined_call_operand.hbm [shape: bf16[268,256], index: 3, kind: input, shape index: {}]
  %s4 = inlined_call_operand.hbm [shape: bf16[12,256], index: 4, kind: input, shape index: {}]
  %s5 = inlined_call_operand.hbm [shape: bf16[256,256], index: 5, kind: input, shape index: {}]
  %s6 = inlined_call_operand.hbm [shape: bf16[256,256], index: 6, kind: input, shape index: {}]
  %s7 = inlined_call_operand.hbm [shape: bf16[256,256], index: 7, kind: input, shape index: {}]
  %s8 = inlined_call_operand.hbm [shape: bf16[256,256], index: 8, kind: input, shape index: {}]
  %s9 = inlined_call_operand.hbm [shape: bf16[256,256], index: 9, kind: input, shape index: {}]
  %s10 = inlined_call_operand.hbm [shape: bf16[256,256], index: 10, kind: input, shape index: {}]
  %s11 = inlined_call_operand.hbm [shape: bf16[256,128], index: 11, kind: input, shape index: {}]
  %s12 = inlined_call_operand.hbm [shape: bf16[128,256], index: 12, kind: input, shape index: {}]
  %s13 = inlined_call_operand.hbm [shape: f32[2,1,256], index: 13, kind: output, shape index: {}]
  %s14 = sld [smem:[#allocation0]]
  $region137: #{tpu_custom_call.1} parent=0
    _
  %s16 = ssub.s32 1, %s14
  %s17 = scalar_select 0, %s16, %s14
  $region1: #{tpu_custom_call.1} parent=0
    #allocation2 [shape = 'u8[24576]{0}', space=vmem, size = 0x6000, scoped, tag = 'input window, operand 0']
    #allocation3 [shape = 's32[2]{0}', space=sflag, size = 0x8, scoped, tag = 'scoped memory for tpu_custom_call.1']
    #allocation4 [shape = 's32[2]{0}', space=sflag, size = 0x8, scoped, tag = 'scoped memory for tpu_custom_call.1']
    #allocation5 [shape = 'u8[8192]{0}', space=vmem, size = 0x2000, scoped, tag = 'input window, operand 1']
    #allocation6 [shape = 's32[2]{0}', space=sflag, size = 0x8, scoped, tag = 'scoped memory for tpu_custom_call.1']
    #allocation7 [shape = 'u8[24576]{0}', space=vmem, size = 0x6000, scoped, tag = 'input window, operand 2, single buffered']
    #allocation8 [shape = 'u8[139264]{0}', space=vmem, size = 0x22000, scoped, tag = 'input window, operand 3, single buffered']
    #allocation9 [shape = 's32[1]{0}', space=sflag, size = 0x4, scoped, tag = 'scoped memory for tpu_custom_call.1']
    #allocation10 [shape = 'u8[8192]{0}', space=vmem, size = 0x2000, scoped, tag = 'input window, operand 4, single buffered']
    #allocation11 [shape = 'u8[131072]{0}', space=vmem, size = 0x20000, scoped, tag = 'input window, operand 5, single buffered']
    #allocation12 [shape = 's32[1]{0}', space=sflag, size = 0x4, scoped, tag = 'scoped memory for tpu_custom_call.1']
    #allocation13 [shape = 'u8[131072]{0}', space=vmem, size = 0x20000, scoped, tag = 'input window, operand 6, single buffered']
    #allocation14 [shape = 'u8[131072]{0}', space=vmem, size = 0x20000, scoped, tag = 'input window, operand 7, single buffered']
    #allocation15 [shape = 's32[1]{0}', space=sflag, size = 0x4, scoped, tag = 'scoped memory for tpu_custom_call.1']
    #allocation16 [shape = 'u8[131072]{0}', space=vmem, size = 0x20000, scoped, tag = 'input window, operand 8, single buffered']
    #allocation17 [shape = 'u8[131072]{0}', space=vmem, size = 0x20000, scoped, tag = 'input window, operand 9, single buffered']
    #allocation18 [shape = 's32[1]{0}', space=sflag, size = 0x4, scoped, tag = 'scoped memory for tpu_custom_call.1']
    #allocation19 [shape = 'u8[131072]{0}', space=vmem, size = 0x20000, scoped, tag = 'input window, operand 10, single buffered']
    #allocation20 [shape = 'u8[65536]{0}', space=vmem, size = 0x10000, scoped, tag = 'input window, operand 11, single buffered']
    #allocation21 [shape = 's32[1]{0}', space=sflag, size = 0x4, scoped, tag = 'scoped memory for tpu_custom_call.1']
    #allocation22 [shape = 'u8[65536]{0}', space=vmem, size = 0x10000, scoped, tag = 'input window, operand 12, single buffered']
    #allocation23 [shape = 'u8[2048]{0}', space=vmem, size = 0x800, scoped, tag = 'output window, operand 0']
    %18 = vsyncpa [#allocation3], 0
    %s19 = scalar_lea.sflag [#allocation3], 1
    %20 = vsyncpa %s19, 0
    %21 = vsyncpa [#allocation6], 0
    %s22 = scalar_lea.sflag [#allocation6], 1
    %23 = vsyncpa %s22, 0
    %24 = vsyncpa [#allocation9], 0
    %25 = vsyncpa [#allocation12], 0
    %26 = vsyncpa [#allocation15], 0
    %27 = vsyncpa [#allocation18], 0
    %28 = vsyncpa [#allocation21], 0
    %29 = vsyncpa [#allocation4], 0
    %s30 = scalar_lea.sflag [#allocation4], 1
    %31 = vsyncpa %s30, 0
    loop: start=0, step=1, limit=4
    $region2: #{tpu_custom_call.1} parent=1 // loop_pre_header
      _
    $region3: #{tpu_custom_call.1} parent=1 // loop_header
      %s33 = sphi 0, %s37
      %p34 = scmp.ge.s32.totalorder %s33, 4
      %s43 = sphi 0, %s45
      %s46 = sphi 0, %s43
      %s47 = sphi 0, %s46
      %s63 = sphi 0, %s47
      %s69 = sphi 0, %s71
      %s72 = sphi 0, %s69
      %s73 = sphi 0, %s72
      %s89 = sphi 0, %s73
      %s93 = sphi 0, %s93
      %s95 = sphi 0, %s93
      %s96 = sphi 0, %s95
      %s110 = sphi 0, %s96
      %s114 = sphi 0, %s114
      %s116 = sphi 0, %s114
      %s117 = sphi 0, %s116
      %s131 = sphi 0, %s117
      %s135 = sphi 0, %s135
      %s137 = sphi 0, %s135
      %s138 = sphi 0, %s137
      %s152 = sphi 0, %s138
      %s156 = sphi 0, %s156
      %s158 = sphi 0, %s156
      %s159 = sphi 0, %s158
      %s173 = sphi 0, %s159
      %s177 = sphi 0, %s177
      %s179 = sphi 0, %s177
      %s180 = sphi 0, %s179
      %s194 = sphi 0, %s180
      %s198 = sphi 0, %s198
      %s200 = sphi 0, %s198
      %s201 = sphi 0, %s200
      %s215 = sphi 0, %s201
      %s219 = sphi 0, %s219
      %s221 = sphi 0, %s219
      %s222 = sphi 0, %s221
      %s236 = sphi 0, %s222
      %s240 = sphi 0, %s240
      %s242 = sphi 0, %s240
      %s243 = sphi 0, %s242
      %s257 = sphi 0, %s243
      %s261 = sphi 0, %s261
      %s263 = sphi 0, %s261
      %s264 = sphi 0, %s263
      %s278 = sphi 0, %s264
      %s282 = sphi 0, %s282
      %s284 = sphi 0, %s282
      %s285 = sphi 0, %s284
      %s299 = sphi 0, %s285
      %s303 = sphi 0, %s303
      %s305 = sphi 0, %s303
      %s306 = sphi 0, %s305
      %s320 = sphi 0, %s306
      %s326 = sphi 0, %s328
      %s329 = sphi 0, %s326
      %s330 = sphi 0, %s329
      %s346 = sphi 0, %s330
    $region4: #{tpu_custom_call.1} parent=1 // loop_header_branch
      %36 = sbr.rel (%p34) target = $region8
    $region5: #{tpu_custom_call.1} parent=1 // loop_body
      %s38 = ssub.s32 %s33, 1
      %s39 = ssub.s32 %s33, 2
      %s40 = sadd.s32 %s33, 1
      %s41 = ssub.s32 %s33, %s40
      %p42 = scmp.eq.s32.totalorder %s41, 0
      %s44 = sadd.s32 %s43, 1
      %s45 = scalar_select %p42, %s43, %s44
      %p48 = pneg %p42
      %p49 = scmp.eq.s32.totalorder %s33, 1
      %p50 = por %p48, %p49
      %p51 = scmp.ne.s32.totalorder %s43, %s46
      %p52 = scmp.eq.s32.totalorder %s33, 0
      %p53 = por %p51, %p52
      %p54 = scmp.ne.s32.totalorder %s43, %s46
      %p55 = scmp.eq.s32.totalorder %s38, 1
      %p56 = por %p54, %p55
      %p57 = scmp.ne.s32.totalorder %s46, %s47
      %p58 = scmp.eq.s32.totalorder %s38, 0
      %p59 = por %p57, %p58
      %p60 = scmp.ne.s32.totalorder %s46, %s47
      %p61 = scmp.eq.s32.totalorder %s39, 1
      %p62 = por %p60, %p61
      %p64 = scmp.ne.s32.totalorder %s47, %s63
      %p65 = scmp.eq.s32.totalorder %s39, 0
      %p66 = por %p64, %p65
      %s67 = ssub.s32 %s33, %s40
      %p68 = scmp.eq.s32.totalorder %s67, 0
      %s70 = sadd.s32 %s69, 1
      %s71 = scalar_select %p68, %s69, %s70
      %p74 = pneg %p68
      %p75 = scmp.eq.s32.totalorder %s33, 1
      %p76 = por %p74, %p75
      %p77 = scmp.ne.s32.totalorder %s69, %s72
      %p78 = scmp.eq.s32.totalorder %s33, 0
      %p79 = por %p77, %p78
      %p80 = scmp.ne.s32.totalorder %s69, %s72
      %p81 = scmp.eq.s32.totalorder %s38, 1
      %p82 = por %p80, %p81
      %p83 = scmp.ne.s32.totalorder %s72, %s73
      %p84 = scmp.eq.s32.totalorder %s38, 0
      %p85 = por %p83, %p84
      %p86 = scmp.ne.s32.totalorder %s72, %s73
      %p87 = scmp.eq.s32.totalorder %s39, 1
      %p88 = por %p86, %p87
      %p90 = scmp.ne.s32.totalorder %s73, %s89
      %p91 = scmp.eq.s32.totalorder %s39, 0
      %p92 = por %p90, %p91
      %s94 = sadd.s32 %s93, 1
      %p97 = scmp.eq.s32.totalorder %s33, 1
      %p98 = scmp.ne.s32.totalorder %s93, %s95
      %p99 = scmp.eq.s32.totalorder %s33, 0
      %p100 = por %p98, %p99
      %p101 = scmp.ne.s32.totalorder %s93, %s95
      %p102 = scmp.eq.s32.totalorder %s38, 1
      %p103 = por %p101, %p102
      %p104 = scmp.ne.s32.totalorder %s95, %s96
      %p105 = scmp.eq.s32.totalorder %s38, 0
      %p106 = por %p104, %p105
      %p107 = scmp.ne.s32.totalorder %s95, %s96
      %p108 = scmp.eq.s32.totalorder %s39, 1
      %p109 = por %p107, %p108
      %p111 = scmp.ne.s32.totalorder %s96, %s110
      %p112 = scmp.eq.s32.totalorder %s39, 0
      %p113 = por %p111, %p112
      %s115 = sadd.s32 %s114, 1
      %p118 = scmp.eq.s32.totalorder %s33, 1
      %p119 = scmp.ne.s32.totalorder %s114, %s116
      %p120 = scmp.eq.s32.totalorder %s33, 0
      %p121 = por %p119, %p120
      %p122 = scmp.ne.s32.totalorder %s114, %s116
      %p123 = scmp.eq.s32.totalorder %s38, 1
      %p124 = por %p122, %p123
      %p125 = scmp.ne.s32.totalorder %s116, %s117
      %p126 = scmp.eq.s32.totalorder %s38, 0
      %p127 = por %p125, %p126
      %p128 = scmp.ne.s32.totalorder %s116, %s117
      %p129 = scmp.eq.s32.totalorder %s39, 1
      %p130 = por %p128, %p129
      %p132 = scmp.ne.s32.totalorder %s117, %s131
      %p133 = scmp.eq.s32.totalorder %s39, 0
      %p134 = por %p132, %p133
      %s136 = sadd.s32 %s135, 1
      %p139 = scmp.eq.s32.totalorder %s33, 1
      %p140 = scmp.ne.s32.totalorder %s135, %s137
      %p141 = scmp.eq.s32.totalorder %s33, 0
      %p142 = por %p140, %p141
      %p143 = scmp.ne.s32.totalorder %s135, %s137
      %p144 = scmp.eq.s32.totalorder %s38, 1
      %p145 = por %p143, %p144
      %p146 = scmp.ne.s32.totalorder %s137, %s138
      %p147 = scmp.eq.s32.totalorder %s38, 0
      %p148 = por %p146, %p147
      %p149 = scmp.ne.s32.totalorder %s137, %s138
      %p150 = scmp.eq.s32.totalorder %s39, 1
      %p151 = por %p149, %p150
      %p153 = scmp.ne.s32.totalorder %s138, %s152
      %p154 = scmp.eq.s32.totalorder %s39, 0
      %p155 = por %p153, %p154
      %s157 = sadd.s32 %s156, 1
      %p160 = scmp.eq.s32.totalorder %s33, 1
      %p161 = scmp.ne.s32.totalorder %s156, %s158
      %p162 = scmp.eq.s32.totalorder %s33, 0
      %p163 = por %p161, %p162
      %p164 = scmp.ne.s32.totalorder %s156, %s158
      %p165 = scmp.eq.s32.totalorder %s38, 1
      %p166 = por %p164, %p165
      %p167 = scmp.ne.s32.totalorder %s158, %s159
      %p168 = scmp.eq.s32.totalorder %s38, 0
      %p169 = por %p167, %p168
      %p170 = scmp.ne.s32.totalorder %s158, %s159
      %p171 = scmp.eq.s32.totalorder %s39, 1
      %p172 = por %p170, %p171
      %p174 = scmp.ne.s32.totalorder %s159, %s173
      %p175 = scmp.eq.s32.totalorder %s39, 0
      %p176 = por %p174, %p175
      %s178 = sadd.s32 %s177, 1
      %p181 = scmp.eq.s32.totalorder %s33, 1
      %p182 = scmp.ne.s32.totalorder %s177, %s179
      %p183 = scmp.eq.s32.totalorder %s33, 0
      %p184 = por %p182, %p183
      %p185 = scmp.ne.s32.totalorder %s177, %s179
      %p186 = scmp.eq.s32.totalorder %s38, 1
      %p187 = por %p185, %p186
      %p188 = scmp.ne.s32.totalorder %s179, %s180
      %p189 = scmp.eq.s32.totalorder %s38, 0
      %p190 = por %p188, %p189
      %p191 = scmp.ne.s32.totalorder %s179, %s180
      %p192 = scmp.eq.s32.totalorder %s39, 1
      %p193 = por %p191, %p192
      %p195 = scmp.ne.s32.totalorder %s180, %s194
      %p196 = scmp.eq.s32.totalorder %s39, 0
      %p197 = por %p195, %p196
      %s199 = sadd.s32 %s198, 1
      %p202 = scmp.eq.s32.totalorder %s33, 1
      %p203 = scmp.ne.s32.totalorder %s198, %s200
      %p204 = scmp.eq.s32.totalorder %s33, 0
      %p205 = por %p203, %p204
      %p206 = scmp.ne.s32.totalorder %s198, %s200
      %p207 = scmp.eq.s32.totalorder %s38, 1
      %p208 = por %p206, %p207
      %p209 = scmp.ne.s32.totalorder %s200, %s201
      %p210 = scmp.eq.s32.totalorder %s38, 0
      %p211 = por %p209, %p210
      %p212 = scmp.ne.s32.totalorder %s200, %s201
      %p213 = scmp.eq.s32.totalorder %s39, 1
      %p214 = por %p212, %p213
      %p216 = scmp.ne.s32.totalorder %s201, %s215
      %p217 = scmp.eq.s32.totalorder %s39, 0
      %p218 = por %p216, %p217
      %s220 = sadd.s32 %s219, 1
      %p223 = scmp.eq.s32.totalorder %s33, 1
      %p224 = scmp.ne.s32.totalorder %s219, %s221
      %p225 = scmp.eq.s32.totalorder %s33, 0
      %p226 = por %p224, %p225
      %p227 = scmp.ne.s32.totalorder %s219, %s221
      %p228 = scmp.eq.s32.totalorder %s38, 1
      %p229 = por %p227, %p228
      %p230 = scmp.ne.s32.totalorder %s221, %s222
      %p231 = scmp.eq.s32.totalorder %s38, 0
      %p232 = por %p230, %p231
      %p233 = scmp.ne.s32.totalorder %s221, %s222
      %p234 = scmp.eq.s32.totalorder %s39, 1
      %p235 = por %p233, %p234
      %p237 = scmp.ne.s32.totalorder %s222, %s236
      %p238 = scmp.eq.s32.totalorder %s39, 0
      %p239 = por %p237, %p238
      %s241 = sadd.s32 %s240, 1
      %p244 = scmp.eq.s32.totalorder %s33, 1
      %p245 = scmp.ne.s32.totalorder %s240, %s242
      %p246 = scmp.eq.s32.totalorder %s33, 0
      %p247 = por %p245, %p246
      %p248 = scmp.ne.s32.totalorder %s240, %s242
      %p249 = scmp.eq.s32.totalorder %s38, 1
      %p250 = por %p248, %p249
      %p251 = scmp.ne.s32.totalorder %s242, %s243
      %p252 = scmp.eq.s32.totalorder %s38, 0
      %p253 = por %p251, %p252
      %p254 = scmp.ne.s32.totalorder %s242, %s243
      %p255 = scmp.eq.s32.totalorder %s39, 1
      %p256 = por %p254, %p255
      %p258 = scmp.ne.s32.totalorder %s243, %s257
      %p259 = scmp.eq.s32.totalorder %s39, 0
      %p260 = por %p258, %p259
      %s262 = sadd.s32 %s261, 1
      %p265 = scmp.eq.s32.totalorder %s33, 1
      %p266 = scmp.ne.s32.totalorder %s261, %s263
      %p267 = scmp.eq.s32.totalorder %s33, 0
      %p268 = por %p266, %p267
      %p269 = scmp.ne.s32.totalorder %s261, %s263
      %p270 = scmp.eq.s32.totalorder %s38, 1
      %p271 = por %p269, %p270
      %p272 = scmp.ne.s32.totalorder %s263, %s264
      %p273 = scmp.eq.s32.totalorder %s38, 0
      %p274 = por %p272, %p273
      %p275 = scmp.ne.s32.totalorder %s263, %s264
      %p276 = scmp.eq.s32.totalorder %s39, 1
      %p277 = por %p275, %p276
      %p279 = scmp.ne.s32.totalorder %s264, %s278
      %p280 = scmp.eq.s32.totalorder %s39, 0
      %p281 = por %p279, %p280
      %s283 = sadd.s32 %s282, 1
      %p286 = scmp.eq.s32.totalorder %s33, 1
      %p287 = scmp.ne.s32.totalorder %s282, %s284
      %p288 = scmp.eq.s32.totalorder %s33, 0
      %p289 = por %p287, %p288
      %p290 = scmp.ne.s32.totalorder %s282, %s284
      %p291 = scmp.eq.s32.totalorder %s38, 1
      %p292 = por %p290, %p291
      %p293 = scmp.ne.s32.totalorder %s284, %s285
      %p294 = scmp.eq.s32.totalorder %s38, 0
      %p295 = por %p293, %p294
      %p296 = scmp.ne.s32.totalorder %s284, %s285
      %p297 = scmp.eq.s32.totalorder %s39, 1
      %p298 = por %p296, %p297
      %p300 = scmp.ne.s32.totalorder %s285, %s299
      %p301 = scmp.eq.s32.totalorder %s39, 0
      %p302 = por %p300, %p301
      %s304 = sadd.s32 %s303, 1
      %p307 = scmp.eq.s32.totalorder %s33, 1
      %p308 = scmp.ne.s32.totalorder %s303, %s305
      %p309 = scmp.eq.s32.totalorder %s33, 0
      %p310 = por %p308, %p309
      %p311 = scmp.ne.s32.totalorder %s303, %s305
      %p312 = scmp.eq.s32.totalorder %s38, 1
      %p313 = por %p311, %p312
      %p314 = scmp.ne.s32.totalorder %s305, %s306
      %p315 = scmp.eq.s32.totalorder %s38, 0
      %p316 = por %p314, %p315
      %p317 = scmp.ne.s32.totalorder %s305, %s306
      %p318 = scmp.eq.s32.totalorder %s39, 1
      %p319 = por %p317, %p318
      %p321 = scmp.ne.s32.totalorder %s306, %s320
      %p322 = scmp.eq.s32.totalorder %s39, 0
      %p323 = por %p321, %p322
      %s324 = ssub.s32 %s33, %s40
      %p325 = scmp.eq.s32.totalorder %s324, 0
      %s327 = sadd.s32 %s326, 1
      %s328 = scalar_select %p325, %s326, %s327
      %p331 = pneg %p325
      %p332 = scmp.eq.s32.totalorder %s33, 1
      %p333 = por %p331, %p332
      %p334 = scmp.ne.s32.totalorder %s326, %s329
      %p335 = scmp.eq.s32.totalorder %s33, 0
      %p336 = por %p334, %p335
      %p337 = scmp.ne.s32.totalorder %s326, %s329
      %p338 = scmp.eq.s32.totalorder %s38, 1
      %p339 = por %p337, %p338
      %p340 = scmp.ne.s32.totalorder %s329, %s330
      %p341 = scmp.eq.s32.totalorder %s38, 0
      %p342 = por %p340, %p341
      %p343 = scmp.ne.s32.totalorder %s329, %s330
      %p344 = scmp.eq.s32.totalorder %s39, 1
      %p345 = por %p343, %p344
      %p347 = scmp.ne.s32.totalorder %s330, %s346
      %p348 = scmp.eq.s32.totalorder %s39, 0
      %p349 = por %p347, %p348
      %p350 = scmp.le.s32.totalorder 1, %s33
      %p351 = scmp.lt.s32.totalorder %s33, 3
      %p352 = pnand %p350, %p351
      %p353 = pneg %p352
      // Predicated region
      $region9: #{tpu_custom_call.1} parent=5 // pred_check
        _
      $region10: #{tpu_custom_call.1} parent=5 // pred_check_branch
        %355 = sbr.rel (%p352) target = $region12
      $region11: #{tpu_custom_call.1} parent=5 // pred_region
        %s356 = ssub.s32 %s33, 1
        // Predicated region
        $region13: #{tpu_custom_call.1} parent=11 // pred_check
          %p357 = pneg %p106
        $region14: #{tpu_custom_call.1} parent=11 // pred_check_branch
          %359 = sbr.rel (%p357) target = $region16
        $region15: #{tpu_custom_call.1} parent=11 // pred_region
          %s361 = ssub.s32 768, 768
          %362 = vsyncadd [#allocation6], %s361
          %s363 = sshll.u32 [#allocation7], 4
          %s364 = int_to_ptr.vmem [resolvable:$true] %s363
          %369 = dma.hbm_to_vmem [thread:$0]  %s2, 768, %s364, [#allocation6], 256, 256, 16
        $region16: #{tpu_custom_call.1} parent=11 // pred_fallthru
          _
        // Predicated region
        $region17: #{tpu_custom_call.1} parent=11 // pred_check
          %p370 = pneg %p127
        $region18: #{tpu_custom_call.1} parent=11 // pred_check_branch
          %372 = sbr.rel (%p370) target = $region20
        $region19: #{tpu_custom_call.1} parent=11 // pred_region
          %s374 = ssub.s32 4352, 4352
          %375 = vsyncadd [#allocation9], %s374
          %s376 = sshll.u32 [#allocation8], 4
          %s377 = int_to_ptr.vmem [resolvable:$true] %s376
          %382 = dma.hbm_to_vmem [thread:$0]  %s3, 4352, %s377, [#allocation9], 128, 128, 8
        $region20: #{tpu_custom_call.1} parent=11 // pred_fallthru
          _
        // Predicated region
        $region21: #{tpu_custom_call.1} parent=11 // pred_check
          %p383 = pneg %p148
        $region22: #{tpu_custom_call.1} parent=11 // pred_check_branch
          %385 = sbr.rel (%p383) target = $region24
        $region23: #{tpu_custom_call.1} parent=11 // pred_region
          %s387 = ssub.s32 256, 256
          %388 = vsyncadd [#allocation9], %s387
          %s389 = sshll.u32 [#allocation10], 4
          %s390 = int_to_ptr.vmem [resolvable:$true] %s389
          %395 = dma.hbm_to_vmem [thread:$0]  %s4, 256, %s390, [#allocation9], 128, 128, 8
        $region24: #{tpu_custom_call.1} parent=11 // pred_fallthru
          _
        // Predicated region
        $region25: #{tpu_custom_call.1} parent=11 // pred_check
          %p396 = pneg %p169
        $region26: #{tpu_custom_call.1} parent=11 // pred_check_branch
          %398 = sbr.rel (%p396) target = $region28
        $region27: #{tpu_custom_call.1} parent=11 // pred_region
          %s400 = ssub.s32 4096, 4096
          %401 = vsyncadd [#allocation12], %s400
          %s402 = sshll.u32 [#allocation11], 4
          %s403 = int_to_ptr.vmem [resolvable:$true] %s402
          %408 = dma.hbm_to_vmem [thread:$0]  %s5, 4096, %s403, [#allocation12], 128, 128, 8
        $region28: #{tpu_custom_call.1} parent=11 // pred_fallthru
          _
        // Predicated region
        $region29: #{tpu_custom_call.1} parent=11 // pred_check
          %p409 = pneg %p190
        $region30: #{tpu_custom_call.1} parent=11 // pred_check_branch
          %411 = sbr.rel (%p409) target = $region32
        $region31: #{tpu_custom_call.1} parent=11 // pred_region
          %s413 = ssub.s32 4096, 4096
          %414 = vsyncadd [#allocation12], %s413
          %s415 = sshll.u32 [#allocation13], 4
          %s416 = int_to_ptr.vmem [resolvable:$true] %s415
          %421 = dma.hbm_to_vmem [thread:$0]  %s6, 4096, %s416, [#allocation12], 128, 128, 8
        $region32: #{tpu_custom_call.1} parent=11 // pred_fallthru
          _
        // Predicated region
        $region33: #{tpu_custom_call.1} parent=11 // pred_check
          %p422 = pneg %p211
        $region34: #{tpu_custom_call.1} parent=11 // pred_check_branch
          %424 = sbr.rel (%p422) target = $region36
        $region35: #{tpu_custom_call.1} parent=11 // pred_region
          %s426 = ssub.s32 4096, 4096
          %427 = vsyncadd [#allocation15], %s426
          %s428 = sshll.u32 [#allocation14], 4
          %s429 = int_to_ptr.vmem [resolvable:$true] %s428
          %434 = dma.hbm_to_vmem [thread:$0]  %s7, 4096, %s429, [#allocation15], 128, 128, 8
        $region36: #{tpu_custom_call.1} parent=11 // pred_fallthru
          _
        // Predicated region
        $region37: #{tpu_custom_call.1} parent=11 // pred_check
          %p435 = pneg %p232
        $region38: #{tpu_custom_call.1} parent=11 // pred_check_branch
          %437 = sbr.rel (%p435) target = $region40
        $region39: #{tpu_custom_call.1} parent=11 // pred_region
          %s439 = ssub.s32 4096, 4096
          %440 = vsyncadd [#allocation15], %s439
          %s441 = sshll.u32 [#allocation16], 4
          %s442 = int_to_ptr.vmem [resolvable:$true] %s441
          %447 = dma.hbm_to_vmem [thread:$0]  %s8, 4096, %s442, [#allocation15], 128, 128, 8
        $region40: #{tpu_custom_call.1} parent=11 // pred_fallthru
          _
        // Predicated region
        $region41: #{tpu_custom_call.1} parent=11 // pred_check
          %p448 = pneg %p253
        $region42: #{tpu_custom_call.1} parent=11 // pred_check_branch
          %450 = sbr.rel (%p448) target = $region44
        $region43: #{tpu_custom_call.1} parent=11 // pred_region
          %s452 = ssub.s32 4096, 4096
          %453 = vsyncadd [#allocation18], %s452
          %s454 = sshll.u32 [#allocation17], 4
          %s455 = int_to_ptr.vmem [resolvable:$true] %s454
          %460 = dma.hbm_to_vmem [thread:$0]  %s9, 4096, %s455, [#allocation18], 128, 128, 8
        $region44: #{tpu_custom_call.1} parent=11 // pred_fallthru
          _
        // Predicated region
        $region45: #{tpu_custom_call.1} parent=11 // pred_check
          %p461 = pneg %p274
        $region46: #{tpu_custom_call.1} parent=11 // pred_check_branch
          %463 = sbr.rel (%p461) target = $region48
        $region47: #{tpu_custom_call.1} parent=11 // pred_region
          %s465 = ssub.s32 4096, 4096
          %466 = vsyncadd [#allocation18], %s465
          %s467 = sshll.u32 [#allocation19], 4
          %s468 = int_to_ptr.vmem [resolvable:$true] %s467
          %473 = dma.hbm_to_vmem [thread:$0]  %s10, 4096, %s468, [#allocation18], 128, 128, 8
        $region48: #{tpu_custom_call.1} parent=11 // pred_fallthru
          _
        // Predicated region
        $region49: #{tpu_custom_call.1} parent=11 // pred_check
          %p474 = pneg %p295
        $region50: #{tpu_custom_call.1} parent=11 // pred_check_branch
          %476 = sbr.rel (%p474) target = $region52
        $region51: #{tpu_custom_call.1} parent=11 // pred_region
          %s478 = ssub.s32 2048, 2048
          %479 = vsyncadd [#allocation21], %s478
          %s480 = sshll.u32 [#allocation20], 4
          %s481 = int_to_ptr.vmem [resolvable:$true] %s480
          %486 = dma.hbm_to_vmem [thread:$0]  %s11, 2048, %s481, [#allocation21], 64, 64, 4
        $region52: #{tpu_custom_call.1} parent=11 // pred_fallthru
          _
        // Predicated region
        $region53: #{tpu_custom_call.1} parent=11 // pred_check
          %p487 = pneg %p316
        $region54: #{tpu_custom_call.1} parent=11 // pred_check_branch
          %489 = sbr.rel (%p487) target = $region56
        $region55: #{tpu_custom_call.1} parent=11 // pred_region
          %s491 = ssub.s32 2048, 2048
          %492 = vsyncadd [#allocation21], %s491
          %s493 = sshll.u32 [#allocation22], 4
          %s494 = int_to_ptr.vmem [resolvable:$true] %s493
          %499 = dma.hbm_to_vmem [thread:$0]  %s12, 2048, %s494, [#allocation21], 128, 128, 8
        $region56: #{tpu_custom_call.1} parent=11 // pred_fallthru
          _
      $region12: #{tpu_custom_call.1} parent=5 // pred_fallthru
        _
      %p500 = scmp.lt.s32.totalorder %s33, 2
      // Predicated region
      $region57: #{tpu_custom_call.1} parent=5 // pred_check
        %p501 = pneg %p500
      $region58: #{tpu_custom_call.1} parent=5 // pred_check_branch
        %503 = sbr.rel (%p501) target = $region60
      $region59: #{tpu_custom_call.1} parent=5 // pred_region
        // Predicated region
        $region61: #{tpu_custom_call.1} parent=59 // pred_check
          %p504 = pneg %p53
        $region62: #{tpu_custom_call.1} parent=59 // pred_check_branch
          %506 = sbr.rel (%p504) target = $region64
        $region63: #{tpu_custom_call.1} parent=59 // pred_region
          %s507 = sand.u32 %s43, 1
          %s508 = scalar_lea.sflag [#allocation3], %s507
          %s509 = sand.u32 %s43, 1
          %s510 = smul.addr %s509, 24
          %s511 = scalar_lea.vmem [#allocation2], %s510
          %s513 = ssub.s32 384, 384
          %514 = vsyncadd %s508, %s513
          %s515 = smul.addr %s33, 3
          %s516 = smul.addr %s515, 128
          %s517 = scalar_lea.hbm %s0, %s516
          %s519 = sshll.u32 %s511, 4
          %s520 = int_to_ptr.vmem [resolvable:$true] %s519
          %522 = dma.hbm_to_vmem [thread:$0]  %s517, 384, %s520, %s508
        $region64: #{tpu_custom_call.1} parent=59 // pred_fallthru
          _
        // Predicated region
        $region65: #{tpu_custom_call.1} parent=59 // pred_check
          %p523 = pneg %p79
        $region66: #{tpu_custom_call.1} parent=59 // pred_check_branch
          %525 = sbr.rel (%p523) target = $region68
        $region67: #{tpu_custom_call.1} parent=59 // pred_region
          %s526 = sand.u32 %s33, 1
          %s527 = scalar_lea.sflag [#allocation6], %s526
          %s528 = sand.u32 %s69, 1
          %s529 = smul.addr %s528, 8
          %s530 = scalar_lea.vmem [#allocation5], %s529
          %s532 = ssub.s32 128, 128
          %533 = vsyncadd %s527, %s532
          %s534 = smul.addr %s33, 128
          %s535 = scalar_lea.hbm %s1, %s534
          %s537 = sshll.u32 %s530, 4
          %s538 = int_to_ptr.vmem [resolvable:$true] %s537
          %540 = dma.hbm_to_vmem [thread:$0]  %s535, 128, %s538, %s527
        $region68: #{tpu_custom_call.1} parent=59 // pred_fallthru
          _
      $region60: #{tpu_custom_call.1} parent=5 // pred_fallthru
        _
      %p541 = scmp.le.s32.totalorder 1, %s33
      %p542 = scmp.lt.s32.totalorder %s33, 3
      %p543 = pnand %p541, %p542
      %p544 = pneg %p543
      // Predicated region
      $region69: #{tpu_custom_call.1} parent=5 // pred_check
        _
      $region70: #{tpu_custom_call.1} parent=5 // pred_check_branch
        %546 = sbr.rel (%p543) target = $region72
      $region71: #{tpu_custom_call.1} parent=5 // pred_region
        %s547 = ssub.s32 %s33, 1
        %s548 = sand.u32 %s46, 1
        %s549 = scalar_lea.sflag [#allocation3], %s548
        %s550 = sand.u32 %s46, 1
        %s551 = smul.addr %s550, 24
        %s552 = scalar_lea.vmem [#allocation2], %s551
        // Predicated region
        $region73: #{tpu_custom_call.1} parent=71 // pred_check
          %p553 = pneg %p59
        $region74: #{tpu_custom_call.1} parent=71 // pred_check_branch
          %555 = sbr.rel (%p553) target = $region76
        $region75: #{tpu_custom_call.1} parent=71 // pred_region
          %556 = dma.done %s549, 384
        $region76: #{tpu_custom_call.1} parent=71 // pred_fallthru
          _
        %s557 = sand.u32 %s38, 1
        %s558 = scalar_lea.sflag [#allocation6], %s557
        %s559 = sand.u32 %s72, 1
        %s560 = smul.addr %s559, 8
        %s561 = scalar_lea.vmem [#allocation5], %s560
        // Predicated region
        $region77: #{tpu_custom_call.1} parent=71 // pred_check
          %p562 = pneg %p85
        $region78: #{tpu_custom_call.1} parent=71 // pred_check_branch
          %564 = sbr.rel (%p562) target = $region80
        $region79: #{tpu_custom_call.1} parent=71 // pred_region
          %565 = dma.done %s558, 128
        $region80: #{tpu_custom_call.1} parent=71 // pred_fallthru
          _
        // Predicated region
        $region81: #{tpu_custom_call.1} parent=71 // pred_check
          %p566 = pneg %p106
        $region82: #{tpu_custom_call.1} parent=71 // pred_check_branch
          %568 = sbr.rel (%p566) target = $region84
        $region83: #{tpu_custom_call.1} parent=71 // pred_region
          %569 = dma.done [#allocation6], 768
        $region84: #{tpu_custom_call.1} parent=71 // pred_fallthru
          _
        // Predicated region
        $region85: #{tpu_custom_call.1} parent=71 // pred_check
          %p570 = pneg %p127
        $region86: #{tpu_custom_call.1} parent=71 // pred_check_branch
          %572 = sbr.rel (%p570) target = $region88
        $region87: #{tpu_custom_call.1} parent=71 // pred_region
          %573 = dma.done [#allocation9], 4352
        $region88: #{tpu_custom_call.1} parent=71 // pred_fallthru
          _
        // Predicated region
        $region89: #{tpu_custom_call.1} parent=71 // pred_check
          %p574 = pneg %p148
        $region90: #{tpu_custom_call.1} parent=71 // pred_check_branch
          %576 = sbr.rel (%p574) target = $region92
        $region91: #{tpu_custom_call.1} parent=71 // pred_region
          %577 = dma.done [#allocation9], 256
        $region92: #{tpu_custom_call.1} parent=71 // pred_fallthru
          _
        // Predicated region
        $region93: #{tpu_custom_call.1} parent=71 // pred_check
          %p578 = pneg %p169
        $region94: #{tpu_custom_call.1} parent=71 // pred_check_branch
          %580 = sbr.rel (%p578) target = $region96
        $region95: #{tpu_custom_call.1} parent=71 // pred_region
          %581 = dma.done [#allocation12], 4096
        $region96: #{tpu_custom_call.1} parent=71 // pred_fallthru
          _
        // Predicated region
        $region97: #{tpu_custom_call.1} parent=71 // pred_check
          %p582 = pneg %p190
        $region98: #{tpu_custom_call.1} parent=71 // pred_check_branch
          %584 = sbr.rel (%p582) target = $region100
        $region99: #{tpu_custom_call.1} parent=71 // pred_region
          %585 = dma.done [#allocation12], 4096
        $region100: #{tpu_custom_call.1} parent=71 // pred_fallthru
          _
        // Predicated region
        $region101: #{tpu_custom_call.1} parent=71 // pred_check
          %p586 = pneg %p211
        $region102: #{tpu_custom_call.1} parent=71 // pred_check_branch
          %588 = sbr.rel (%p586) target = $region104
        $region103: #{tpu_custom_call.1} parent=71 // pred_region
          %589 = dma.done [#allocation15], 4096
        $region104: #{tpu_custom_call.1} parent=71 // pred_fallthru
          _
        // Predicated region
        $region105: #{tpu_custom_call.1} parent=71 // pred_check
          %p590 = pneg %p232
        $region106: #{tpu_custom_call.1} parent=71 // pred_check_branch
          %592 = sbr.rel (%p590) target = $region108
        $region107: #{tpu_custom_call.1} parent=71 // pred_region
          %593 = dma.done [#allocation15], 4096
        $region108: #{tpu_custom_call.1} parent=71 // pred_fallthru
          _
        // Predicated region
        $region109: #{tpu_custom_call.1} parent=71 // pred_check
          %p594 = pneg %p253
        $region110: #{tpu_custom_call.1} parent=71 // pred_check_branch
          %596 = sbr.rel (%p594) target = $region112
        $region111: #{tpu_custom_call.1} parent=71 // pred_region
          %597 = dma.done [#allocation18], 4096
        $region112: #{tpu_custom_call.1} parent=71 // pred_fallthru
          _
        // Predicated region
        $region113: #{tpu_custom_call.1} parent=71 // pred_check
          %p598 = pneg %p274
        $region114: #{tpu_custom_call.1} parent=71 // pred_check_branch
          %600 = sbr.rel (%p598) target = $region116
        $region115: #{tpu_custom_call.1} parent=71 // pred_region
          %601 = dma.done [#allocation18], 4096
        $region116: #{tpu_custom_call.1} parent=71 // pred_fallthru
          _
        // Predicated region
        $region117: #{tpu_custom_call.1} parent=71 // pred_check
          %p602 = pneg %p295
        $region118: #{tpu_custom_call.1} parent=71 // pred_check_branch
          %604 = sbr.rel (%p602) target = $region120
        $region119: #{tpu_custom_call.1} parent=71 // pred_region
          %605 = dma.done [#allocation21], 2048
        $region120: #{tpu_custom_call.1} parent=71 // pred_fallthru
          _
        // Predicated region
        $region121: #{tpu_custom_call.1} parent=71 // pred_check
          %p606 = pneg %p316
        $region122: #{tpu_custom_call.1} parent=71 // pred_check_branch
          %608 = sbr.rel (%p606) target = $region124
        $region123: #{tpu_custom_call.1} parent=71 // pred_region
          %609 = dma.done [#allocation21], 2048
        $region124: #{tpu_custom_call.1} parent=71 // pred_fallthru
          _
        %s610 = sand.u32 %s46, 1
        %s611 = scalar_lea.sflag [#allocation3], %s610
        %s612 = sand.u32 %s46, 1
        %s613 = smul.addr %s612, 24
        %s614 = scalar_lea.vmem [#allocation2], %s613
        %p615 = pneg %p59
        %p616 = pneg %p56
        %s617 = sand.u32 %s38, 1
        %s618 = scalar_lea.sflag [#allocation6], %s617
        %s619 = sand.u32 %s72, 1
        %s620 = smul.addr %s619, 8
        %s621 = scalar_lea.vmem [#allocation5], %s620
        %p622 = pneg %p85
        %p623 = pneg %p82
        %p624 = pneg %p106
        %p625 = pneg %p103
        %p626 = pneg %p127
        %p627 = pneg %p124
        %p628 = pneg %p148
        %p629 = pneg %p145
        %p630 = pneg %p169
        %p631 = pneg %p166
        %p632 = pneg %p190
        %p633 = pneg %p187
        %p634 = pneg %p211
        %p635 = pneg %p208
        %p636 = pneg %p232
        %p637 = pneg %p229
        %p638 = pneg %p253
        %p639 = pneg %p250
        %p640 = pneg %p274
        %p641 = pneg %p271
        %p642 = pneg %p295
        %p643 = pneg %p292
        %p644 = pneg %p316
        %p645 = pneg %p313
        %p646 = pneg %p342
        %p647 = pneg %p339
        %s648 = sand.u32 %s329, 1
        %s649 = scalar_lea.sflag [#allocation4], %s648
        %s650 = sand.u32 %s329, 1
        %s651 = smul.addr %s650, 2
        %s652 = scalar_lea.vmem [#allocation23], %s651
        %v654 = vld [vmem:[%s552] sm:$0xff]
        %v655 = vld [vmem:[%s552 + $0x8] sm:$0xff]
        %v656 = vld [vmem:[%s552 + $0x10] sm:$0xff]
        %v657 = vpack.c.bf16 %v654, %v654
        %v658 = vpack.c.bf16 %v655, %v655
        %v659 = vpack.c.bf16 %v656, %v656
        %v660 = vld [vmem:[#allocation8] sm:$0xff]
        %v661 = vld [vmem:[#allocation8 + $0x8] sm:$0xff]
        %v662 = vld [vmem:[#allocation8 + $0x10] sm:$0xff]
        %v663 = vld [vmem:[#allocation8 + $0x18] sm:$0xff]
        %v664 = vld [vmem:[#allocation8 + $0x20] sm:$0xff]
        %v665 = vld [vmem:[#allocation8 + $0x28] sm:$0xff]
        %v666 = vld [vmem:[#allocation8 + $0x30] sm:$0xff]
        %v667 = vld [vmem:[#allocation8 + $0x38] sm:$0xff]
        %v668 = vld [vmem:[#allocation8 + $0x40] sm:$0xff]
        %v669 = vld [vmem:[#allocation8 + $0x48] sm:$0xff]
        %v670 = vld [vmem:[#allocation8 + $0x50] sm:$0xff]
        %v671 = vld [vmem:[#allocation8 + $0x58] sm:$0xff]
        %v672 = vld [vmem:[#allocation8 + $0x60] sm:$0xff]
        %v673 = vld [vmem:[#allocation8 + $0x68] sm:$0xff]
        %v674 = vld [vmem:[#allocation8 + $0x70] sm:$0xff]
        %v675 = vld [vmem:[#allocation8 + $0x78] sm:$0xff]
        %v676 = vld [vmem:[#allocation8 + $0x80] sm:$0xff]
        %v677 = vld [vmem:[#allocation8 + $0x88] sm:$0xff]
        %v678 = vld [vmem:[#allocation8 + $0x90] sm:$0xff]
        %v679 = vld [vmem:[#allocation8 + $0x98] sm:$0xff]
        %v680 = vld [vmem:[#allocation8 + $0xa0] sm:$0xff]
        %v681 = vld [vmem:[#allocation8 + $0xa8] sm:$0xff]
        %v682 = vld [vmem:[#allocation8 + $0xb0] sm:$0xff]
        %v683 = vld [vmem:[#allocation8 + $0xb8] sm:$0xff]
        %v684 = vld [vmem:[#allocation8 + $0xc0] sm:$0xff]
        %v685 = vld [vmem:[#allocation8 + $0xc8] sm:$0xff]
        %v686 = vld [vmem:[#allocation8 + $0xd0] sm:$0xff]
        %v687 = vld [vmem:[#allocation8 + $0xd8] sm:$0xff]
        %v688 = vld [vmem:[#allocation8 + $0xe0] sm:$0xff]
        %v689 = vld [vmem:[#allocation8 + $0xe8] sm:$0xff]
        %v690 = vld [vmem:[#allocation8 + $0xf0] sm:$0xff]
        %v691 = vld [vmem:[#allocation8 + $0xf8] sm:$0xff]
        %v692 = vld [vmem:[#allocation8 + $0x100] sm:$0xff]
        %v693 = vld [vmem:[#allocation8 + $0x108] sm:$0x33]
        %v694 = vld [vmem:[%s561] sm:$0xff]
        %v695 = vpack.c.bf16 %v694, %v694
        %v696 = vld [vmem:[#allocation10] sm:$0xff]
        %v697 = vld [vmem:[#allocation10 + $0x8] sm:$0x33]
        %v700 = vunpack.c.l.b16 %v696
        %v701 = vunpack.c.h.b16 %v696
        %v702 = vunpack.c.l.b16 %v697
        %v703 = vunpack.c.h.b16 %v697
        %v704 = vpack.c.b16 %v702, %v700
        %v705 = vpack.c.b16 %v703, %v701
        %vm706 = vcmask 97280
        %v708 = vsel %vm706, %v695, 0
        %vm710 = vcmask 1045504
        %v712 = vsel %vm710, %v704, 0
        %v715 = vsel %vm710, %v705, 0
        %717 = vmatprep.subr.bf16.mxu0 %v715
        %718 = vmatpush1.bf16.msra.mxu0 %v712
        %719 = vmatprep.subr.bf16.mxu0 0
        %720 = vmatpush1.bf16.msra.mxu0 0
        %721 = vmatprep.subr.bf16.mxu0 0
        %722 = vmatpush1.bf16.msra.mxu0 0
        %723 = vmatprep.subr.bf16.mxu0 0
        %724 = vmatpush1.bf16.msra.mxu0 0
        %725 = vmatprep.subr.bf16.mxu0 0
        %726 = vmatpush1.bf16.msra.mxu0 0
        %727 = vmatprep.subr.bf16.mxu0 0
        %728 = vmatpush1.bf16.msra.mxu0 0
        %729 = vmatprep.subr.bf16.mxu0 0
        %730 = vmatpush1.bf16.msra.mxu0 0
        %731 = vmatprep.subr.bf16.mxu0 0
        %732 = vmatpush1.bf16.msra.mxu0 0
        %733 = vmatprep.subr.bf16.mxu0 0
        %734 = vmatpush1.bf16.msra.mxu0 0
        %735 = vmatprep.subr.bf16.mxu0 0
        %736 = vmatpush1.bf16.msra.mxu0 0
        %737 = vmatprep.subr.bf16.mxu0 0
        %738 = vmatpush1.bf16.msra.mxu0 0
        %739 = vmatprep.subr.bf16.mxu0 0
        %740 = vmatpush1.bf16.msra.mxu0 0
        %741 = vmatprep.subr.bf16.mxu0 0
        %742 = vmatpush1.bf16.msra.mxu0 0
        %743 = vmatprep.subr.bf16.mxu0 0
        %744 = vmatpush1.bf16.msra.mxu0 0
        %745 = vmatprep.subr.bf16.mxu0 0
        %746 = vmatpush1.bf16.msra.mxu0 0
        %747 = vmatprep.subr.bf16.mxu0 0
        %748 = vmatpush1.bf16.msra.mxu0 0
        %749 = vmatprep.mubr.bf16.mxu0 0
        %750 = vmatmul.mubr.bf16.gmra.mrb[0].mxu0 %v708
        %v751 = vpop.f32.mrb[0].mxu0
        %v752 = vadd.f32 0.0, %v751
        %v753 = vpop.f32.mrb[0].mxu0
        %v754 = vadd.f32 0.0, %v753
        %v755 = vpop.f32.mrb[0].mxu0
        %v756 = vpop.f32.mrb[0].mxu0
        %757 = vdwg.mxu0
        %v792 = vunpack.c.l.b16 %v660
        %v793 = vunpack.c.h.b16 %v660
        %v794 = vunpack.c.l.b16 %v661
        %v795 = vunpack.c.h.b16 %v661
        %v796 = vunpack.c.l.b16 %v662
        %v797 = vunpack.c.h.b16 %v662
        %v798 = vunpack.c.l.b16 %v663
        %v799 = vunpack.c.h.b16 %v663
        %v800 = vunpack.c.l.b16 %v664
        %v801 = vunpack.c.h.b16 %v664
        %v802 = vunpack.c.l.b16 %v665
        %v803 = vunpack.c.h.b16 %v665
        %v804 = vunpack.c.l.b16 %v666
        %v805 = vunpack.c.h.b16 %v666
        %v806 = vunpack.c.l.b16 %v667
        %v807 = vunpack.c.h.b16 %v667
        %v808 = vunpack.c.l.b16 %v668
        %v809 = vunpack.c.h.b16 %v668
        %v810 = vunpack.c.l.b16 %v669
        %v811 = vunpack.c.h.b16 %v669
        %v812 = vunpack.c.l.b16 %v670
        %v813 = vunpack.c.h.b16 %v670
        %v814 = vunpack.c.l.b16 %v671
        %v815 = vunpack.c.h.b16 %v671
        %v816 = vunpack.c.l.b16 %v672
        %v817 = vunpack.c.h.b16 %v672
        %v818 = vunpack.c.l.b16 %v673
        %v819 = vunpack.c.h.b16 %v673
        %v820 = vunpack.c.l.b16 %v674
        %v821 = vunpack.c.h.b16 %v674
        %v822 = vunpack.c.l.b16 %v675
        %v823 = vunpack.c.h.b16 %v675
        %v824 = vunpack.c.l.b16 %v676
        %v825 = vunpack.c.h.b16 %v676
        %v826 = vunpack.c.l.b16 %v677
        %v827 = vunpack.c.h.b16 %v677
        %v828 = vunpack.c.l.b16 %v678
        %v829 = vunpack.c.h.b16 %v678
        %v830 = vunpack.c.l.b16 %v679
        %v831 = vunpack.c.h.b16 %v679
        %v832 = vunpack.c.l.b16 %v680
        %v833 = vunpack.c.h.b16 %v680
        %v834 = vunpack.c.l.b16 %v681
        %v835 = vunpack.c.h.b16 %v681
        %v836 = vunpack.c.l.b16 %v682
        %v837 = vunpack.c.h.b16 %v682
        %v838 = vunpack.c.l.b16 %v683
        %v839 = vunpack.c.h.b16 %v683
        %v840 = vunpack.c.l.b16 %v684
        %v841 = vunpack.c.h.b16 %v684
        %v842 = vunpack.c.l.b16 %v685
        %v843 = vunpack.c.h.b16 %v685
        %v844 = vunpack.c.l.b16 %v686
        %v845 = vunpack.c.h.b16 %v686
        %v846 = vunpack.c.l.b16 %v687
        %v847 = vunpack.c.h.b16 %v687
        %v848 = vunpack.c.l.b16 %v688
        %v849 = vunpack.c.h.b16 %v688
        %v850 = vunpack.c.l.b16 %v689
        %v851 = vunpack.c.h.b16 %v689
        %v852 = vunpack.c.l.b16 %v690
        %v853 = vunpack.c.h.b16 %v690
        %v854 = vunpack.c.l.b16 %v691
        %v855 = vunpack.c.h.b16 %v691
        %v856 = vunpack.c.l.b16 %v692
        %v857 = vunpack.c.h.b16 %v692
        %v858 = vunpack.c.l.b16 %v693
        %v859 = vunpack.c.h.b16 %v693
        %v860 = vpack.c.b16 %v794, %v792
        %v861 = vpack.c.b16 %v795, %v793
        %v862 = vpack.c.b16 %v798, %v796
        %v863 = vpack.c.b16 %v799, %v797
        %v864 = vpack.c.b16 %v802, %v800
        %v865 = vpack.c.b16 %v803, %v801
        %v866 = vpack.c.b16 %v806, %v804
        %v867 = vpack.c.b16 %v807, %v805
        %v868 = vpack.c.b16 %v810, %v808
        %v869 = vpack.c.b16 %v811, %v809
        %v870 = vpack.c.b16 %v814, %v812
        %v871 = vpack.c.b16 %v815, %v813
        %v872 = vpack.c.b16 %v818, %v816
        %v873 = vpack.c.b16 %v819, %v817
        %v874 = vpack.c.b16 %v822, %v820
        %v875 = vpack.c.b16 %v823, %v821
        %v876 = vpack.c.b16 %v826, %v824
        %v877 = vpack.c.b16 %v827, %v825
        %v878 = vpack.c.b16 %v830, %v828
        %v879 = vpack.c.b16 %v831, %v829
        %v880 = vpack.c.b16 %v834, %v832
        %v881 = vpack.c.b16 %v835, %v833
        %v882 = vpack.c.b16 %v838, %v836
        %v883 = vpack.c.b16 %v839, %v837
        %v884 = vpack.c.b16 %v842, %v840
        %v885 = vpack.c.b16 %v843, %v841
        %v886 = vpack.c.b16 %v846, %v844
        %v887 = vpack.c.b16 %v847, %v845
        %v888 = vpack.c.b16 %v850, %v848
        %v889 = vpack.c.b16 %v851, %v849
        %v890 = vpack.c.b16 %v854, %v852
        %v891 = vpack.c.b16 %v855, %v853
        %v892 = vpack.c.b16 %v858, %v856
        %v893 = vpack.c.b16 %v859, %v857
        %v927 = vsel %vm706, %v659, 0
        %v930 = vsel %vm710, %v892, 0
        %v933 = vsel %vm710, %v893, 0
        %935 = vmatprep.subr.bf16.mxu0 %v861
        %936 = vmatpush1.bf16.msra.mxu0 %v860
        %937 = vmatprep.subr.bf16.mxu0 %v863
        %938 = vmatpush1.bf16.msra.mxu0 %v862
        %939 = vmatprep.subr.bf16.mxu0 %v865
        %940 = vmatpush1.bf16.msra.mxu0 %v864
        %941 = vmatprep.subr.bf16.mxu0 %v867
        %942 = vmatpush1.bf16.msra.mxu0 %v866
        %943 = vmatprep.subr.bf16.mxu0 %v869
        %944 = vmatpush1.bf16.msra.mxu0 %v868
        %945 = vmatprep.subr.bf16.mxu0 %v871
        %946 = vmatpush1.bf16.msra.mxu0 %v870
        %947 = vmatprep.subr.bf16.mxu0 %v873
        %948 = vmatpush1.bf16.msra.mxu0 %v872
        %949 = vmatprep.subr.bf16.mxu0 %v875
        %950 = vmatpush1.bf16.msra.mxu0 %v874
        %951 = vmatprep.subr.bf16.mxu0 %v877
        %952 = vmatpush1.bf16.msra.mxu0 %v876
        %953 = vmatprep.subr.bf16.mxu0 %v879
        %954 = vmatpush1.bf16.msra.mxu0 %v878
        %955 = vmatprep.subr.bf16.mxu0 %v881
        %956 = vmatpush1.bf16.msra.mxu0 %v880
        %957 = vmatprep.subr.bf16.mxu0 %v883
        %958 = vmatpush1.bf16.msra.mxu0 %v882
        %959 = vmatprep.subr.bf16.mxu0 %v885
        %960 = vmatpush1.bf16.msra.mxu0 %v884
        %961 = vmatprep.subr.bf16.mxu0 %v887
        %962 = vmatpush1.bf16.msra.mxu0 %v886
        %963 = vmatprep.subr.bf16.mxu0 %v889
        %964 = vmatpush1.bf16.msra.mxu0 %v888
        %965 = vmatprep.subr.bf16.mxu0 %v891
        %966 = vmatpush1.bf16.msra.mxu0 %v890
        %967 = vmatprep.mubr.bf16.mxu0 %v658
        %968 = vmatmul.mubr.bf16.gmra.mrb[0].mxu0 %v657
        %v969 = vpop.f32.mrb[0].mxu0
        %v970 = vadd.f32 %v752, %v969
        %v971 = vpop.f32.mrb[0].mxu0
        %v972 = vadd.f32 %v754, %v971
        %v973 = vpop.f32.mrb[0].mxu0
        %v974 = vpop.f32.mrb[0].mxu0
        %975 = vdwg.mxu0
        %976 = vmatprep.subr.bf16.mxu0 %v933
        %977 = vmatpush1.bf16.msra.mxu0 %v930
        %978 = vmatprep.subr.bf16.mxu0 0
        %979 = vmatpush1.bf16.msra.mxu0 0
        %980 = vmatprep.subr.bf16.mxu0 0
        %981 = vmatpush1.bf16.msra.mxu0 0
        %982 = vmatprep.subr.bf16.mxu0 0
        %983 = vmatpush1.bf16.msra.mxu0 0
        %984 = vmatprep.subr.bf16.mxu0 0
        %985 = vmatpush1.bf16.msra.mxu0 0
        %986 = vmatprep.subr.bf16.mxu0 0
        %987 = vmatpush1.bf16.msra.mxu0 0
        %988 = vmatprep.subr.bf16.mxu0 0
        %989 = vmatpush1.bf16.msra.mxu0 0
        %990 = vmatprep.subr.bf16.mxu0 0
        %991 = vmatpush1.bf16.msra.mxu0 0
        %992 = vmatprep.subr.bf16.mxu0 0
        %993 = vmatpush1.bf16.msra.mxu0 0
        %994 = vmatprep.subr.bf16.mxu0 0
        %995 = vmatpush1.bf16.msra.mxu0 0
        %996 = vmatprep.subr.bf16.mxu0 0
        %997 = vmatpush1.bf16.msra.mxu0 0
        %998 = vmatprep.subr.bf16.mxu0 0
        %999 = vmatpush1.bf16.msra.mxu0 0
        %1000 = vmatprep.subr.bf16.mxu0 0
        %1001 = vmatpush1.bf16.msra.mxu0 0
        %1002 = vmatprep.subr.bf16.mxu0 0
        %1003 = vmatpush1.bf16.msra.mxu0 0
        %1004 = vmatprep.subr.bf16.mxu0 0
        %1005 = vmatpush1.bf16.msra.mxu0 0
        %1006 = vmatprep.subr.bf16.mxu0 0
        %1007 = vmatpush1.bf16.msra.mxu0 0
        %1008 = vmatprep.mubr.bf16.mxu0 0
        %1009 = vmatmul.mubr.bf16.gmra.mrb[0].mxu0 %v927
        %v1010 = vpop.f32.mrb[0].mxu0
        %v1011 = vadd.f32 %v970, %v1010
        %v1012 = vpop.f32.mrb[0].mxu0
        %v1013 = vadd.f32 %v972, %v1012
        %v1014 = vpop.f32.mrb[0].mxu0
        %v1015 = vpop.f32.mrb[0].mxu0
        %1016 = vdwg.mxu0
        %v1017 = vld [vmem:[#allocation7] ss:$8 sm:$0x3]
        %v1019 = vlaneseq
        %v1020 = vshrl.u32 %v1019, 7
        %v1021 = vsub.s32 0, %v1020
        %v1022 = vrot.slane %v1017, %v1021
        %v1023 = vlaneseq
        %v1024 = vshrl.u32 %v1023, 7
        %v1025 = vsub.s32 1, %v1024
        %v1026 = vrot.slane %v1017, %v1025
        %v1029 = vadd.f32 %v1011, %v1022
        %v1030 = vadd.f32 %v1013, %v1026
        %s1031 = scalar_lea.vmem [#allocation7], 1
        %v1032 = vld [vmem:[%s1031] ss:$8 sm:$0x3]
        %s1033 = scalar_lea.vmem [#allocation7], 2
        %v1034 = vld [vmem:[%s1033] ss:$8 sm:$0x3]
        %v1035 = vadd.f32 %v1029, %v1030
        %1036 = vadd.xlane.f32.xlu0 %v1035
        %v1037 = vpop.xlane.xlu0 %1036
        %v1038 = vrcp.pop 256.0
        %v1039 = vmul.f32 %v1037, %v1038
        %v1040 = vmul.f32 %v1029, %v1029
        %v1041 = vmul.f32 %v1030, %v1030
        %v1042 = vadd.f32 %v1040, %v1041
        %1043 = vadd.xlane.f32.xlu0 %v1042
        %v1044 = vpop.xlane.xlu0 %1043
        %v1045 = vmul.f32 %v1044, %v1038
        %v1046 = vmul.f32 %v1039, %v1039
        %v1047 = vsub.f32 %v1045, %v1046
        %v1048 = vsub.f32 %v1029, %v1039
        %v1049 = vsub.f32 %v1030, %v1039
        %v1050 = vadd.f32 %v1047, 1e-05
        %v1051 = vrsqrt.pop %v1050
        %v1052 = vmul.f32 %v1048, %v1051
        %v1053 = vmul.f32 %v1049, %v1051
        %v1055 = vlaneseq
        %v1056 = vshrl.u32 %v1055, 7
        %v1057 = vsub.s32 0, %v1056
        %v1058 = vrot.slane %v1032, %v1057
        %v1059 = vlaneseq
        %v1060 = vshrl.u32 %v1059, 7
        %v1061 = vsub.s32 1, %v1060
        %v1062 = vrot.slane %v1032, %v1061
        %v1065 = vmul.f32 %v1052, %v1058
        %v1066 = vmul.f32 %v1053, %v1062
        %v1068 = vlaneseq
        %v1069 = vshrl.u32 %v1068, 7
        %v1070 = vsub.s32 0, %v1069
        %v1071 = vrot.slane %v1034, %v1070
        %v1072 = vlaneseq
        %v1073 = vshrl.u32 %v1072, 7
        %v1074 = vsub.s32 1, %v1073
        %v1075 = vrot.slane %v1034, %v1074
        %v1078 = vadd.f32 %v1065, %v1071
        %v1079 = vadd.f32 %v1066, %v1075
        %v1080 = vmax.f32 %v1078, 0.0
        %v1081 = vmax.f32 %v1079, 0.0
        %v1082 = vpack.c.bf16 %v1080, %v1080
        %v1083 = vpack.c.bf16 %v1081, %v1081
        %v1084 = vld [vmem:[#allocation11] sm:$0xff]
        %v1085 = vld [vmem:[#allocation11 + $0x8] sm:$0xff]
        %v1086 = vld [vmem:[#allocation11 + $0x10] sm:$0xff]
        %v1087 = vld [vmem:[#allocation11 + $0x18] sm:$0xff]
        %v1088 = vld [vmem:[#allocation11 + $0x20] sm:$0xff]
        %v1089 = vld [vmem:[#allocation11 + $0x28] sm:$0xff]
        %v1090 = vld [vmem:[#allocation11 + $0x30] sm:$0xff]
        %v1091 = vld [vmem:[#allocation11 + $0x38] sm:$0xff]
        %v1092 = vld [vmem:[#allocation11 + $0x40] sm:$0xff]
        %v1093 = vld [vmem:[#allocation11 + $0x48] sm:$0xff]
        %v1094 = vld [vmem:[#allocation11 + $0x50] sm:$0xff]
        %v1095 = vld [vmem:[#allocation11 + $0x58] sm:$0xff]
        %v1096 = vld [vmem:[#allocation11 + $0x60] sm:$0xff]
        %v1097 = vld [vmem:[#allocation11 + $0x68] sm:$0xff]
        %v1098 = vld [vmem:[#allocation11 + $0x70] sm:$0xff]
        %v1099 = vld [vmem:[#allocation11 + $0x78] sm:$0xff]
        %v1100 = vld [vmem:[#allocation11 + $0x80] sm:$0xff]
        %v1101 = vld [vmem:[#allocation11 + $0x88] sm:$0xff]
        %v1102 = vld [vmem:[#allocation11 + $0x90] sm:$0xff]
        %v1103 = vld [vmem:[#allocation11 + $0x98] sm:$0xff]
        %v1104 = vld [vmem:[#allocation11 + $0xa0] sm:$0xff]
        %v1105 = vld [vmem:[#allocation11 + $0xa8] sm:$0xff]
        %v1106 = vld [vmem:[#allocation11 + $0xb0] sm:$0xff]
        %v1107 = vld [vmem:[#allocation11 + $0xb8] sm:$0xff]
        %v1108 = vld [vmem:[#allocation11 + $0xc0] sm:$0xff]
        %v1109 = vld [vmem:[#allocation11 + $0xc8] sm:$0xff]
        %v1110 = vld [vmem:[#allocation11 + $0xd0] sm:$0xff]
        %v1111 = vld [vmem:[#allocation11 + $0xd8] sm:$0xff]
        %v1112 = vld [vmem:[#allocation11 + $0xe0] sm:$0xff]
        %v1113 = vld [vmem:[#allocation11 + $0xe8] sm:$0xff]
        %v1114 = vld [vmem:[#allocation11 + $0xf0] sm:$0xff]
        %v1115 = vld [vmem:[#allocation11 + $0xf8] sm:$0xff]
        %s1116 = scalar_lea.vmem [#allocation7], 3
        %v1117 = vld [vmem:[%s1116] ss:$8 sm:$0x3]
        %v1119 = vlaneseq
        %v1120 = vshrl.u32 %v1119, 7
        %v1121 = vsub.s32 0, %v1120
        %v1122 = vrot.slane %v1117, %v1121
        %v1123 = vlaneseq
        %v1124 = vshrl.u32 %v1123, 7
        %v1125 = vsub.s32 1, %v1124
        %v1126 = vrot.slane %v1117, %v1125
        %v1161 = vunpack.c.l.b16 %v1084
        %v1162 = vunpack.c.h.b16 %v1084
        %v1163 = vunpack.c.l.b16 %v1085
        %v1164 = vunpack.c.h.b16 %v1085
        %v1165 = vunpack.c.l.b16 %v1086
        %v1166 = vunpack.c.h.b16 %v1086
        %v1167 = vunpack.c.l.b16 %v1087
        %v1168 = vunpack.c.h.b16 %v1087
        %v1169 = vunpack.c.l.b16 %v1088
        %v1170 = vunpack.c.h.b16 %v1088
        %v1171 = vunpack.c.l.b16 %v1089
        %v1172 = vunpack.c.h.b16 %v1089
        %v1173 = vunpack.c.l.b16 %v1090
        %v1174 = vunpack.c.h.b16 %v1090
        %v1175 = vunpack.c.l.b16 %v1091
        %v1176 = vunpack.c.h.b16 %v1091
        %v1177 = vunpack.c.l.b16 %v1092
        %v1178 = vunpack.c.h.b16 %v1092
        %v1179 = vunpack.c.l.b16 %v1093
        %v1180 = vunpack.c.h.b16 %v1093
        %v1181 = vunpack.c.l.b16 %v1094
        %v1182 = vunpack.c.h.b16 %v1094
        %v1183 = vunpack.c.l.b16 %v1095
        %v1184 = vunpack.c.h.b16 %v1095
        %v1185 = vunpack.c.l.b16 %v1096
        %v1186 = vunpack.c.h.b16 %v1096
        %v1187 = vunpack.c.l.b16 %v1097
        %v1188 = vunpack.c.h.b16 %v1097
        %v1189 = vunpack.c.l.b16 %v1098
        %v1190 = vunpack.c.h.b16 %v1098
        %v1191 = vunpack.c.l.b16 %v1099
        %v1192 = vunpack.c.h.b16 %v1099
        %v1193 = vunpack.c.l.b16 %v1100
        %v1194 = vunpack.c.h.b16 %v1100
        %v1195 = vunpack.c.l.b16 %v1101
        %v1196 = vunpack.c.h.b16 %v1101
        %v1197 = vunpack.c.l.b16 %v1102
        %v1198 = vunpack.c.h.b16 %v1102
        %v1199 = vunpack.c.l.b16 %v1103
        %v1200 = vunpack.c.h.b16 %v1103
        %v1201 = vunpack.c.l.b16 %v1104
        %v1202 = vunpack.c.h.b16 %v1104
        %v1203 = vunpack.c.l.b16 %v1105
        %v1204 = vunpack.c.h.b16 %v1105
        %v1205 = vunpack.c.l.b16 %v1106
        %v1206 = vunpack.c.h.b16 %v1106
        %v1207 = vunpack.c.l.b16 %v1107
        %v1208 = vunpack.c.h.b16 %v1107
        %v1209 = vunpack.c.l.b16 %v1108
        %v1210 = vunpack.c.h.b16 %v1108
        %v1211 = vunpack.c.l.b16 %v1109
        %v1212 = vunpack.c.h.b16 %v1109
        %v1213 = vunpack.c.l.b16 %v1110
        %v1214 = vunpack.c.h.b16 %v1110
        %v1215 = vunpack.c.l.b16 %v1111
        %v1216 = vunpack.c.h.b16 %v1111
        %v1217 = vunpack.c.l.b16 %v1112
        %v1218 = vunpack.c.h.b16 %v1112
        %v1219 = vunpack.c.l.b16 %v1113
        %v1220 = vunpack.c.h.b16 %v1113
        %v1221 = vunpack.c.l.b16 %v1114
        %v1222 = vunpack.c.h.b16 %v1114
        %v1223 = vunpack.c.l.b16 %v1115
        %v1224 = vunpack.c.h.b16 %v1115
        %v1225 = vpack.c.b16 %v1163, %v1161
        %v1226 = vpack.c.b16 %v1164, %v1162
        %v1227 = vpack.c.b16 %v1167, %v1165
        %v1228 = vpack.c.b16 %v1168, %v1166
        %v1229 = vpack.c.b16 %v1171, %v1169
        %v1230 = vpack.c.b16 %v1172, %v1170
        %v1231 = vpack.c.b16 %v1175, %v1173
        %v1232 = vpack.c.b16 %v1176, %v1174
        %v1233 = vpack.c.b16 %v1179, %v1177
        %v1234 = vpack.c.b16 %v1180, %v1178
        %v1235 = vpack.c.b16 %v1183, %v1181
        %v1236 = vpack.c.b16 %v1184, %v1182
        %v1237 = vpack.c.b16 %v1187, %v1185
        %v1238 = vpack.c.b16 %v1188, %v1186
        %v1239 = vpack.c.b16 %v1191, %v1189
        %v1240 = vpack.c.b16 %v1192, %v1190
        %v1241 = vpack.c.b16 %v1195, %v1193
        %v1242 = vpack.c.b16 %v1196, %v1194
        %v1243 = vpack.c.b16 %v1199, %v1197
        %v1244 = vpack.c.b16 %v1200, %v1198
        %v1245 = vpack.c.b16 %v1203, %v1201
        %v1246 = vpack.c.b16 %v1204, %v1202
        %v1247 = vpack.c.b16 %v1207, %v1205
        %v1248 = vpack.c.b16 %v1208, %v1206
        %v1249 = vpack.c.b16 %v1211, %v1209
        %v1250 = vpack.c.b16 %v1212, %v1210
        %v1251 = vpack.c.b16 %v1215, %v1213
        %v1252 = vpack.c.b16 %v1216, %v1214
        %v1253 = vpack.c.b16 %v1219, %v1217
        %v1254 = vpack.c.b16 %v1220, %v1218
        %v1255 = vpack.c.b16 %v1223, %v1221
        %v1256 = vpack.c.b16 %v1224, %v1222
        %1289 = vmatprep.subr.bf16.mxu0 %v1226
        %1290 = vmatpush1.bf16.msra.mxu0 %v1225
        %1291 = vmatprep.subr.bf16.mxu0 %v1228
        %1292 = vmatpush1.bf16.msra.mxu0 %v1227
        %1293 = vmatprep.subr.bf16.mxu0 %v1230
        %1294 = vmatpush1.bf16.msra.mxu0 %v1229
        %1295 = vmatprep.subr.bf16.mxu0 %v1232
        %1296 = vmatpush1.bf16.msra.mxu0 %v1231
        %1297 = vmatprep.subr.bf16.mxu0 %v1234
        %1298 = vmatpush1.bf16.msra.mxu0 %v1233
        %1299 = vmatprep.subr.bf16.mxu0 %v1236
        %1300 = vmatpush1.bf16.msra.mxu0 %v1235
        %1301 = vmatprep.subr.bf16.mxu0 %v1238
        %1302 = vmatpush1.bf16.msra.mxu0 %v1237
        %1303 = vmatprep.subr.bf16.mxu0 %v1240
        %1304 = vmatpush1.bf16.msra.mxu0 %v1239
        %1305 = vmatprep.subr.bf16.mxu0 %v1242
        %1306 = vmatpush1.bf16.msra.mxu0 %v1241
        %1307 = vmatprep.subr.bf16.mxu0 %v1244
        %1308 = vmatpush1.bf16.msra.mxu0 %v1243
        %1309 = vmatprep.subr.bf16.mxu0 %v1246
        %1310 = vmatpush1.bf16.msra.mxu0 %v1245
        %1311 = vmatprep.subr.bf16.mxu0 %v1248
        %1312 = vmatpush1.bf16.msra.mxu0 %v1247
        %1313 = vmatprep.subr.bf16.mxu0 %v1250
        %1314 = vmatpush1.bf16.msra.mxu0 %v1249
        %1315 = vmatprep.subr.bf16.mxu0 %v1252
        %1316 = vmatpush1.bf16.msra.mxu0 %v1251
        %1317 = vmatprep.subr.bf16.mxu0 %v1254
        %1318 = vmatpush1.bf16.msra.mxu0 %v1253
        %1319 = vmatprep.subr.bf16.mxu0 %v1256
        %1320 = vmatpush1.bf16.msra.mxu0 %v1255
        %1321 = vmatprep.mubr.bf16.mxu0 %v1083
        %1322 = vmatmul.mubr.bf16.gmra.mrb[0].mxu0 %v1082
        %v1323 = vpop.f32.mrb[0].mxu0
        %v1324 = vadd.f32 %v1122, %v1323
        %v1325 = vpop.f32.mrb[0].mxu0
        %v1326 = vadd.f32 %v1126, %v1325
        %v1327 = vpop.f32.mrb[0].mxu0
        %v1328 = vpop.f32.mrb[0].mxu0
        %1329 = vdwg.mxu0
        %s1330 = scalar_lea.vmem [#allocation7], 4
        %v1331 = vld [vmem:[%s1330] ss:$8 sm:$0x3]
        %s1332 = scalar_lea.vmem [#allocation7], 5
        %v1333 = vld [vmem:[%s1332] ss:$8 sm:$0x3]
        %v1334 = vadd.f32 %v1324, %v1326
        %1335 = vadd.xlane.f32.xlu0 %v1334
        %v1336 = vpop.xlane.xlu0 %1335
        %v1337 = vmul.f32 %v1336, %v1038
        %v1338 = vmul.f32 %v1324, %v1324
        %v1339 = vmul.f32 %v1326, %v1326
        %v1340 = vadd.f32 %v1338, %v1339
        %1341 = vadd.xlane.f32.xlu0 %v1340
        %v1342 = vpop.xlane.xlu0 %1341
        %v1343 = vmul.f32 %v1342, %v1038
        %v1344 = vmul.f32 %v1337, %v1337
        %v1345 = vsub.f32 %v1343, %v1344
        %v1346 = vsub.f32 %v1324, %v1337
        %v1347 = vsub.f32 %v1326, %v1337
        %v1348 = vadd.f32 %v1345, 1e-05
        %v1349 = vrsqrt.pop %v1348
        %v1350 = vmul.f32 %v1346, %v1349
        %v1351 = vmul.f32 %v1347, %v1349
        %v1353 = vlaneseq
        %v1354 = vshrl.u32 %v1353, 7
        %v1355 = vsub.s32 0, %v1354
        %v1356 = vrot.slane %v1331, %v1355
        %v1357 = vlaneseq
        %v1358 = vshrl.u32 %v1357, 7
        %v1359 = vsub.s32 1, %v1358
        %v1360 = vrot.slane %v1331, %v1359
        %v1363 = vmul.f32 %v1350, %v1356
        %v1364 = vmul.f32 %v1351, %v1360
        %v1366 = vlaneseq
        %v1367 = vshrl.u32 %v1366, 7
        %v1368 = vsub.s32 0, %v1367
        %v1369 = vrot.slane %v1333, %v1368
        %v1370 = vlaneseq
        %v1371 = vshrl.u32 %v1370, 7
        %v1372 = vsub.s32 1, %v1371
        %v1373 = vrot.slane %v1333, %v1372
        %v1376 = vadd.f32 %v1363, %v1369
        %v1377 = vadd.f32 %v1364, %v1373
        %v1378 = vmax.f32 %v1376, 0.0
        %v1379 = vmax.f32 %v1377, 0.0
        %v1380 = vpack.c.bf16 %v1378, %v1378
        %v1381 = vpack.c.bf16 %v1379, %v1379
        %v1382 = vld [vmem:[#allocation13] sm:$0xff]
        %v1383 = vld [vmem:[#allocation13 + $0x8] sm:$0xff]
        %v1384 = vld [vmem:[#allocation13 + $0x10] sm:$0xff]
        %v1385 = vld [vmem:[#allocation13 + $0x18] sm:$0xff]
        %v1386 = vld [vmem:[#allocation13 + $0x20] sm:$0xff]
        %v1387 = vld [vmem:[#allocation13 + $0x28] sm:$0xff]
        %v1388 = vld [vmem:[#allocation13 + $0x30] sm:$0xff]
        %v1389 = vld [vmem:[#allocation13 + $0x38] sm:$0xff]
        %v1390 = vld [vmem:[#allocation13 + $0x40] sm:$0xff]
        %v1391 = vld [vmem:[#allocation13 + $0x48] sm:$0xff]
        %v1392 = vld [vmem:[#allocation13 + $0x50] sm:$0xff]
        %v1393 = vld [vmem:[#allocation13 + $0x58] sm:$0xff]
        %v1394 = vld [vmem:[#allocation13 + $0x60] sm:$0xff]
        %v1395 = vld [vmem:[#allocation13 + $0x68] sm:$0xff]
        %v1396 = vld [vmem:[#allocation13 + $0x70] sm:$0xff]
        %v1397 = vld [vmem:[#allocation13 + $0x78] sm:$0xff]
        %v1398 = vld [vmem:[#allocation13 + $0x80] sm:$0xff]
        %v1399 = vld [vmem:[#allocation13 + $0x88] sm:$0xff]
        %v1400 = vld [vmem:[#allocation13 + $0x90] sm:$0xff]
        %v1401 = vld [vmem:[#allocation13 + $0x98] sm:$0xff]
        %v1402 = vld [vmem:[#allocation13 + $0xa0] sm:$0xff]
        %v1403 = vld [vmem:[#allocation13 + $0xa8] sm:$0xff]
        %v1404 = vld [vmem:[#allocation13 + $0xb0] sm:$0xff]
        %v1405 = vld [vmem:[#allocation13 + $0xb8] sm:$0xff]
        %v1406 = vld [vmem:[#allocation13 + $0xc0] sm:$0xff]
        %v1407 = vld [vmem:[#allocation13 + $0xc8] sm:$0xff]
        %v1408 = vld [vmem:[#allocation13 + $0xd0] sm:$0xff]
        %v1409 = vld [vmem:[#allocation13 + $0xd8] sm:$0xff]
        %v1410 = vld [vmem:[#allocation13 + $0xe0] sm:$0xff]
        %v1411 = vld [vmem:[#allocation13 + $0xe8] sm:$0xff]
        %v1412 = vld [vmem:[#allocation13 + $0xf0] sm:$0xff]
        %v1413 = vld [vmem:[#allocation13 + $0xf8] sm:$0xff]
        %s1414 = scalar_lea.vmem [#allocation7], 6
        %v1415 = vld [vmem:[%s1414] ss:$8 sm:$0x3]
        %v1417 = vlaneseq
        %v1418 = vshrl.u32 %v1417, 7
        %v1419 = vsub.s32 0, %v1418
        %v1420 = vrot.slane %v1415, %v1419
        %v1421 = vlaneseq
        %v1422 = vshrl.u32 %v1421, 7
        %v1423 = vsub.s32 1, %v1422
        %v1424 = vrot.slane %v1415, %v1423
        %v1459 = vunpack.c.l.b16 %v1382
        %v1460 = vunpack.c.h.b16 %v1382
        %v1461 = vunpack.c.l.b16 %v1383
        %v1462 = vunpack.c.h.b16 %v1383
        %v1463 = vunpack.c.l.b16 %v1384
        %v1464 = vunpack.c.h.b16 %v1384
        %v1465 = vunpack.c.l.b16 %v1385
        %v1466 = vunpack.c.h.b16 %v1385
        %v1467 = vunpack.c.l.b16 %v1386
        %v1468 = vunpack.c.h.b16 %v1386
        %v1469 = vunpack.c.l.b16 %v1387
        %v1470 = vunpack.c.h.b16 %v1387
        %v1471 = vunpack.c.l.b16 %v1388
        %v1472 = vunpack.c.h.b16 %v1388
        %v1473 = vunpack.c.l.b16 %v1389
        %v1474 = vunpack.c.h.b16 %v1389
        %v1475 = vunpack.c.l.b16 %v1390
        %v1476 = vunpack.c.h.b16 %v1390
        %v1477 = vunpack.c.l.b16 %v1391
        %v1478 = vunpack.c.h.b16 %v1391
        %v1479 = vunpack.c.l.b16 %v1392
        %v1480 = vunpack.c.h.b16 %v1392
        %v1481 = vunpack.c.l.b16 %v1393
        %v1482 = vunpack.c.h.b16 %v1393
        %v1483 = vunpack.c.l.b16 %v1394
        %v1484 = vunpack.c.h.b16 %v1394
        %v1485 = vunpack.c.l.b16 %v1395
        %v1486 = vunpack.c.h.b16 %v1395
        %v1487 = vunpack.c.l.b16 %v1396
        %v1488 = vunpack.c.h.b16 %v1396
        %v1489 = vunpack.c.l.b16 %v1397
        %v1490 = vunpack.c.h.b16 %v1397
        %v1491 = vunpack.c.l.b16 %v1398
        %v1492 = vunpack.c.h.b16 %v1398
        %v1493 = vunpack.c.l.b16 %v1399
        %v1494 = vunpack.c.h.b16 %v1399
        %v1495 = vunpack.c.l.b16 %v1400
        %v1496 = vunpack.c.h.b16 %v1400
        %v1497 = vunpack.c.l.b16 %v1401
        %v1498 = vunpack.c.h.b16 %v1401
        %v1499 = vunpack.c.l.b16 %v1402
        %v1500 = vunpack.c.h.b16 %v1402
        %v1501 = vunpack.c.l.b16 %v1403
        %v1502 = vunpack.c.h.b16 %v1403
        %v1503 = vunpack.c.l.b16 %v1404
        %v1504 = vunpack.c.h.b16 %v1404
        %v1505 = vunpack.c.l.b16 %v1405
        %v1506 = vunpack.c.h.b16 %v1405
        %v1507 = vunpack.c.l.b16 %v1406
        %v1508 = vunpack.c.h.b16 %v1406
        %v1509 = vunpack.c.l.b16 %v1407
        %v1510 = vunpack.c.h.b16 %v1407
        %v1511 = vunpack.c.l.b16 %v1408
        %v1512 = vunpack.c.h.b16 %v1408
        %v1513 = vunpack.c.l.b16 %v1409
        %v1514 = vunpack.c.h.b16 %v1409
        %v1515 = vunpack.c.l.b16 %v1410
        %v1516 = vunpack.c.h.b16 %v1410
        %v1517 = vunpack.c.l.b16 %v1411
        %v1518 = vunpack.c.h.b16 %v1411
        %v1519 = vunpack.c.l.b16 %v1412
        %v1520 = vunpack.c.h.b16 %v1412
        %v1521 = vunpack.c.l.b16 %v1413
        %v1522 = vunpack.c.h.b16 %v1413
        %v1523 = vpack.c.b16 %v1461, %v1459
        %v1524 = vpack.c.b16 %v1462, %v1460
        %v1525 = vpack.c.b16 %v1465, %v1463
        %v1526 = vpack.c.b16 %v1466, %v1464
        %v1527 = vpack.c.b16 %v1469, %v1467
        %v1528 = vpack.c.b16 %v1470, %v1468
        %v1529 = vpack.c.b16 %v1473, %v1471
        %v1530 = vpack.c.b16 %v1474, %v1472
        %v1531 = vpack.c.b16 %v1477, %v1475
        %v1532 = vpack.c.b16 %v1478, %v1476
        %v1533 = vpack.c.b16 %v1481, %v1479
        %v1534 = vpack.c.b16 %v1482, %v1480
        %v1535 = vpack.c.b16 %v1485, %v1483
        %v1536 = vpack.c.b16 %v1486, %v1484
        %v1537 = vpack.c.b16 %v1489, %v1487
        %v1538 = vpack.c.b16 %v1490, %v1488
        %v1539 = vpack.c.b16 %v1493, %v1491
        %v1540 = vpack.c.b16 %v1494, %v1492
        %v1541 = vpack.c.b16 %v1497, %v1495
        %v1542 = vpack.c.b16 %v1498, %v1496
        %v1543 = vpack.c.b16 %v1501, %v1499
        %v1544 = vpack.c.b16 %v1502, %v1500
        %v1545 = vpack.c.b16 %v1505, %v1503
        %v1546 = vpack.c.b16 %v1506, %v1504
        %v1547 = vpack.c.b16 %v1509, %v1507
        %v1548 = vpack.c.b16 %v1510, %v1508
        %v1549 = vpack.c.b16 %v1513, %v1511
        %v1550 = vpack.c.b16 %v1514, %v1512
        %v1551 = vpack.c.b16 %v1517, %v1515
        %v1552 = vpack.c.b16 %v1518, %v1516
        %v1553 = vpack.c.b16 %v1521, %v1519
        %v1554 = vpack.c.b16 %v1522, %v1520
        %1587 = vmatprep.subr.bf16.mxu0 %v1524
        %1588 = vmatpush1.bf16.msra.mxu0 %v1523
        %1589 = vmatprep.subr.bf16.mxu0 %v1526
        %1590 = vmatpush1.bf16.msra.mxu0 %v1525
        %1591 = vmatprep.subr.bf16.mxu0 %v1528
        %1592 = vmatpush1.bf16.msra.mxu0 %v1527
        %1593 = vmatprep.subr.bf16.mxu0 %v1530
        %1594 = vmatpush1.bf16.msra.mxu0 %v1529
        %1595 = vmatprep.subr.bf16.mxu0 %v1532
        %1596 = vmatpush1.bf16.msra.mxu0 %v1531
        %1597 = vmatprep.subr.bf16.mxu0 %v1534
        %1598 = vmatpush1.bf16.msra.mxu0 %v1533
        %1599 = vmatprep.subr.bf16.mxu0 %v1536
        %1600 = vmatpush1.bf16.msra.mxu0 %v1535
        %1601 = vmatprep.subr.bf16.mxu0 %v1538
        %1602 = vmatpush1.bf16.msra.mxu0 %v1537
        %1603 = vmatprep.subr.bf16.mxu0 %v1540
        %1604 = vmatpush1.bf16.msra.mxu0 %v1539
        %1605 = vmatprep.subr.bf16.mxu0 %v1542
        %1606 = vmatpush1.bf16.msra.mxu0 %v1541
        %1607 = vmatprep.subr.bf16.mxu0 %v1544
        %1608 = vmatpush1.bf16.msra.mxu0 %v1543
        %1609 = vmatprep.subr.bf16.mxu0 %v1546
        %1610 = vmatpush1.bf16.msra.mxu0 %v1545
        %1611 = vmatprep.subr.bf16.mxu0 %v1548
        %1612 = vmatpush1.bf16.msra.mxu0 %v1547
        %1613 = vmatprep.subr.bf16.mxu0 %v1550
        %1614 = vmatpush1.bf16.msra.mxu0 %v1549
        %1615 = vmatprep.subr.bf16.mxu0 %v1552
        %1616 = vmatpush1.bf16.msra.mxu0 %v1551
        %1617 = vmatprep.subr.bf16.mxu0 %v1554
        %1618 = vmatpush1.bf16.msra.mxu0 %v1553
        %1619 = vmatprep.mubr.bf16.mxu0 %v1381
        %1620 = vmatmul.mubr.bf16.gmra.mrb[0].mxu0 %v1380
        %v1621 = vpop.f32.mrb[0].mxu0
        %v1622 = vadd.f32 %v1420, %v1621
        %v1623 = vpop.f32.mrb[0].mxu0
        %v1624 = vadd.f32 %v1424, %v1623
        %v1625 = vpop.f32.mrb[0].mxu0
        %v1626 = vpop.f32.mrb[0].mxu0
        %1627 = vdwg.mxu0
        %v1628 = vpack.c.bf16 %v1622, %v1622
        %v1629 = vpack.c.bf16 %v1624, %v1624
        %v1630 = vld [vmem:[#allocation14] sm:$0xff]
        %v1631 = vld [vmem:[#allocation14 + $0x8] sm:$0xff]
        %v1632 = vld [vmem:[#allocation14 + $0x10] sm:$0xff]
        %v1633 = vld [vmem:[#allocation14 + $0x18] sm:$0xff]
        %v1634 = vld [vmem:[#allocation14 + $0x20] sm:$0xff]
        %v1635 = vld [vmem:[#allocation14 + $0x28] sm:$0xff]
        %v1636 = vld [vmem:[#allocation14 + $0x30] sm:$0xff]
        %v1637 = vld [vmem:[#allocation14 + $0x38] sm:$0xff]
        %v1638 = vld [vmem:[#allocation14 + $0x40] sm:$0xff]
        %v1639 = vld [vmem:[#allocation14 + $0x48] sm:$0xff]
        %v1640 = vld [vmem:[#allocation14 + $0x50] sm:$0xff]
        %v1641 = vld [vmem:[#allocation14 + $0x58] sm:$0xff]
        %v1642 = vld [vmem:[#allocation14 + $0x60] sm:$0xff]
        %v1643 = vld [vmem:[#allocation14 + $0x68] sm:$0xff]
        %v1644 = vld [vmem:[#allocation14 + $0x70] sm:$0xff]
        %v1645 = vld [vmem:[#allocation14 + $0x78] sm:$0xff]
        %v1646 = vld [vmem:[#allocation14 + $0x80] sm:$0xff]
        %v1647 = vld [vmem:[#allocation14 + $0x88] sm:$0xff]
        %v1648 = vld [vmem:[#allocation14 + $0x90] sm:$0xff]
        %v1649 = vld [vmem:[#allocation14 + $0x98] sm:$0xff]
        %v1650 = vld [vmem:[#allocation14 + $0xa0] sm:$0xff]
        %v1651 = vld [vmem:[#allocation14 + $0xa8] sm:$0xff]
        %v1652 = vld [vmem:[#allocation14 + $0xb0] sm:$0xff]
        %v1653 = vld [vmem:[#allocation14 + $0xb8] sm:$0xff]
        %v1654 = vld [vmem:[#allocation14 + $0xc0] sm:$0xff]
        %v1655 = vld [vmem:[#allocation14 + $0xc8] sm:$0xff]
        %v1656 = vld [vmem:[#allocation14 + $0xd0] sm:$0xff]
        %v1657 = vld [vmem:[#allocation14 + $0xd8] sm:$0xff]
        %v1658 = vld [vmem:[#allocation14 + $0xe0] sm:$0xff]
        %v1659 = vld [vmem:[#allocation14 + $0xe8] sm:$0xff]
        %v1660 = vld [vmem:[#allocation14 + $0xf0] sm:$0xff]
        %v1661 = vld [vmem:[#allocation14 + $0xf8] sm:$0xff]
        %s1662 = scalar_lea.vmem [#allocation7], 7
        %v1663 = vld [vmem:[%s1662] ss:$8 sm:$0x3]
        %v1665 = vlaneseq
        %v1666 = vshrl.u32 %v1665, 7
        %v1667 = vsub.s32 0, %v1666
        %v1668 = vrot.slane %v1663, %v1667
        %v1669 = vlaneseq
        %v1670 = vshrl.u32 %v1669, 7
        %v1671 = vsub.s32 1, %v1670
        %v1672 = vrot.slane %v1663, %v1671
        %v1707 = vunpack.c.l.b16 %v1630
        %v1708 = vunpack.c.h.b16 %v1630
        %v1709 = vunpack.c.l.b16 %v1631
        %v1710 = vunpack.c.h.b16 %v1631
        %v1711 = vunpack.c.l.b16 %v1632
        %v1712 = vunpack.c.h.b16 %v1632
        %v1713 = vunpack.c.l.b16 %v1633
        %v1714 = vunpack.c.h.b16 %v1633
        %v1715 = vunpack.c.l.b16 %v1634
        %v1716 = vunpack.c.h.b16 %v1634
        %v1717 = vunpack.c.l.b16 %v1635
        %v1718 = vunpack.c.h.b16 %v1635
        %v1719 = vunpack.c.l.b16 %v1636
        %v1720 = vunpack.c.h.b16 %v1636
        %v1721 = vunpack.c.l.b16 %v1637
        %v1722 = vunpack.c.h.b16 %v1637
        %v1723 = vunpack.c.l.b16 %v1638
        %v1724 = vunpack.c.h.b16 %v1638
        %v1725 = vunpack.c.l.b16 %v1639
        %v1726 = vunpack.c.h.b16 %v1639
        %v1727 = vunpack.c.l.b16 %v1640
        %v1728 = vunpack.c.h.b16 %v1640
        %v1729 = vunpack.c.l.b16 %v1641
        %v1730 = vunpack.c.h.b16 %v1641
        %v1731 = vunpack.c.l.b16 %v1642
        %v1732 = vunpack.c.h.b16 %v1642
        %v1733 = vunpack.c.l.b16 %v1643
        %v1734 = vunpack.c.h.b16 %v1643
        %v1735 = vunpack.c.l.b16 %v1644
        %v1736 = vunpack.c.h.b16 %v1644
        %v1737 = vunpack.c.l.b16 %v1645
        %v1738 = vunpack.c.h.b16 %v1645
        %v1739 = vunpack.c.l.b16 %v1646
        %v1740 = vunpack.c.h.b16 %v1646
        %v1741 = vunpack.c.l.b16 %v1647
        %v1742 = vunpack.c.h.b16 %v1647
        %v1743 = vunpack.c.l.b16 %v1648
        %v1744 = vunpack.c.h.b16 %v1648
        %v1745 = vunpack.c.l.b16 %v1649
        %v1746 = vunpack.c.h.b16 %v1649
        %v1747 = vunpack.c.l.b16 %v1650
        %v1748 = vunpack.c.h.b16 %v1650
        %v1749 = vunpack.c.l.b16 %v1651
        %v1750 = vunpack.c.h.b16 %v1651
        %v1751 = vunpack.c.l.b16 %v1652
        %v1752 = vunpack.c.h.b16 %v1652
        %v1753 = vunpack.c.l.b16 %v1653
        %v1754 = vunpack.c.h.b16 %v1653
        %v1755 = vunpack.c.l.b16 %v1654
        %v1756 = vunpack.c.h.b16 %v1654
        %v1757 = vunpack.c.l.b16 %v1655
        %v1758 = vunpack.c.h.b16 %v1655
        %v1759 = vunpack.c.l.b16 %v1656
        %v1760 = vunpack.c.h.b16 %v1656
        %v1761 = vunpack.c.l.b16 %v1657
        %v1762 = vunpack.c.h.b16 %v1657
        %v1763 = vunpack.c.l.b16 %v1658
        %v1764 = vunpack.c.h.b16 %v1658
        %v1765 = vunpack.c.l.b16 %v1659
        %v1766 = vunpack.c.h.b16 %v1659
        %v1767 = vunpack.c.l.b16 %v1660
        %v1768 = vunpack.c.h.b16 %v1660
        %v1769 = vunpack.c.l.b16 %v1661
        %v1770 = vunpack.c.h.b16 %v1661
        %v1771 = vpack.c.b16 %v1709, %v1707
        %v1772 = vpack.c.b16 %v1710, %v1708
        %v1773 = vpack.c.b16 %v1713, %v1711
        %v1774 = vpack.c.b16 %v1714, %v1712
        %v1775 = vpack.c.b16 %v1717, %v1715
        %v1776 = vpack.c.b16 %v1718, %v1716
        %v1777 = vpack.c.b16 %v1721, %v1719
        %v1778 = vpack.c.b16 %v1722, %v1720
        %v1779 = vpack.c.b16 %v1725, %v1723
        %v1780 = vpack.c.b16 %v1726, %v1724
        %v1781 = vpack.c.b16 %v1729, %v1727
        %v1782 = vpack.c.b16 %v1730, %v1728
        %v1783 = vpack.c.b16 %v1733, %v1731
        %v1784 = vpack.c.b16 %v1734, %v1732
        %v1785 = vpack.c.b16 %v1737, %v1735
        %v1786 = vpack.c.b16 %v1738, %v1736
        %v1787 = vpack.c.b16 %v1741, %v1739
        %v1788 = vpack.c.b16 %v1742, %v1740
        %v1789 = vpack.c.b16 %v1745, %v1743
        %v1790 = vpack.c.b16 %v1746, %v1744
        %v1791 = vpack.c.b16 %v1749, %v1747
        %v1792 = vpack.c.b16 %v1750, %v1748
        %v1793 = vpack.c.b16 %v1753, %v1751
        %v1794 = vpack.c.b16 %v1754, %v1752
        %v1795 = vpack.c.b16 %v1757, %v1755
        %v1796 = vpack.c.b16 %v1758, %v1756
        %v1797 = vpack.c.b16 %v1761, %v1759
        %v1798 = vpack.c.b16 %v1762, %v1760
        %v1799 = vpack.c.b16 %v1765, %v1763
        %v1800 = vpack.c.b16 %v1766, %v1764
        %v1801 = vpack.c.b16 %v1769, %v1767
        %v1802 = vpack.c.b16 %v1770, %v1768
        %1835 = vmatprep.subr.bf16.mxu0 %v1772
        %1836 = vmatpush1.bf16.msra.mxu0 %v1771
        %1837 = vmatprep.subr.bf16.mxu0 %v1774
        %1838 = vmatpush1.bf16.msra.mxu0 %v1773
        %1839 = vmatprep.subr.bf16.mxu0 %v1776
        %1840 = vmatpush1.bf16.msra.mxu0 %v1775
        %1841 = vmatprep.subr.bf16.mxu0 %v1778
        %1842 = vmatpush1.bf16.msra.mxu0 %v1777
        %1843 = vmatprep.subr.bf16.mxu0 %v1780
        %1844 = vmatpush1.bf16.msra.mxu0 %v1779
        %1845 = vmatprep.subr.bf16.mxu0 %v1782
        %1846 = vmatpush1.bf16.msra.mxu0 %v1781
        %1847 = vmatprep.subr.bf16.mxu0 %v1784
        %1848 = vmatpush1.bf16.msra.mxu0 %v1783
        %1849 = vmatprep.subr.bf16.mxu0 %v1786
        %1850 = vmatpush1.bf16.msra.mxu0 %v1785
        %1851 = vmatprep.subr.bf16.mxu0 %v1788
        %1852 = vmatpush1.bf16.msra.mxu0 %v1787
        %1853 = vmatprep.subr.bf16.mxu0 %v1790
        %1854 = vmatpush1.bf16.msra.mxu0 %v1789
        %1855 = vmatprep.subr.bf16.mxu0 %v1792
        %1856 = vmatpush1.bf16.msra.mxu0 %v1791
        %1857 = vmatprep.subr.bf16.mxu0 %v1794
        %1858 = vmatpush1.bf16.msra.mxu0 %v1793
        %1859 = vmatprep.subr.bf16.mxu0 %v1796
        %1860 = vmatpush1.bf16.msra.mxu0 %v1795
        %1861 = vmatprep.subr.bf16.mxu0 %v1798
        %1862 = vmatpush1.bf16.msra.mxu0 %v1797
        %1863 = vmatprep.subr.bf16.mxu0 %v1800
        %1864 = vmatpush1.bf16.msra.mxu0 %v1799
        %1865 = vmatprep.subr.bf16.mxu0 %v1802
        %1866 = vmatpush1.bf16.msra.mxu0 %v1801
        %1867 = vmatprep.mubr.bf16.mxu0 %v1381
        %1868 = vmatmul.mubr.bf16.gmra.mrb[0].mxu0 %v1380
        %v1869 = vpop.f32.mrb[0].mxu0
        %v1870 = vadd.f32 %v1668, %v1869
        %v1871 = vpop.f32.mrb[0].mxu0
        %v1872 = vadd.f32 %v1672, %v1871
        %v1873 = vpop.f32.mrb[0].mxu0
        %v1874 = vpop.f32.mrb[0].mxu0
        %1875 = vdwg.mxu0
        %v1876 = vpack.c.bf16 %v1870, %v1870
        %v1877 = vpack.c.bf16 %v1872, %v1872
        %v1878 = vld [vmem:[#allocation16] sm:$0xff]
        %v1879 = vld [vmem:[#allocation16 + $0x8] sm:$0xff]
        %v1880 = vld [vmem:[#allocation16 + $0x10] sm:$0xff]
        %v1881 = vld [vmem:[#allocation16 + $0x18] sm:$0xff]
        %v1882 = vld [vmem:[#allocation16 + $0x20] sm:$0xff]
        %v1883 = vld [vmem:[#allocation16 + $0x28] sm:$0xff]
        %v1884 = vld [vmem:[#allocation16 + $0x30] sm:$0xff]
        %v1885 = vld [vmem:[#allocation16 + $0x38] sm:$0xff]
        %v1886 = vld [vmem:[#allocation16 + $0x40] sm:$0xff]
        %v1887 = vld [vmem:[#allocation16 + $0x48] sm:$0xff]
        %v1888 = vld [vmem:[#allocation16 + $0x50] sm:$0xff]
        %v1889 = vld [vmem:[#allocation16 + $0x58] sm:$0xff]
        %v1890 = vld [vmem:[#allocation16 + $0x60] sm:$0xff]
        %v1891 = vld [vmem:[#allocation16 + $0x68] sm:$0xff]
        %v1892 = vld [vmem:[#allocation16 + $0x70] sm:$0xff]
        %v1893 = vld [vmem:[#allocation16 + $0x78] sm:$0xff]
        %v1894 = vld [vmem:[#allocation16 + $0x80] sm:$0xff]
        %v1895 = vld [vmem:[#allocation16 + $0x88] sm:$0xff]
        %v1896 = vld [vmem:[#allocation16 + $0x90] sm:$0xff]
        %v1897 = vld [vmem:[#allocation16 + $0x98] sm:$0xff]
        %v1898 = vld [vmem:[#allocation16 + $0xa0] sm:$0xff]
        %v1899 = vld [vmem:[#allocation16 + $0xa8] sm:$0xff]
        %v1900 = vld [vmem:[#allocation16 + $0xb0] sm:$0xff]
        %v1901 = vld [vmem:[#allocation16 + $0xb8] sm:$0xff]
        %v1902 = vld [vmem:[#allocation16 + $0xc0] sm:$0xff]
        %v1903 = vld [vmem:[#allocation16 + $0xc8] sm:$0xff]
        %v1904 = vld [vmem:[#allocation16 + $0xd0] sm:$0xff]
        %v1905 = vld [vmem:[#allocation16 + $0xd8] sm:$0xff]
        %v1906 = vld [vmem:[#allocation16 + $0xe0] sm:$0xff]
        %v1907 = vld [vmem:[#allocation16 + $0xe8] sm:$0xff]
        %v1908 = vld [vmem:[#allocation16 + $0xf0] sm:$0xff]
        %v1909 = vld [vmem:[#allocation16 + $0xf8] sm:$0xff]
        %s1910 = scalar_lea.vmem [#allocation7], 16
        %v1911 = vld [vmem:[%s1910] ss:$8 sm:$0x3]
        %v1913 = vlaneseq
        %v1914 = vshrl.u32 %v1913, 7
        %v1915 = vsub.s32 0, %v1914
        %v1916 = vrot.slane %v1911, %v1915
        %v1917 = vlaneseq
        %v1918 = vshrl.u32 %v1917, 7
        %v1919 = vsub.s32 1, %v1918
        %v1920 = vrot.slane %v1911, %v1919
        %v1955 = vunpack.c.l.b16 %v1878
        %v1956 = vunpack.c.h.b16 %v1878
        %v1957 = vunpack.c.l.b16 %v1879
        %v1958 = vunpack.c.h.b16 %v1879
        %v1959 = vunpack.c.l.b16 %v1880
        %v1960 = vunpack.c.h.b16 %v1880
        %v1961 = vunpack.c.l.b16 %v1881
        %v1962 = vunpack.c.h.b16 %v1881
        %v1963 = vunpack.c.l.b16 %v1882
        %v1964 = vunpack.c.h.b16 %v1882
        %v1965 = vunpack.c.l.b16 %v1883
        %v1966 = vunpack.c.h.b16 %v1883
        %v1967 = vunpack.c.l.b16 %v1884
        %v1968 = vunpack.c.h.b16 %v1884
        %v1969 = vunpack.c.l.b16 %v1885
        %v1970 = vunpack.c.h.b16 %v1885
        %v1971 = vunpack.c.l.b16 %v1886
        %v1972 = vunpack.c.h.b16 %v1886
        %v1973 = vunpack.c.l.b16 %v1887
        %v1974 = vunpack.c.h.b16 %v1887
        %v1975 = vunpack.c.l.b16 %v1888
        %v1976 = vunpack.c.h.b16 %v1888
        %v1977 = vunpack.c.l.b16 %v1889
        %v1978 = vunpack.c.h.b16 %v1889
        %v1979 = vunpack.c.l.b16 %v1890
        %v1980 = vunpack.c.h.b16 %v1890
        %v1981 = vunpack.c.l.b16 %v1891
        %v1982 = vunpack.c.h.b16 %v1891
        %v1983 = vunpack.c.l.b16 %v1892
        %v1984 = vunpack.c.h.b16 %v1892
        %v1985 = vunpack.c.l.b16 %v1893
        %v1986 = vunpack.c.h.b16 %v1893
        %v1987 = vunpack.c.l.b16 %v1894
        %v1988 = vunpack.c.h.b16 %v1894
        %v1989 = vunpack.c.l.b16 %v1895
        %v1990 = vunpack.c.h.b16 %v1895
        %v1991 = vunpack.c.l.b16 %v1896
        %v1992 = vunpack.c.h.b16 %v1896
        %v1993 = vunpack.c.l.b16 %v1897
        %v1994 = vunpack.c.h.b16 %v1897
        %v1995 = vunpack.c.l.b16 %v1898
        %v1996 = vunpack.c.h.b16 %v1898
        %v1997 = vunpack.c.l.b16 %v1899
        %v1998 = vunpack.c.h.b16 %v1899
        %v1999 = vunpack.c.l.b16 %v1900
        %v2000 = vunpack.c.h.b16 %v1900
        %v2001 = vunpack.c.l.b16 %v1901
        %v2002 = vunpack.c.h.b16 %v1901
        %v2003 = vunpack.c.l.b16 %v1902
        %v2004 = vunpack.c.h.b16 %v1902
        %v2005 = vunpack.c.l.b16 %v1903
        %v2006 = vunpack.c.h.b16 %v1903
        %v2007 = vunpack.c.l.b16 %v1904
        %v2008 = vunpack.c.h.b16 %v1904
        %v2009 = vunpack.c.l.b16 %v1905
        %v2010 = vunpack.c.h.b16 %v1905
        %v2011 = vunpack.c.l.b16 %v1906
        %v2012 = vunpack.c.h.b16 %v1906
        %v2013 = vunpack.c.l.b16 %v1907
        %v2014 = vunpack.c.h.b16 %v1907
        %v2015 = vunpack.c.l.b16 %v1908
        %v2016 = vunpack.c.h.b16 %v1908
        %v2017 = vunpack.c.l.b16 %v1909
        %v2018 = vunpack.c.h.b16 %v1909
        %v2019 = vpack.c.b16 %v1957, %v1955
        %v2020 = vpack.c.b16 %v1958, %v1956
        %v2021 = vpack.c.b16 %v1961, %v1959
        %v2022 = vpack.c.b16 %v1962, %v1960
        %v2023 = vpack.c.b16 %v1965, %v1963
        %v2024 = vpack.c.b16 %v1966, %v1964
        %v2025 = vpack.c.b16 %v1969, %v1967
        %v2026 = vpack.c.b16 %v1970, %v1968
        %v2027 = vpack.c.b16 %v1973, %v1971
        %v2028 = vpack.c.b16 %v1974, %v1972
        %v2029 = vpack.c.b16 %v1977, %v1975
        %v2030 = vpack.c.b16 %v1978, %v1976
        %v2031 = vpack.c.b16 %v1981, %v1979
        %v2032 = vpack.c.b16 %v1982, %v1980
        %v2033 = vpack.c.b16 %v1985, %v1983
        %v2034 = vpack.c.b16 %v1986, %v1984
        %v2035 = vpack.c.b16 %v1989, %v1987
        %v2036 = vpack.c.b16 %v1990, %v1988
        %v2037 = vpack.c.b16 %v1993, %v1991
        %v2038 = vpack.c.b16 %v1994, %v1992
        %v2039 = vpack.c.b16 %v1997, %v1995
        %v2040 = vpack.c.b16 %v1998, %v1996
        %v2041 = vpack.c.b16 %v2001, %v1999
        %v2042 = vpack.c.b16 %v2002, %v2000
        %v2043 = vpack.c.b16 %v2005, %v2003
        %v2044 = vpack.c.b16 %v2006, %v2004
        %v2045 = vpack.c.b16 %v2009, %v2007
        %v2046 = vpack.c.b16 %v2010, %v2008
        %v2047 = vpack.c.b16 %v2013, %v2011
        %v2048 = vpack.c.b16 %v2014, %v2012
        %v2049 = vpack.c.b16 %v2017, %v2015
        %v2050 = vpack.c.b16 %v2018, %v2016
        %2083 = vmatprep.subr.bf16.mxu0 %v2020
        %2084 = vmatpush1.bf16.msra.mxu0 %v2019
        %2085 = vmatprep.subr.bf16.mxu0 %v2022
        %2086 = vmatpush1.bf16.msra.mxu0 %v2021
        %2087 = vmatprep.subr.bf16.mxu0 %v2024
        %2088 = vmatpush1.bf16.msra.mxu0 %v2023
        %2089 = vmatprep.subr.bf16.mxu0 %v2026
        %2090 = vmatpush1.bf16.msra.mxu0 %v2025
        %2091 = vmatprep.subr.bf16.mxu0 %v2028
        %2092 = vmatpush1.bf16.msra.mxu0 %v2027
        %2093 = vmatprep.subr.bf16.mxu0 %v2030
        %2094 = vmatpush1.bf16.msra.mxu0 %v2029
        %2095 = vmatprep.subr.bf16.mxu0 %v2032
        %2096 = vmatpush1.bf16.msra.mxu0 %v2031
        %2097 = vmatprep.subr.bf16.mxu0 %v2034
        %2098 = vmatpush1.bf16.msra.mxu0 %v2033
        %2099 = vmatprep.subr.bf16.mxu0 %v2036
        %2100 = vmatpush1.bf16.msra.mxu0 %v2035
        %2101 = vmatprep.subr.bf16.mxu0 %v2038
        %2102 = vmatpush1.bf16.msra.mxu0 %v2037
        %2103 = vmatprep.subr.bf16.mxu0 %v2040
        %2104 = vmatpush1.bf16.msra.mxu0 %v2039
        %2105 = vmatprep.subr.bf16.mxu0 %v2042
        %2106 = vmatpush1.bf16.msra.mxu0 %v2041
        %2107 = vmatprep.subr.bf16.mxu0 %v2044
        %2108 = vmatpush1.bf16.msra.mxu0 %v2043
        %2109 = vmatprep.subr.bf16.mxu0 %v2046
        %2110 = vmatpush1.bf16.msra.mxu0 %v2045
        %2111 = vmatprep.subr.bf16.mxu0 %v2048
        %2112 = vmatpush1.bf16.msra.mxu0 %v2047
        %2113 = vmatprep.subr.bf16.mxu0 %v2050
        %2114 = vmatpush1.bf16.msra.mxu0 %v2049
        %2115 = vmatprep.mubr.bf16.mxu0 %v1381
        %2116 = vmatmul.mubr.bf16.gmra.mrb[0].mxu0 %v1380
        %v2117 = vpop.f32.mrb[0].mxu0
        %v2118 = vadd.f32 %v1916, %v2117
        %v2119 = vpop.f32.mrb[0].mxu0
        %v2120 = vadd.f32 %v1920, %v2119
        %v2121 = vpop.f32.mrb[0].mxu0
        %v2122 = vpop.f32.mrb[0].mxu0
        %2123 = vdwg.mxu0
        %v2124 = vpack.c.bf16 %v2118, %v2118
        %v2125 = vpack.c.bf16 %v2120, %v2120
        %vm2126 = vcmask 261120
        %v2128 = vsel %vm2126, %v1628, 0
        %v2131 = vsel %vm2126, %v1876, 0
        %2133 = vmatprep.subr.bf16.mxu0 0
        %2134 = vmatpush1.bf16.xpose.msra.mxu0 %v2131
        %2135 = vmatprep.subr.bf16.mxu0 0
        %2136 = vmatpush1.bf16.xpose.msra.mxu0 0
        %2137 = vmatprep.subr.bf16.mxu0 0
        %2138 = vmatpush1.bf16.xpose.msra.mxu0 0
        %2139 = vmatprep.subr.bf16.mxu0 0
        %2140 = vmatpush1.bf16.xpose.msra.mxu0 0
        %2141 = vmatprep.subr.bf16.mxu0 0
        %2142 = vmatpush1.bf16.xpose.msra.mxu0 0
        %2143 = vmatprep.subr.bf16.mxu0 0
        %2144 = vmatpush1.bf16.xpose.msra.mxu0 0
        %2145 = vmatprep.subr.bf16.mxu0 0
        %2146 = vmatpush1.bf16.xpose.msra.mxu0 0
        %2147 = vmatprep.subr.bf16.mxu0 0
        %2148 = vmatpush1.bf16.xpose.msra.mxu0 0
        %2149 = vmatprep.subr.bf16.mxu0 0
        %2150 = vmatpush1.bf16.xpose.msra.mxu0 0
        %2151 = vmatprep.subr.bf16.mxu0 0
        %2152 = vmatpush1.bf16.xpose.msra.mxu0 0
        %2153 = vmatprep.subr.bf16.mxu0 0
        %2154 = vmatpush1.bf16.xpose.msra.mxu0 0
        %2155 = vmatprep.subr.bf16.mxu0 0
        %2156 = vmatpush1.bf16.xpose.msra.mxu0 0
        %2157 = vmatprep.subr.bf16.mxu0 0
        %2158 = vmatpush1.bf16.xpose.msra.mxu0 0
        %2159 = vmatprep.subr.bf16.mxu0 0
        %2160 = vmatpush1.bf16.xpose.msra.mxu0 0
        %2161 = vmatprep.subr.bf16.mxu0 0
        %2162 = vmatpush1.bf16.xpose.msra.mxu0 0
        %2163 = vmatprep.subr.bf16.mxu0 0
        %2164 = vmatpush1.bf16.xpose.msra.mxu0 0
        %2165 = vmatprep.mubr.bf16.mxu0 0
        %2166 = vmatmul.mubr.bf16.gmra.mrb[0].mxu0 %v2128
        %v2167 = vpop.f32.mrb[0].mxu0
        %v2168 = vadd.f32 0.0, %v2167
        %v2169 = vpop.f32.mrb[0].mxu0
        %v2170 = vpop.f32.mrb[0].mxu0
        %v2171 = vpop.f32.mrb[0].mxu0
        %2172 = vdwg.mxu0
        %vm2173 = vcmask 64512
        %v2174 = vsel %vm2173, %v2168, -inf
        %2175 = vmax.xlane.f32.xlu0 %v2174
        %v2176 = vpop.xlane.xlu0 %2175
        %v2177 = vsub.f32 %v2168, %v2176
        %v2178 = vmul.f32 %v2177, 1.442695
        %v2179 = vpow.pop %v2178
        %v2180 = vsel %vm2173, %v2179, 0.0
        %2181 = vadd.xlane.f32.xlu0 %v2180
        %v2182 = vpop.xlane.xlu0 %2181
        %v2183 = vrcp.pop %v2182
        %v2184 = vmul.f32 %v2179, %v2183
        %v2185 = vpack.c.bf16 %v2184, %v2184
        %v2187 = vsel %vm2173, %v2185, 0
        %vm2189 = vcmask 1043456
        %v2191 = vsel %vm2189, %v2124, 0
        %2193 = vmatprep.subr.bf16.mxu0 0
        %2194 = vmatpush1.bf16.msra.mxu0 %v2191
        %2195 = vmatprep.subr.bf16.mxu0 0
        %2196 = vmatpush1.bf16.msra.mxu0 0
        %2197 = vmatprep.subr.bf16.mxu0 0
        %2198 = vmatpush1.bf16.msra.mxu0 0
        %2199 = vmatprep.subr.bf16.mxu0 0
        %2200 = vmatpush1.bf16.msra.mxu0 0
        %2201 = vmatprep.subr.bf16.mxu0 0
        %2202 = vmatpush1.bf16.msra.mxu0 0
        %2203 = vmatprep.subr.bf16.mxu0 0
        %2204 = vmatpush1.bf16.msra.mxu0 0
        %2205 = vmatprep.subr.bf16.mxu0 0
        %2206 = vmatpush1.bf16.msra.mxu0 0
        %2207 = vmatprep.subr.bf16.mxu0 0
        %2208 = vmatpush1.bf16.msra.mxu0 0
        %2209 = vmatprep.subr.bf16.mxu0 0
        %2210 = vmatpush1.bf16.msra.mxu0 0
        %2211 = vmatprep.subr.bf16.mxu0 0
        %2212 = vmatpush1.bf16.msra.mxu0 0
        %2213 = vmatprep.subr.bf16.mxu0 0
        %2214 = vmatpush1.bf16.msra.mxu0 0
        %2215 = vmatprep.subr.bf16.mxu0 0
        %2216 = vmatpush1.bf16.msra.mxu0 0
        %2217 = vmatprep.subr.bf16.mxu0 0
        %2218 = vmatpush1.bf16.msra.mxu0 0
        %2219 = vmatprep.subr.bf16.mxu0 0
        %2220 = vmatpush1.bf16.msra.mxu0 0
        %2221 = vmatprep.subr.bf16.mxu0 0
        %2222 = vmatpush1.bf16.msra.mxu0 0
        %2223 = vmatprep.subr.bf16.mxu0 0
        %2224 = vmatpush1.bf16.msra.mxu0 0
        %2225 = vmatprep.mubr.bf16.mxu0 0
        %2226 = vmatmul.mubr.bf16.gmra.mrb[0].mxu0 %v2187
        %v2227 = vpop.f32.mrb[0].mxu0
        %v2228 = vadd.f32 0.0, %v2227
        %v2229 = vpop.f32.mrb[0].mxu0
        %v2230 = vpop.f32.mrb[0].mxu0
        %v2231 = vpop.f32.mrb[0].mxu0
        %2232 = vdwg.mxu0
        %v2233 = vpack.c.bf16 %v2228, %v2228
        %v2234 = vld [vmem:[#allocation17] sm:$0xff]
        %v2235 = vld [vmem:[#allocation17 + $0x8] sm:$0xff]
        %v2236 = vld [vmem:[#allocation17 + $0x10] sm:$0xff]
        %v2237 = vld [vmem:[#allocation17 + $0x18] sm:$0xff]
        %2239 = vrot.lane.b32.xlu0 %v1628, 96
        %v2240 = vpop.permute.xlu0 %2239
        %2242 = vrot.lane.b32.xlu0 %v1876, 96
        %v2243 = vpop.permute.xlu0 %2242
        %v2245 = vsel %vm2126, %v2240, 0
        %v2248 = vsel %vm2126, %v2243, 0
        %2250 = vmatprep.subr.bf16.mxu0 0
        %2251 = vmatpush1.bf16.xpose.msra.mxu0 %v2248
        %2252 = vmatprep.subr.bf16.mxu0 0
        %2253 = vmatpush1.bf16.xpose.msra.mxu0 0
        %2254 = vmatprep.subr.bf16.mxu0 0
        %2255 = vmatpush1.bf16.xpose.msra.mxu0 0
        %2256 = vmatprep.subr.bf16.mxu0 0
        %2257 = vmatpush1.bf16.xpose.msra.mxu0 0
        %2258 = vmatprep.subr.bf16.mxu0 0
        %2259 = vmatpush1.bf16.xpose.msra.mxu0 0
        %2260 = vmatprep.subr.bf16.mxu0 0
        %2261 = vmatpush1.bf16.xpose.msra.mxu0 0
        %2262 = vmatprep.subr.bf16.mxu0 0
        %2263 = vmatpush1.bf16.xpose.msra.mxu0 0
        %2264 = vmatprep.subr.bf16.mxu0 0
        %2265 = vmatpush1.bf16.xpose.msra.mxu0 0
        %2266 = vmatprep.subr.bf16.mxu0 0
        %2267 = vmatpush1.bf16.xpose.msra.mxu0 0
        %2268 = vmatprep.subr.bf16.mxu0 0
        %2269 = vmatpush1.bf16.xpose.msra.mxu0 0
        %2270 = vmatprep.subr.bf16.mxu0 0
        %2271 = vmatpush1.bf16.xpose.msra.mxu0 0
        %2272 = vmatprep.subr.bf16.mxu0 0
        %2273 = vmatpush1.bf16.xpose.msra.mxu0 0
        %2274 = vmatprep.subr.bf16.mxu0 0
        %2275 = vmatpush1.bf16.xpose.msra.mxu0 0
        %2276 = vmatprep.subr.bf16.mxu0 0
        %2277 = vmatpush1.bf16.xpose.msra.mxu0 0
        %2278 = vmatprep.subr.bf16.mxu0 0
        %2279 = vmatpush1.bf16.xpose.msra.mxu0 0
        %2280 = vmatprep.subr.bf16.mxu0 0
        %2281 = vmatpush1.bf16.xpose.msra.mxu0 0
        %2282 = vmatprep.mubr.bf16.mxu0 0
        %2283 = vmatmul.mubr.bf16.gmra.mrb[0].mxu0 %v2245
        %v2284 = vpop.f32.mrb[0].mxu0
        %v2285 = vadd.f32 0.0, %v2284
        %v2286 = vpop.f32.mrb[0].mxu0
        %v2287 = vpop.f32.mrb[0].mxu0
        %v2288 = vpop.f32.mrb[0].mxu0
        %2289 = vdwg.mxu0
        %v2290 = vsel %vm2173, %v2285, -inf
        %2291 = vmax.xlane.f32.xlu0 %v2290
        %v2292 = vpop.xlane.xlu0 %2291
        %v2293 = vsub.f32 %v2285, %v2292
        %v2294 = vmul.f32 %v2293, 1.442695
        %v2295 = vpow.pop %v2294
        %v2296 = vsel %vm2173, %v2295, 0.0
        %2297 = vadd.xlane.f32.xlu0 %v2296
        %v2298 = vpop.xlane.xlu0 %2297
        %v2299 = vrcp.pop %v2298
        %v2300 = vmul.f32 %v2295, %v2299
        %v2301 = vpack.c.bf16 %v2300, %v2300
        %2303 = vrot.lane.b32.xlu0 %v2124, 96
        %v2304 = vpop.permute.xlu0 %2303
        %v2306 = vsel %vm2173, %v2301, 0
        %v2309 = vsel %vm2189, %v2304, 0
        %2311 = vmatprep.subr.bf16.mxu0 0
        %2312 = vmatpush1.bf16.msra.mxu0 %v2309
        %2313 = vmatprep.subr.bf16.mxu0 0
        %2314 = vmatpush1.bf16.msra.mxu0 0
        %2315 = vmatprep.subr.bf16.mxu0 0
        %2316 = vmatpush1.bf16.msra.mxu0 0
        %2317 = vmatprep.subr.bf16.mxu0 0
        %2318 = vmatpush1.bf16.msra.mxu0 0
        %2319 = vmatprep.subr.bf16.mxu0 0
        %2320 = vmatpush1.bf16.msra.mxu0 0
        %2321 = vmatprep.subr.bf16.mxu0 0
        %2322 = vmatpush1.bf16.msra.mxu0 0
        %2323 = vmatprep.subr.bf16.mxu0 0
        %2324 = vmatpush1.bf16.msra.mxu0 0
        %2325 = vmatprep.subr.bf16.mxu0 0
        %2326 = vmatpush1.bf16.msra.mxu0 0
        %2327 = vmatprep.subr.bf16.mxu0 0
        %2328 = vmatpush1.bf16.msra.mxu0 0
        %2329 = vmatprep.subr.bf16.mxu0 0
        %2330 = vmatpush1.bf16.msra.mxu0 0
        %2331 = vmatprep.subr.bf16.mxu0 0
        %2332 = vmatpush1.bf16.msra.mxu0 0
        %2333 = vmatprep.subr.bf16.mxu0 0
        %2334 = vmatpush1.bf16.msra.mxu0 0
        %2335 = vmatprep.subr.bf16.mxu0 0
        %2336 = vmatpush1.bf16.msra.mxu0 0
        %2337 = vmatprep.subr.bf16.mxu0 0
        %2338 = vmatpush1.bf16.msra.mxu0 0
        %2339 = vmatprep.subr.bf16.mxu0 0
        %2340 = vmatpush1.bf16.msra.mxu0 0
        %2341 = vmatprep.subr.bf16.mxu0 0
        %2342 = vmatpush1.bf16.msra.mxu0 0
        %2343 = vmatprep.mubr.bf16.mxu0 0
        %2344 = vmatmul.mubr.bf16.gmra.mrb[0].mxu0 %v2306
        %v2345 = vpop.f32.mrb[0].mxu0
        %v2346 = vadd.f32 0.0, %v2345
        %v2347 = vpop.f32.mrb[0].mxu0
        %v2348 = vpop.f32.mrb[0].mxu0
        %v2349 = vpop.f32.mrb[0].mxu0
        %2350 = vdwg.mxu0
        %v2351 = vpack.c.bf16 %v2346, %v2346
        %v2352 = vld [vmem:[#allocation17 + $0x20] sm:$0xff]
        %v2353 = vld [vmem:[#allocation17 + $0x28] sm:$0xff]
        %v2354 = vld [vmem:[#allocation17 + $0x30] sm:$0xff]
        %v2355 = vld [vmem:[#allocation17 + $0x38] sm:$0xff]
        %v2360 = vunpack.c.l.b16 %v2352
        %v2361 = vunpack.c.h.b16 %v2352
        %v2362 = vunpack.c.l.b16 %v2353
        %v2363 = vunpack.c.h.b16 %v2353
        %v2364 = vunpack.c.l.b16 %v2354
        %v2365 = vunpack.c.h.b16 %v2354
        %v2366 = vunpack.c.l.b16 %v2355
        %v2367 = vunpack.c.h.b16 %v2355
        %v2368 = vpack.c.b16 %v2362, %v2360
        %v2369 = vpack.c.b16 %v2363, %v2361
        %v2370 = vpack.c.b16 %v2366, %v2364
        %v2371 = vpack.c.b16 %v2367, %v2365
        %v2377 = vsel %vm2126, %v2351, 0
        %2379 = vmatprep.subr.bf16.mxu0 %v2369
        %2380 = vmatpush1.bf16.msra.mxu0 %v2368
        %2381 = vmatprep.subr.bf16.mxu0 %v2371
        %2382 = vmatpush1.bf16.msra.mxu0 %v2370
        %2383 = vmatprep.subr.bf16.mxu0 0
        %2384 = vmatpush1.bf16.msra.mxu0 0
        %2385 = vmatprep.subr.bf16.mxu0 0
        %2386 = vmatpush1.bf16.msra.mxu0 0
        %2387 = vmatprep.subr.bf16.mxu0 0
        %2388 = vmatpush1.bf16.msra.mxu0 0
        %2389 = vmatprep.subr.bf16.mxu0 0
        %2390 = vmatpush1.bf16.msra.mxu0 0
        %2391 = vmatprep.subr.bf16.mxu0 0
        %2392 = vmatpush1.bf16.msra.mxu0 0
        %2393 = vmatprep.subr.bf16.mxu0 0
        %2394 = vmatpush1.bf16.msra.mxu0 0
        %2395 = vmatprep.subr.bf16.mxu0 0
        %2396 = vmatpush1.bf16.msra.mxu0 0
        %2397 = vmatprep.subr.bf16.mxu0 0
        %2398 = vmatpush1.bf16.msra.mxu0 0
        %2399 = vmatprep.subr.bf16.mxu0 0
        %2400 = vmatpush1.bf16.msra.mxu0 0
        %2401 = vmatprep.subr.bf16.mxu0 0
        %2402 = vmatpush1.bf16.msra.mxu0 0
        %2403 = vmatprep.subr.bf16.mxu0 0
        %2404 = vmatpush1.bf16.msra.mxu0 0
        %2405 = vmatprep.subr.bf16.mxu0 0
        %2406 = vmatpush1.bf16.msra.mxu0 0
        %2407 = vmatprep.subr.bf16.mxu0 0
        %2408 = vmatpush1.bf16.msra.mxu0 0
        %2409 = vmatprep.subr.bf16.mxu0 0
        %2410 = vmatpush1.bf16.msra.mxu0 0
        %2411 = vmatprep.mubr.bf16.mxu0 0
        %2412 = vmatmul.mubr.bf16.gmra.mrb[0].mxu0 %v2377
        %v2413 = vpop.f32.mrb[0].mxu0
        %v2414 = vadd.f32 0.0, %v2413
        %v2415 = vpop.f32.mrb[0].mxu0
        %v2416 = vadd.f32 0.0, %v2415
        %v2417 = vpop.f32.mrb[0].mxu0
        %v2418 = vpop.f32.mrb[0].mxu0
        %2419 = vdwg.mxu0
        %v2424 = vunpack.c.l.b16 %v2234
        %v2425 = vunpack.c.h.b16 %v2234
        %v2426 = vunpack.c.l.b16 %v2235
        %v2427 = vunpack.c.h.b16 %v2235
        %v2428 = vunpack.c.l.b16 %v2236
        %v2429 = vunpack.c.h.b16 %v2236
        %v2430 = vunpack.c.l.b16 %v2237
        %v2431 = vunpack.c.h.b16 %v2237
        %v2432 = vpack.c.b16 %v2426, %v2424
        %v2433 = vpack.c.b16 %v2427, %v2425
        %v2434 = vpack.c.b16 %v2430, %v2428
        %v2435 = vpack.c.b16 %v2431, %v2429
        %v2441 = vsel %vm2126, %v2233, 0
        %2443 = vmatprep.subr.bf16.mxu0 %v2433
        %2444 = vmatpush1.bf16.msra.mxu0 %v2432
        %2445 = vmatprep.subr.bf16.mxu0 %v2435
        %2446 = vmatpush1.bf16.msra.mxu0 %v2434
        %2447 = vmatprep.subr.bf16.mxu0 0
        %2448 = vmatpush1.bf16.msra.mxu0 0
        %2449 = vmatprep.subr.bf16.mxu0 0
        %2450 = vmatpush1.bf16.msra.mxu0 0
        %2451 = vmatprep.subr.bf16.mxu0 0
        %2452 = vmatpush1.bf16.msra.mxu0 0
        %2453 = vmatprep.subr.bf16.mxu0 0
        %2454 = vmatpush1.bf16.msra.mxu0 0
        %2455 = vmatprep.subr.bf16.mxu0 0
        %2456 = vmatpush1.bf16.msra.mxu0 0
        %2457 = vmatprep.subr.bf16.mxu0 0
        %2458 = vmatpush1.bf16.msra.mxu0 0
        %2459 = vmatprep.subr.bf16.mxu0 0
        %2460 = vmatpush1.bf16.msra.mxu0 0
        %2461 = vmatprep.subr.bf16.mxu0 0
        %2462 = vmatpush1.bf16.msra.mxu0 0
        %2463 = vmatprep.subr.bf16.mxu0 0
        %2464 = vmatpush1.bf16.msra.mxu0 0
        %2465 = vmatprep.subr.bf16.mxu0 0
        %2466 = vmatpush1.bf16.msra.mxu0 0
        %2467 = vmatprep.subr.bf16.mxu0 0
        %2468 = vmatpush1.bf16.msra.mxu0 0
        %2469 = vmatprep.subr.bf16.mxu0 0
        %2470 = vmatpush1.bf16.msra.mxu0 0
        %2471 = vmatprep.subr.bf16.mxu0 0
        %2472 = vmatpush1.bf16.msra.mxu0 0
        %2473 = vmatprep.subr.bf16.mxu0 0
        %2474 = vmatpush1.bf16.msra.mxu0 0
        %2475 = vmatprep.mubr.bf16.mxu0 0
        %2476 = vmatmul.mubr.bf16.gmra.mrb[0].mxu0 %v2441
        %v2477 = vpop.f32.mrb[0].mxu0
        %v2478 = vadd.f32 %v2414, %v2477
        %v2479 = vpop.f32.mrb[0].mxu0
        %v2480 = vadd.f32 %v2416, %v2479
        %v2481 = vpop.f32.mrb[0].mxu0
        %v2482 = vpop.f32.mrb[0].mxu0
        %2483 = vdwg.mxu0
        %2484 = vrot.lane.b32.xlu0 %v1628, 64
        %v2485 = vpop.permute.xlu0 %2484
        %2486 = vrot.lane.b32.xlu0 %v1876, 64
        %v2487 = vpop.permute.xlu0 %2486
        %v2489 = vsel %vm2126, %v2485, 0
        %v2492 = vsel %vm2126, %v2487, 0
        %2494 = vmatprep.subr.bf16.mxu0 0
        %2495 = vmatpush1.bf16.xpose.msra.mxu0 %v2492
        %2496 = vmatprep.subr.bf16.mxu0 0
        %2497 = vmatpush1.bf16.xpose.msra.mxu0 0
        %2498 = vmatprep.subr.bf16.mxu0 0
        %2499 = vmatpush1.bf16.xpose.msra.mxu0 0
        %2500 = vmatprep.subr.bf16.mxu0 0
        %2501 = vmatpush1.bf16.xpose.msra.mxu0 0
        %2502 = vmatprep.subr.bf16.mxu0 0
        %2503 = vmatpush1.bf16.xpose.msra.mxu0 0
        %2504 = vmatprep.subr.bf16.mxu0 0
        %2505 = vmatpush1.bf16.xpose.msra.mxu0 0
        %2506 = vmatprep.subr.bf16.mxu0 0
        %2507 = vmatpush1.bf16.xpose.msra.mxu0 0
        %2508 = vmatprep.subr.bf16.mxu0 0
        %2509 = vmatpush1.bf16.xpose.msra.mxu0 0
        %2510 = vmatprep.subr.bf16.mxu0 0
        %2511 = vmatpush1.bf16.xpose.msra.mxu0 0
        %2512 = vmatprep.subr.bf16.mxu0 0
        %2513 = vmatpush1.bf16.xpose.msra.mxu0 0
        %2514 = vmatprep.subr.bf16.mxu0 0
        %2515 = vmatpush1.bf16.xpose.msra.mxu0 0
        %2516 = vmatprep.subr.bf16.mxu0 0
        %2517 = vmatpush1.bf16.xpose.msra.mxu0 0
        %2518 = vmatprep.subr.bf16.mxu0 0
        %2519 = vmatpush1.bf16.xpose.msra.mxu0 0
        %2520 = vmatprep.subr.bf16.mxu0 0
        %2521 = vmatpush1.bf16.xpose.msra.mxu0 0
        %2522 = vmatprep.subr.bf16.mxu0 0
        %2523 = vmatpush1.bf16.xpose.msra.mxu0 0
        %2524 = vmatprep.subr.bf16.mxu0 0
        %2525 = vmatpush1.bf16.xpose.msra.mxu0 0
        %2526 = vmatprep.mubr.bf16.mxu0 0
        %2527 = vmatmul.mubr.bf16.gmra.mrb[0].mxu0 %v2489
        %v2528 = vpop.f32.mrb[0].mxu0
        %v2529 = vadd.f32 0.0, %v2528
        %v2530 = vpop.f32.mrb[0].mxu0
        %v2531 = vpop.f32.mrb[0].mxu0
        %v2532 = vpop.f32.mrb[0].mxu0
        %2533 = vdwg.mxu0
        %v2534 = vsel %vm2173, %v2529, -inf
        %2535 = vmax.xlane.f32.xlu0 %v2534
        %v2536 = vpop.xlane.xlu0 %2535
        %v2537 = vsub.f32 %v2529, %v2536
        %v2538 = vmul.f32 %v2537, 1.442695
        %v2539 = vpow.pop %v2538
        %v2540 = vsel %vm2173, %v2539, 0.0
        %2541 = vadd.xlane.f32.xlu0 %v2540
        %v2542 = vpop.xlane.xlu0 %2541
        %v2543 = vrcp.pop %v2542
        %v2544 = vmul.f32 %v2539, %v2543
        %v2545 = vpack.c.bf16 %v2544, %v2544
        %2546 = vrot.lane.b32.xlu0 %v2124, 64
        %v2547 = vpop.permute.xlu0 %2546
        %v2549 = vsel %vm2173, %v2545, 0
        %v2552 = vsel %vm2189, %v2547, 0
        %2554 = vmatprep.subr.bf16.mxu0 0
        %2555 = vmatpush1.bf16.msra.mxu0 %v2552
        %2556 = vmatprep.subr.bf16.mxu0 0
        %2557 = vmatpush1.bf16.msra.mxu0 0
        %2558 = vmatprep.subr.bf16.mxu0 0
        %2559 = vmatpush1.bf16.msra.mxu0 0
        %2560 = vmatprep.subr.bf16.mxu0 0
        %2561 = vmatpush1.bf16.msra.mxu0 0
        %2562 = vmatprep.subr.bf16.mxu0 0
        %2563 = vmatpush1.bf16.msra.mxu0 0
        %2564 = vmatprep.subr.bf16.mxu0 0
        %2565 = vmatpush1.bf16.msra.mxu0 0
        %2566 = vmatprep.subr.bf16.mxu0 0
        %2567 = vmatpush1.bf16.msra.mxu0 0
        %2568 = vmatprep.subr.bf16.mxu0 0
        %2569 = vmatpush1.bf16.msra.mxu0 0
        %2570 = vmatprep.subr.bf16.mxu0 0
        %2571 = vmatpush1.bf16.msra.mxu0 0
        %2572 = vmatprep.subr.bf16.mxu0 0
        %2573 = vmatpush1.bf16.msra.mxu0 0
        %2574 = vmatprep.subr.bf16.mxu0 0
        %2575 = vmatpush1.bf16.msra.mxu0 0
        %2576 = vmatprep.subr.bf16.mxu0 0
        %2577 = vmatpush1.bf16.msra.mxu0 0
        %2578 = vmatprep.subr.bf16.mxu0 0
        %2579 = vmatpush1.bf16.msra.mxu0 0
        %2580 = vmatprep.subr.bf16.mxu0 0
        %2581 = vmatpush1.bf16.msra.mxu0 0
        %2582 = vmatprep.subr.bf16.mxu0 0
        %2583 = vmatpush1.bf16.msra.mxu0 0
        %2584 = vmatprep.subr.bf16.mxu0 0
        %2585 = vmatpush1.bf16.msra.mxu0 0
        %2586 = vmatprep.mubr.bf16.mxu0 0
        %2587 = vmatmul.mubr.bf16.gmra.mrb[0].mxu0 %v2549
        %v2588 = vpop.f32.mrb[0].mxu0
        %v2589 = vadd.f32 0.0, %v2588
        %v2590 = vpop.f32.mrb[0].mxu0
        %v2591 = vpop.f32.mrb[0].mxu0
        %v2592 = vpop.f32.mrb[0].mxu0
        %2593 = vdwg.mxu0
        %v2594 = vpack.c.bf16 %v2589, %v2589
        %v2595 = vld [vmem:[#allocation17 + $0x40] sm:$0xff]
        %v2596 = vld [vmem:[#allocation17 + $0x48] sm:$0xff]
        %v2597 = vld [vmem:[#allocation17 + $0x50] sm:$0xff]
        %v2598 = vld [vmem:[#allocation17 + $0x58] sm:$0xff]
        %v2603 = vunpack.c.l.b16 %v2595
        %v2604 = vunpack.c.h.b16 %v2595
        %v2605 = vunpack.c.l.b16 %v2596
        %v2606 = vunpack.c.h.b16 %v2596
        %v2607 = vunpack.c.l.b16 %v2597
        %v2608 = vunpack.c.h.b16 %v2597
        %v2609 = vunpack.c.l.b16 %v2598
        %v2610 = vunpack.c.h.b16 %v2598
        %v2611 = vpack.c.b16 %v2605, %v2603
        %v2612 = vpack.c.b16 %v2606, %v2604
        %v2613 = vpack.c.b16 %v2609, %v2607
        %v2614 = vpack.c.b16 %v2610, %v2608
        %v2620 = vsel %vm2126, %v2594, 0
        %2622 = vmatprep.subr.bf16.mxu0 %v2612
        %2623 = vmatpush1.bf16.msra.mxu0 %v2611
        %2624 = vmatprep.subr.bf16.mxu0 %v2614
        %2625 = vmatpush1.bf16.msra.mxu0 %v2613
        %2626 = vmatprep.subr.bf16.mxu0 0
        %2627 = vmatpush1.bf16.msra.mxu0 0
        %2628 = vmatprep.subr.bf16.mxu0 0
        %2629 = vmatpush1.bf16.msra.mxu0 0
        %2630 = vmatprep.subr.bf16.mxu0 0
        %2631 = vmatpush1.bf16.msra.mxu0 0
        %2632 = vmatprep.subr.bf16.mxu0 0
        %2633 = vmatpush1.bf16.msra.mxu0 0
        %2634 = vmatprep.subr.bf16.mxu0 0
        %2635 = vmatpush1.bf16.msra.mxu0 0
        %2636 = vmatprep.subr.bf16.mxu0 0
        %2637 = vmatpush1.bf16.msra.mxu0 0
        %2638 = vmatprep.subr.bf16.mxu0 0
        %2639 = vmatpush1.bf16.msra.mxu0 0
        %2640 = vmatprep.subr.bf16.mxu0 0
        %2641 = vmatpush1.bf16.msra.mxu0 0
        %2642 = vmatprep.subr.bf16.mxu0 0
        %2643 = vmatpush1.bf16.msra.mxu0 0
        %2644 = vmatprep.subr.bf16.mxu0 0
        %2645 = vmatpush1.bf16.msra.mxu0 0
        %2646 = vmatprep.subr.bf16.mxu0 0
        %2647 = vmatpush1.bf16.msra.mxu0 0
        %2648 = vmatprep.subr.bf16.mxu0 0
        %2649 = vmatpush1.bf16.msra.mxu0 0
        %2650 = vmatprep.subr.bf16.mxu0 0
        %2651 = vmatpush1.bf16.msra.mxu0 0
        %2652 = vmatprep.subr.bf16.mxu0 0
        %2653 = vmatpush1.bf16.msra.mxu0 0
        %2654 = vmatprep.mubr.bf16.mxu0 0
        %2655 = vmatmul.mubr.bf16.gmra.mrb[0].mxu0 %v2620
        %v2656 = vpop.f32.mrb[0].mxu0
        %v2657 = vadd.f32 0.0, %v2656
        %v2658 = vpop.f32.mrb[0].mxu0
        %v2659 = vadd.f32 0.0, %v2658
        %v2660 = vpop.f32.mrb[0].mxu0
        %v2661 = vpop.f32.mrb[0].mxu0
        %2662 = vdwg.mxu0
        %v2663 = vadd.f32 %v2478, %v2657
        %v2664 = vadd.f32 %v2480, %v2659
        %2665 = vrot.lane.b32.xlu0 %v1628, 32
        %v2666 = vpop.permute.xlu0 %2665
        %2667 = vrot.lane.b32.xlu0 %v1876, 32
        %v2668 = vpop.permute.xlu0 %2667
        %v2670 = vsel %vm2126, %v2666, 0
        %v2673 = vsel %vm2126, %v2668, 0
        %2675 = vmatprep.subr.bf16.mxu0 0
        %2676 = vmatpush1.bf16.xpose.msra.mxu0 %v2673
        %2677 = vmatprep.subr.bf16.mxu0 0
        %2678 = vmatpush1.bf16.xpose.msra.mxu0 0
        %2679 = vmatprep.subr.bf16.mxu0 0
        %2680 = vmatpush1.bf16.xpose.msra.mxu0 0
        %2681 = vmatprep.subr.bf16.mxu0 0
        %2682 = vmatpush1.bf16.xpose.msra.mxu0 0
        %2683 = vmatprep.subr.bf16.mxu0 0
        %2684 = vmatpush1.bf16.xpose.msra.mxu0 0
        %2685 = vmatprep.subr.bf16.mxu0 0
        %2686 = vmatpush1.bf16.xpose.msra.mxu0 0
        %2687 = vmatprep.subr.bf16.mxu0 0
        %2688 = vmatpush1.bf16.xpose.msra.mxu0 0
        %2689 = vmatprep.subr.bf16.mxu0 0
        %2690 = vmatpush1.bf16.xpose.msra.mxu0 0
        %2691 = vmatprep.subr.bf16.mxu0 0
        %2692 = vmatpush1.bf16.xpose.msra.mxu0 0
        %2693 = vmatprep.subr.bf16.mxu0 0
        %2694 = vmatpush1.bf16.xpose.msra.mxu0 0
        %2695 = vmatprep.subr.bf16.mxu0 0
        %2696 = vmatpush1.bf16.xpose.msra.mxu0 0
        %2697 = vmatprep.subr.bf16.mxu0 0
        %2698 = vmatpush1.bf16.xpose.msra.mxu0 0
        %2699 = vmatprep.subr.bf16.mxu0 0
        %2700 = vmatpush1.bf16.xpose.msra.mxu0 0
        %2701 = vmatprep.subr.bf16.mxu0 0
        %2702 = vmatpush1.bf16.xpose.msra.mxu0 0
        %2703 = vmatprep.subr.bf16.mxu0 0
        %2704 = vmatpush1.bf16.xpose.msra.mxu0 0
        %2705 = vmatprep.subr.bf16.mxu0 0
        %2706 = vmatpush1.bf16.xpose.msra.mxu0 0
        %2707 = vmatprep.mubr.bf16.mxu0 0
        %2708 = vmatmul.mubr.bf16.gmra.mrb[0].mxu0 %v2670
        %v2709 = vpop.f32.mrb[0].mxu0
        %v2710 = vadd.f32 0.0, %v2709
        %v2711 = vpop.f32.mrb[0].mxu0
        %v2712 = vpop.f32.mrb[0].mxu0
        %v2713 = vpop.f32.mrb[0].mxu0
        %2714 = vdwg.mxu0
        %v2715 = vsel %vm2173, %v2710, -inf
        %2716 = vmax.xlane.f32.xlu0 %v2715
        %v2717 = vpop.xlane.xlu0 %2716
        %v2718 = vsub.f32 %v2710, %v2717
        %v2719 = vmul.f32 %v2718, 1.442695
        %v2720 = vpow.pop %v2719
        %v2721 = vsel %vm2173, %v2720, 0.0
        %2722 = vadd.xlane.f32.xlu0 %v2721
        %v2723 = vpop.xlane.xlu0 %2722
        %v2724 = vrcp.pop %v2723
        %v2725 = vmul.f32 %v2720, %v2724
        %v2726 = vpack.c.bf16 %v2725, %v2725
        %2727 = vrot.lane.b32.xlu0 %v2124, 32
        %v2728 = vpop.permute.xlu0 %2727
        %v2730 = vsel %vm2173, %v2726, 0
        %v2733 = vsel %vm2189, %v2728, 0
        %2735 = vmatprep.subr.bf16.mxu0 0
        %2736 = vmatpush1.bf16.msra.mxu0 %v2733
        %2737 = vmatprep.subr.bf16.mxu0 0
        %2738 = vmatpush1.bf16.msra.mxu0 0
        %2739 = vmatprep.subr.bf16.mxu0 0
        %2740 = vmatpush1.bf16.msra.mxu0 0
        %2741 = vmatprep.subr.bf16.mxu0 0
        %2742 = vmatpush1.bf16.msra.mxu0 0
        %2743 = vmatprep.subr.bf16.mxu0 0
        %2744 = vmatpush1.bf16.msra.mxu0 0
        %2745 = vmatprep.subr.bf16.mxu0 0
        %2746 = vmatpush1.bf16.msra.mxu0 0
        %2747 = vmatprep.subr.bf16.mxu0 0
        %2748 = vmatpush1.bf16.msra.mxu0 0
        %2749 = vmatprep.subr.bf16.mxu0 0
        %2750 = vmatpush1.bf16.msra.mxu0 0
        %2751 = vmatprep.subr.bf16.mxu0 0
        %2752 = vmatpush1.bf16.msra.mxu0 0
        %2753 = vmatprep.subr.bf16.mxu0 0
        %2754 = vmatpush1.bf16.msra.mxu0 0
        %2755 = vmatprep.subr.bf16.mxu0 0
        %2756 = vmatpush1.bf16.msra.mxu0 0
        %2757 = vmatprep.subr.bf16.mxu0 0
        %2758 = vmatpush1.bf16.msra.mxu0 0
        %2759 = vmatprep.subr.bf16.mxu0 0
        %2760 = vmatpush1.bf16.msra.mxu0 0
        %2761 = vmatprep.subr.bf16.mxu0 0
        %2762 = vmatpush1.bf16.msra.mxu0 0
        %2763 = vmatprep.subr.bf16.mxu0 0
        %2764 = vmatpush1.bf16.msra.mxu0 0
        %2765 = vmatprep.subr.bf16.mxu0 0
        %2766 = vmatpush1.bf16.msra.mxu0 0
        %2767 = vmatprep.mubr.bf16.mxu0 0
        %2768 = vmatmul.mubr.bf16.gmra.mrb[0].mxu0 %v2730
        %v2769 = vpop.f32.mrb[0].mxu0
        %v2770 = vadd.f32 0.0, %v2769
        %v2771 = vpop.f32.mrb[0].mxu0
        %v2772 = vpop.f32.mrb[0].mxu0
        %v2773 = vpop.f32.mrb[0].mxu0
        %2774 = vdwg.mxu0
        %v2775 = vpack.c.bf16 %v2770, %v2770
        %v2776 = vld [vmem:[#allocation17 + $0x60] sm:$0xff]
        %v2777 = vld [vmem:[#allocation17 + $0x68] sm:$0xff]
        %v2778 = vld [vmem:[#allocation17 + $0x70] sm:$0xff]
        %v2779 = vld [vmem:[#allocation17 + $0x78] sm:$0xff]
        %v2784 = vunpack.c.l.b16 %v2776
        %v2785 = vunpack.c.h.b16 %v2776
        %v2786 = vunpack.c.l.b16 %v2777
        %v2787 = vunpack.c.h.b16 %v2777
        %v2788 = vunpack.c.l.b16 %v2778
        %v2789 = vunpack.c.h.b16 %v2778
        %v2790 = vunpack.c.l.b16 %v2779
        %v2791 = vunpack.c.h.b16 %v2779
        %v2792 = vpack.c.b16 %v2786, %v2784
        %v2793 = vpack.c.b16 %v2787, %v2785
        %v2794 = vpack.c.b16 %v2790, %v2788
        %v2795 = vpack.c.b16 %v2791, %v2789
        %v2801 = vsel %vm2126, %v2775, 0
        %2803 = vmatprep.subr.bf16.mxu0 %v2793
        %2804 = vmatpush1.bf16.msra.mxu0 %v2792
        %2805 = vmatprep.subr.bf16.mxu0 %v2795
        %2806 = vmatpush1.bf16.msra.mxu0 %v2794
        %2807 = vmatprep.subr.bf16.mxu0 0
        %2808 = vmatpush1.bf16.msra.mxu0 0
        %2809 = vmatprep.subr.bf16.mxu0 0
        %2810 = vmatpush1.bf16.msra.mxu0 0
        %2811 = vmatprep.subr.bf16.mxu0 0
        %2812 = vmatpush1.bf16.msra.mxu0 0
        %2813 = vmatprep.subr.bf16.mxu0 0
        %2814 = vmatpush1.bf16.msra.mxu0 0
        %2815 = vmatprep.subr.bf16.mxu0 0
        %2816 = vmatpush1.bf16.msra.mxu0 0
        %2817 = vmatprep.subr.bf16.mxu0 0
        %2818 = vmatpush1.bf16.msra.mxu0 0
        %2819 = vmatprep.subr.bf16.mxu0 0
        %2820 = vmatpush1.bf16.msra.mxu0 0
        %2821 = vmatprep.subr.bf16.mxu0 0
        %2822 = vmatpush1.bf16.msra.mxu0 0
        %2823 = vmatprep.subr.bf16.mxu0 0
        %2824 = vmatpush1.bf16.msra.mxu0 0
        %2825 = vmatprep.subr.bf16.mxu0 0
        %2826 = vmatpush1.bf16.msra.mxu0 0
        %2827 = vmatprep.subr.bf16.mxu0 0
        %2828 = vmatpush1.bf16.msra.mxu0 0
        %2829 = vmatprep.subr.bf16.mxu0 0
        %2830 = vmatpush1.bf16.msra.mxu0 0
        %2831 = vmatprep.subr.bf16.mxu0 0
        %2832 = vmatpush1.bf16.msra.mxu0 0
        %2833 = vmatprep.subr.bf16.mxu0 0
        %2834 = vmatpush1.bf16.msra.mxu0 0
        %2835 = vmatprep.mubr.bf16.mxu0 0
        %2836 = vmatmul.mubr.bf16.gmra.mrb[0].mxu0 %v2801
        %v2837 = vpop.f32.mrb[0].mxu0
        %v2838 = vadd.f32 0.0, %v2837
        %v2839 = vpop.f32.mrb[0].mxu0
        %v2840 = vadd.f32 0.0, %v2839
        %v2841 = vpop.f32.mrb[0].mxu0
        %v2842 = vpop.f32.mrb[0].mxu0
        %2843 = vdwg.mxu0
        %v2844 = vadd.f32 %v2663, %v2838
        %v2845 = vadd.f32 %v2664, %v2840
        %v2847 = vsel %vm2126, %v1629, 0
        %v2850 = vsel %vm2126, %v1877, 0
        %2852 = vmatprep.subr.bf16.mxu0 0
        %2853 = vmatpush1.bf16.xpose.msra.mxu0 %v2850
        %2854 = vmatprep.subr.bf16.mxu0 0
        %2855 = vmatpush1.bf16.xpose.msra.mxu0 0
        %2856 = vmatprep.subr.bf16.mxu0 0
        %2857 = vmatpush1.bf16.xpose.msra.mxu0 0
        %2858 = vmatprep.subr.bf16.mxu0 0
        %2859 = vmatpush1.bf16.xpose.msra.mxu0 0
        %2860 = vmatprep.subr.bf16.mxu0 0
        %2861 = vmatpush1.bf16.xpose.msra.mxu0 0
        %2862 = vmatprep.subr.bf16.mxu0 0
        %2863 = vmatpush1.bf16.xpose.msra.mxu0 0
        %2864 = vmatprep.subr.bf16.mxu0 0
        %2865 = vmatpush1.bf16.xpose.msra.mxu0 0
        %2866 = vmatprep.subr.bf16.mxu0 0
        %2867 = vmatpush1.bf16.xpose.msra.mxu0 0
        %2868 = vmatprep.subr.bf16.mxu0 0
        %2869 = vmatpush1.bf16.xpose.msra.mxu0 0
        %2870 = vmatprep.subr.bf16.mxu0 0
        %2871 = vmatpush1.bf16.xpose.msra.mxu0 0
        %2872 = vmatprep.subr.bf16.mxu0 0
        %2873 = vmatpush1.bf16.xpose.msra.mxu0 0
        %2874 = vmatprep.subr.bf16.mxu0 0
        %2875 = vmatpush1.bf16.xpose.msra.mxu0 0
        %2876 = vmatprep.subr.bf16.mxu0 0
        %2877 = vmatpush1.bf16.xpose.msra.mxu0 0
        %2878 = vmatprep.subr.bf16.mxu0 0
        %2879 = vmatpush1.bf16.xpose.msra.mxu0 0
        %2880 = vmatprep.subr.bf16.mxu0 0
        %2881 = vmatpush1.bf16.xpose.msra.mxu0 0
        %2882 = vmatprep.subr.bf16.mxu0 0
        %2883 = vmatpush1.bf16.xpose.msra.mxu0 0
        %2884 = vmatprep.mubr.bf16.mxu0 0
        %2885 = vmatmul.mubr.bf16.gmra.mrb[0].mxu0 %v2847
        %v2886 = vpop.f32.mrb[0].mxu0
        %v2887 = vadd.f32 0.0, %v2886
        %v2888 = vpop.f32.mrb[0].mxu0
        %v2889 = vpop.f32.mrb[0].mxu0
        %v2890 = vpop.f32.mrb[0].mxu0
        %2891 = vdwg.mxu0
        %v2892 = vsel %vm2173, %v2887, -inf
        %2893 = vmax.xlane.f32.xlu0 %v2892
        %v2894 = vpop.xlane.xlu0 %2893
        %v2895 = vsub.f32 %v2887, %v2894
        %v2896 = vmul.f32 %v2895, 1.442695
        %v2897 = vpow.pop %v2896
        %v2898 = vsel %vm2173, %v2897, 0.0
        %2899 = vadd.xlane.f32.xlu0 %v2898
        %v2900 = vpop.xlane.xlu0 %2899
        %v2901 = vrcp.pop %v2900
        %v2902 = vmul.f32 %v2897, %v2901
        %v2903 = vpack.c.bf16 %v2902, %v2902
        %v2905 = vsel %vm2173, %v2903, 0
        %v2908 = vsel %vm2189, %v2125, 0
        %2910 = vmatprep.subr.bf16.mxu0 0
        %2911 = vmatpush1.bf16.msra.mxu0 %v2908
        %2912 = vmatprep.subr.bf16.mxu0 0
        %2913 = vmatpush1.bf16.msra.mxu0 0
        %2914 = vmatprep.subr.bf16.mxu0 0
        %2915 = vmatpush1.bf16.msra.mxu0 0
        %2916 = vmatprep.subr.bf16.mxu0 0
        %2917 = vmatpush1.bf16.msra.mxu0 0
        %2918 = vmatprep.subr.bf16.mxu0 0
        %2919 = vmatpush1.bf16.msra.mxu0 0
        %2920 = vmatprep.subr.bf16.mxu0 0
        %2921 = vmatpush1.bf16.msra.mxu0 0
        %2922 = vmatprep.subr.bf16.mxu0 0
        %2923 = vmatpush1.bf16.msra.mxu0 0
        %2924 = vmatprep.subr.bf16.mxu0 0
        %2925 = vmatpush1.bf16.msra.mxu0 0
        %2926 = vmatprep.subr.bf16.mxu0 0
        %2927 = vmatpush1.bf16.msra.mxu0 0
        %2928 = vmatprep.subr.bf16.mxu0 0
        %2929 = vmatpush1.bf16.msra.mxu0 0
        %2930 = vmatprep.subr.bf16.mxu0 0
        %2931 = vmatpush1.bf16.msra.mxu0 0
        %2932 = vmatprep.subr.bf16.mxu0 0
        %2933 = vmatpush1.bf16.msra.mxu0 0
        %2934 = vmatprep.subr.bf16.mxu0 0
        %2935 = vmatpush1.bf16.msra.mxu0 0
        %2936 = vmatprep.subr.bf16.mxu0 0
        %2937 = vmatpush1.bf16.msra.mxu0 0
        %2938 = vmatprep.subr.bf16.mxu0 0
        %2939 = vmatpush1.bf16.msra.mxu0 0
        %2940 = vmatprep.subr.bf16.mxu0 0
        %2941 = vmatpush1.bf16.msra.mxu0 0
        %2942 = vmatprep.mubr.bf16.mxu0 0
        %2943 = vmatmul.mubr.bf16.gmra.mrb[0].mxu0 %v2905
        %v2944 = vpop.f32.mrb[0].mxu0
        %v2945 = vadd.f32 0.0, %v2944
        %v2946 = vpop.f32.mrb[0].mxu0
        %v2947 = vpop.f32.mrb[0].mxu0
        %v2948 = vpop.f32.mrb[0].mxu0
        %2949 = vdwg.mxu0
        %v2950 = vpack.c.bf16 %v2945, %v2945
        %v2951 = vld [vmem:[#allocation17 + $0x80] sm:$0xff]
        %v2952 = vld [vmem:[#allocation17 + $0x88] sm:$0xff]
        %v2953 = vld [vmem:[#allocation17 + $0x90] sm:$0xff]
        %v2954 = vld [vmem:[#allocation17 + $0x98] sm:$0xff]
        %v2959 = vunpack.c.l.b16 %v2951
        %v2960 = vunpack.c.h.b16 %v2951
        %v2961 = vunpack.c.l.b16 %v2952
        %v2962 = vunpack.c.h.b16 %v2952
        %v2963 = vunpack.c.l.b16 %v2953
        %v2964 = vunpack.c.h.b16 %v2953
        %v2965 = vunpack.c.l.b16 %v2954
        %v2966 = vunpack.c.h.b16 %v2954
        %v2967 = vpack.c.b16 %v2961, %v2959
        %v2968 = vpack.c.b16 %v2962, %v2960
        %v2969 = vpack.c.b16 %v2965, %v2963
        %v2970 = vpack.c.b16 %v2966, %v2964
        %v2976 = vsel %vm2126, %v2950, 0
        %2978 = vmatprep.subr.bf16.mxu0 %v2968
        %2979 = vmatpush1.bf16.msra.mxu0 %v2967
        %2980 = vmatprep.subr.bf16.mxu0 %v2970
        %2981 = vmatpush1.bf16.msra.mxu0 %v2969
        %2982 = vmatprep.subr.bf16.mxu0 0
        %2983 = vmatpush1.bf16.msra.mxu0 0
        %2984 = vmatprep.subr.bf16.mxu0 0
        %2985 = vmatpush1.bf16.msra.mxu0 0
        %2986 = vmatprep.subr.bf16.mxu0 0
        %2987 = vmatpush1.bf16.msra.mxu0 0
        %2988 = vmatprep.subr.bf16.mxu0 0
        %2989 = vmatpush1.bf16.msra.mxu0 0
        %2990 = vmatprep.subr.bf16.mxu0 0
        %2991 = vmatpush1.bf16.msra.mxu0 0
        %2992 = vmatprep.subr.bf16.mxu0 0
        %2993 = vmatpush1.bf16.msra.mxu0 0
        %2994 = vmatprep.subr.bf16.mxu0 0
        %2995 = vmatpush1.bf16.msra.mxu0 0
        %2996 = vmatprep.subr.bf16.mxu0 0
        %2997 = vmatpush1.bf16.msra.mxu0 0
        %2998 = vmatprep.subr.bf16.mxu0 0
        %2999 = vmatpush1.bf16.msra.mxu0 0
        %3000 = vmatprep.subr.bf16.mxu0 0
        %3001 = vmatpush1.bf16.msra.mxu0 0
        %3002 = vmatprep.subr.bf16.mxu0 0
        %3003 = vmatpush1.bf16.msra.mxu0 0
        %3004 = vmatprep.subr.bf16.mxu0 0
        %3005 = vmatpush1.bf16.msra.mxu0 0
        %3006 = vmatprep.subr.bf16.mxu0 0
        %3007 = vmatpush1.bf16.msra.mxu0 0
        %3008 = vmatprep.subr.bf16.mxu0 0
        %3009 = vmatpush1.bf16.msra.mxu0 0
        %3010 = vmatprep.mubr.bf16.mxu0 0
        %3011 = vmatmul.mubr.bf16.gmra.mrb[0].mxu0 %v2976
        %v3012 = vpop.f32.mrb[0].mxu0
        %v3013 = vadd.f32 0.0, %v3012
        %v3014 = vpop.f32.mrb[0].mxu0
        %v3015 = vadd.f32 0.0, %v3014
        %v3016 = vpop.f32.mrb[0].mxu0
        %v3017 = vpop.f32.mrb[0].mxu0
        %3018 = vdwg.mxu0
        %v3019 = vadd.f32 %v2844, %v3013
        %v3020 = vadd.f32 %v2845, %v3015
        %3022 = vrot.lane.b32.xlu0 %v1629, 96
        %v3023 = vpop.permute.xlu0 %3022
        %3025 = vrot.lane.b32.xlu0 %v1877, 96
        %v3026 = vpop.permute.xlu0 %3025
        %v3028 = vsel %vm2126, %v3023, 0
        %v3031 = vsel %vm2126, %v3026, 0
        %3033 = vmatprep.subr.bf16.mxu0 0
        %3034 = vmatpush1.bf16.xpose.msra.mxu0 %v3031
        %3035 = vmatprep.subr.bf16.mxu0 0
        %3036 = vmatpush1.bf16.xpose.msra.mxu0 0
        %3037 = vmatprep.subr.bf16.mxu0 0
        %3038 = vmatpush1.bf16.xpose.msra.mxu0 0
        %3039 = vmatprep.subr.bf16.mxu0 0
        %3040 = vmatpush1.bf16.xpose.msra.mxu0 0
        %3041 = vmatprep.subr.bf16.mxu0 0
        %3042 = vmatpush1.bf16.xpose.msra.mxu0 0
        %3043 = vmatprep.subr.bf16.mxu0 0
        %3044 = vmatpush1.bf16.xpose.msra.mxu0 0
        %3045 = vmatprep.subr.bf16.mxu0 0
        %3046 = vmatpush1.bf16.xpose.msra.mxu0 0
        %3047 = vmatprep.subr.bf16.mxu0 0
        %3048 = vmatpush1.bf16.xpose.msra.mxu0 0
        %3049 = vmatprep.subr.bf16.mxu0 0
        %3050 = vmatpush1.bf16.xpose.msra.mxu0 0
        %3051 = vmatprep.subr.bf16.mxu0 0
        %3052 = vmatpush1.bf16.xpose.msra.mxu0 0
        %3053 = vmatprep.subr.bf16.mxu0 0
        %3054 = vmatpush1.bf16.xpose.msra.mxu0 0
        %3055 = vmatprep.subr.bf16.mxu0 0
        %3056 = vmatpush1.bf16.xpose.msra.mxu0 0
        %3057 = vmatprep.subr.bf16.mxu0 0
        %3058 = vmatpush1.bf16.xpose.msra.mxu0 0
        %3059 = vmatprep.subr.bf16.mxu0 0
        %3060 = vmatpush1.bf16.xpose.msra.mxu0 0
        %3061 = vmatprep.subr.bf16.mxu0 0
        %3062 = vmatpush1.bf16.xpose.msra.mxu0 0
        %3063 = vmatprep.subr.bf16.mxu0 0
        %3064 = vmatpush1.bf16.xpose.msra.mxu0 0
        %3065 = vmatprep.mubr.bf16.mxu0 0
        %3066 = vmatmul.mubr.bf16.gmra.mrb[0].mxu0 %v3028
        %v3067 = vpop.f32.mrb[0].mxu0
        %v3068 = vadd.f32 0.0, %v3067
        %v3069 = vpop.f32.mrb[0].mxu0
        %v3070 = vpop.f32.mrb[0].mxu0
        %v3071 = vpop.f32.mrb[0].mxu0
        %3072 = vdwg.mxu0
        %v3073 = vsel %vm2173, %v3068, -inf
        %3074 = vmax.xlane.f32.xlu0 %v3073
        %v3075 = vpop.xlane.xlu0 %3074
        %v3076 = vsub.f32 %v3068, %v3075
        %v3077 = vmul.f32 %v3076, 1.442695
        %v3078 = vpow.pop %v3077
        %v3079 = vsel %vm2173, %v3078, 0.0
        %3080 = vadd.xlane.f32.xlu0 %v3079
        %v3081 = vpop.xlane.xlu0 %3080
        %v3082 = vrcp.pop %v3081
        %v3083 = vmul.f32 %v3078, %v3082
        %v3084 = vpack.c.bf16 %v3083, %v3083
        %3086 = vrot.lane.b32.xlu0 %v2125, 96
        %v3087 = vpop.permute.xlu0 %3086
        %v3089 = vsel %vm2173, %v3084, 0
        %v3092 = vsel %vm2189, %v3087, 0
        %3094 = vmatprep.subr.bf16.mxu0 0
        %3095 = vmatpush1.bf16.msra.mxu0 %v3092
        %3096 = vmatprep.subr.bf16.mxu0 0
        %3097 = vmatpush1.bf16.msra.mxu0 0
        %3098 = vmatprep.subr.bf16.mxu0 0
        %3099 = vmatpush1.bf16.msra.mxu0 0
        %3100 = vmatprep.subr.bf16.mxu0 0
        %3101 = vmatpush1.bf16.msra.mxu0 0
        %3102 = vmatprep.subr.bf16.mxu0 0
        %3103 = vmatpush1.bf16.msra.mxu0 0
        %3104 = vmatprep.subr.bf16.mxu0 0
        %3105 = vmatpush1.bf16.msra.mxu0 0
        %3106 = vmatprep.subr.bf16.mxu0 0
        %3107 = vmatpush1.bf16.msra.mxu0 0
        %3108 = vmatprep.subr.bf16.mxu0 0
        %3109 = vmatpush1.bf16.msra.mxu0 0
        %3110 = vmatprep.subr.bf16.mxu0 0
        %3111 = vmatpush1.bf16.msra.mxu0 0
        %3112 = vmatprep.subr.bf16.mxu0 0
        %3113 = vmatpush1.bf16.msra.mxu0 0
        %3114 = vmatprep.subr.bf16.mxu0 0
        %3115 = vmatpush1.bf16.msra.mxu0 0
        %3116 = vmatprep.subr.bf16.mxu0 0
        %3117 = vmatpush1.bf16.msra.mxu0 0
        %3118 = vmatprep.subr.bf16.mxu0 0
        %3119 = vmatpush1.bf16.msra.mxu0 0
        %3120 = vmatprep.subr.bf16.mxu0 0
        %3121 = vmatpush1.bf16.msra.mxu0 0
        %3122 = vmatprep.subr.bf16.mxu0 0
        %3123 = vmatpush1.bf16.msra.mxu0 0
        %3124 = vmatprep.subr.bf16.mxu0 0
        %3125 = vmatpush1.bf16.msra.mxu0 0
        %3126 = vmatprep.mubr.bf16.mxu0 0
        %3127 = vmatmul.mubr.bf16.gmra.mrb[0].mxu0 %v3089
        %v3128 = vpop.f32.mrb[0].mxu0
        %v3129 = vadd.f32 0.0, %v3128
        %v3130 = vpop.f32.mrb[0].mxu0
        %v3131 = vpop.f32.mrb[0].mxu0
        %v3132 = vpop.f32.mrb[0].mxu0
        %3133 = vdwg.mxu0
        %v3134 = vpack.c.bf16 %v3129, %v3129
        %v3135 = vld [vmem:[#allocation17 + $0xa0] sm:$0xff]
        %v3136 = vld [vmem:[#allocation17 + $0xa8] sm:$0xff]
        %v3137 = vld [vmem:[#allocation17 + $0xb0] sm:$0xff]
        %v3138 = vld [vmem:[#allocation17 + $0xb8] sm:$0xff]
        %v3143 = vunpack.c.l.b16 %v3135
        %v3144 = vunpack.c.h.b16 %v3135
        %v3145 = vunpack.c.l.b16 %v3136
        %v3146 = vunpack.c.h.b16 %v3136
        %v3147 = vunpack.c.l.b16 %v3137
        %v3148 = vunpack.c.h.b16 %v3137
        %v3149 = vunpack.c.l.b16 %v3138
        %v3150 = vunpack.c.h.b16 %v3138
        %v3151 = vpack.c.b16 %v3145, %v3143
        %v3152 = vpack.c.b16 %v3146, %v3144
        %v3153 = vpack.c.b16 %v3149, %v3147
        %v3154 = vpack.c.b16 %v3150, %v3148
        %v3160 = vsel %vm2126, %v3134, 0
        %3162 = vmatprep.subr.bf16.mxu0 %v3152
        %3163 = vmatpush1.bf16.msra.mxu0 %v3151
        %3164 = vmatprep.subr.bf16.mxu0 %v3154
        %3165 = vmatpush1.bf16.msra.mxu0 %v3153
        %3166 = vmatprep.subr.bf16.mxu0 0
        %3167 = vmatpush1.bf16.msra.mxu0 0
        %3168 = vmatprep.subr.bf16.mxu0 0
        %3169 = vmatpush1.bf16.msra.mxu0 0
        %3170 = vmatprep.subr.bf16.mxu0 0
        %3171 = vmatpush1.bf16.msra.mxu0 0
        %3172 = vmatprep.subr.bf16.mxu0 0
        %3173 = vmatpush1.bf16.msra.mxu0 0
        %3174 = vmatprep.subr.bf16.mxu0 0
        %3175 = vmatpush1.bf16.msra.mxu0 0
        %3176 = vmatprep.subr.bf16.mxu0 0
        %3177 = vmatpush1.bf16.msra.mxu0 0
        %3178 = vmatprep.subr.bf16.mxu0 0
        %3179 = vmatpush1.bf16.msra.mxu0 0
        %3180 = vmatprep.subr.bf16.mxu0 0
        %3181 = vmatpush1.bf16.msra.mxu0 0
        %3182 = vmatprep.subr.bf16.mxu0 0
        %3183 = vmatpush1.bf16.msra.mxu0 0
        %3184 = vmatprep.subr.bf16.mxu0 0
        %3185 = vmatpush1.bf16.msra.mxu0 0
        %3186 = vmatprep.subr.bf16.mxu0 0
        %3187 = vmatpush1.bf16.msra.mxu0 0
        %3188 = vmatprep.subr.bf16.mxu0 0
        %3189 = vmatpush1.bf16.msra.mxu0 0
        %3190 = vmatprep.subr.bf16.mxu0 0
        %3191 = vmatpush1.bf16.msra.mxu0 0
        %3192 = vmatprep.subr.bf16.mxu0 0
        %3193 = vmatpush1.bf16.msra.mxu0 0
        %3194 = vmatprep.mubr.bf16.mxu0 0
        %3195 = vmatmul.mubr.bf16.gmra.mrb[0].mxu0 %v3160
        %v3196 = vpop.f32.mrb[0].mxu0
        %v3197 = vadd.f32 0.0, %v3196
        %v3198 = vpop.f32.mrb[0].mxu0
        %v3199 = vadd.f32 0.0, %v3198
        %v3200 = vpop.f32.mrb[0].mxu0
        %v3201 = vpop.f32.mrb[0].mxu0
        %3202 = vdwg.mxu0
        %v3203 = vadd.f32 %v3019, %v3197
        %v3204 = vadd.f32 %v3020, %v3199
        %3205 = vrot.lane.b32.xlu0 %v1629, 64
        %v3206 = vpop.permute.xlu0 %3205
        %3207 = vrot.lane.b32.xlu0 %v1877, 64
        %v3208 = vpop.permute.xlu0 %3207
        %v3210 = vsel %vm2126, %v3206, 0
        %v3213 = vsel %vm2126, %v3208, 0
        %3215 = vmatprep.subr.bf16.mxu0 0
        %3216 = vmatpush1.bf16.xpose.msra.mxu0 %v3213
        %3217 = vmatprep.subr.bf16.mxu0 0
        %3218 = vmatpush1.bf16.xpose.msra.mxu0 0
        %3219 = vmatprep.subr.bf16.mxu0 0
        %3220 = vmatpush1.bf16.xpose.msra.mxu0 0
        %3221 = vmatprep.subr.bf16.mxu0 0
        %3222 = vmatpush1.bf16.xpose.msra.mxu0 0
        %3223 = vmatprep.subr.bf16.mxu0 0
        %3224 = vmatpush1.bf16.xpose.msra.mxu0 0
        %3225 = vmatprep.subr.bf16.mxu0 0
        %3226 = vmatpush1.bf16.xpose.msra.mxu0 0
        %3227 = vmatprep.subr.bf16.mxu0 0
        %3228 = vmatpush1.bf16.xpose.msra.mxu0 0
        %3229 = vmatprep.subr.bf16.mxu0 0
        %3230 = vmatpush1.bf16.xpose.msra.mxu0 0
        %3231 = vmatprep.subr.bf16.mxu0 0
        %3232 = vmatpush1.bf16.xpose.msra.mxu0 0
        %3233 = vmatprep.subr.bf16.mxu0 0
        %3234 = vmatpush1.bf16.xpose.msra.mxu0 0
        %3235 = vmatprep.subr.bf16.mxu0 0
        %3236 = vmatpush1.bf16.xpose.msra.mxu0 0
        %3237 = vmatprep.subr.bf16.mxu0 0
        %3238 = vmatpush1.bf16.xpose.msra.mxu0 0
        %3239 = vmatprep.subr.bf16.mxu0 0
        %3240 = vmatpush1.bf16.xpose.msra.mxu0 0
        %3241 = vmatprep.subr.bf16.mxu0 0
        %3242 = vmatpush1.bf16.xpose.msra.mxu0 0
        %3243 = vmatprep.subr.bf16.mxu0 0
        %3244 = vmatpush1.bf16.xpose.msra.mxu0 0
        %3245 = vmatprep.subr.bf16.mxu0 0
        %3246 = vmatpush1.bf16.xpose.msra.mxu0 0
        %3247 = vmatprep.mubr.bf16.mxu0 0
        %3248 = vmatmul.mubr.bf16.gmra.mrb[0].mxu0 %v3210
        %v3249 = vpop.f32.mrb[0].mxu0
        %v3250 = vadd.f32 0.0, %v3249
        %v3251 = vpop.f32.mrb[0].mxu0
        %v3252 = vpop.f32.mrb[0].mxu0
        %v3253 = vpop.f32.mrb[0].mxu0
        %3254 = vdwg.mxu0
        %v3255 = vsel %vm2173, %v3250, -inf
        %3256 = vmax.xlane.f32.xlu0 %v3255
        %v3257 = vpop.xlane.xlu0 %3256
        %v3258 = vsub.f32 %v3250, %v3257
        %v3259 = vmul.f32 %v3258, 1.442695
        %v3260 = vpow.pop %v3259
        %v3261 = vsel %vm2173, %v3260, 0.0
        %3262 = vadd.xlane.f32.xlu0 %v3261
        %v3263 = vpop.xlane.xlu0 %3262
        %v3264 = vrcp.pop %v3263
        %v3265 = vmul.f32 %v3260, %v3264
        %v3266 = vpack.c.bf16 %v3265, %v3265
        %3267 = vrot.lane.b32.xlu0 %v2125, 64
        %v3268 = vpop.permute.xlu0 %3267
        %v3270 = vsel %vm2173, %v3266, 0
        %v3273 = vsel %vm2189, %v3268, 0
        %3275 = vmatprep.subr.bf16.mxu0 0
        %3276 = vmatpush1.bf16.msra.mxu0 %v3273
        %3277 = vmatprep.subr.bf16.mxu0 0
        %3278 = vmatpush1.bf16.msra.mxu0 0
        %3279 = vmatprep.subr.bf16.mxu0 0
        %3280 = vmatpush1.bf16.msra.mxu0 0
        %3281 = vmatprep.subr.bf16.mxu0 0
        %3282 = vmatpush1.bf16.msra.mxu0 0
        %3283 = vmatprep.subr.bf16.mxu0 0
        %3284 = vmatpush1.bf16.msra.mxu0 0
        %3285 = vmatprep.subr.bf16.mxu0 0
        %3286 = vmatpush1.bf16.msra.mxu0 0
        %3287 = vmatprep.subr.bf16.mxu0 0
        %3288 = vmatpush1.bf16.msra.mxu0 0
        %3289 = vmatprep.subr.bf16.mxu0 0
        %3290 = vmatpush1.bf16.msra.mxu0 0
        %3291 = vmatprep.subr.bf16.mxu0 0
        %3292 = vmatpush1.bf16.msra.mxu0 0
        %3293 = vmatprep.subr.bf16.mxu0 0
        %3294 = vmatpush1.bf16.msra.mxu0 0
        %3295 = vmatprep.subr.bf16.mxu0 0
        %3296 = vmatpush1.bf16.msra.mxu0 0
        %3297 = vmatprep.subr.bf16.mxu0 0
        %3298 = vmatpush1.bf16.msra.mxu0 0
        %3299 = vmatprep.subr.bf16.mxu0 0
        %3300 = vmatpush1.bf16.msra.mxu0 0
        %3301 = vmatprep.subr.bf16.mxu0 0
        %3302 = vmatpush1.bf16.msra.mxu0 0
        %3303 = vmatprep.subr.bf16.mxu0 0
        %3304 = vmatpush1.bf16.msra.mxu0 0
        %3305 = vmatprep.subr.bf16.mxu0 0
        %3306 = vmatpush1.bf16.msra.mxu0 0
        %3307 = vmatprep.mubr.bf16.mxu0 0
        %3308 = vmatmul.mubr.bf16.gmra.mrb[0].mxu0 %v3270
        %v3309 = vpop.f32.mrb[0].mxu0
        %v3310 = vadd.f32 0.0, %v3309
        %v3311 = vpop.f32.mrb[0].mxu0
        %v3312 = vpop.f32.mrb[0].mxu0
        %v3313 = vpop.f32.mrb[0].mxu0
        %3314 = vdwg.mxu0
        %v3315 = vpack.c.bf16 %v3310, %v3310
        %v3316 = vld [vmem:[#allocation17 + $0xc0] sm:$0xff]
        %v3317 = vld [vmem:[#allocation17 + $0xc8] sm:$0xff]
        %v3318 = vld [vmem:[#allocation17 + $0xd0] sm:$0xff]
        %v3319 = vld [vmem:[#allocation17 + $0xd8] sm:$0xff]
        %v3324 = vunpack.c.l.b16 %v3316
        %v3325 = vunpack.c.h.b16 %v3316
        %v3326 = vunpack.c.l.b16 %v3317
        %v3327 = vunpack.c.h.b16 %v3317
        %v3328 = vunpack.c.l.b16 %v3318
        %v3329 = vunpack.c.h.b16 %v3318
        %v3330 = vunpack.c.l.b16 %v3319
        %v3331 = vunpack.c.h.b16 %v3319
        %v3332 = vpack.c.b16 %v3326, %v3324
        %v3333 = vpack.c.b16 %v3327, %v3325
        %v3334 = vpack.c.b16 %v3330, %v3328
        %v3335 = vpack.c.b16 %v3331, %v3329
        %v3341 = vsel %vm2126, %v3315, 0
        %3343 = vmatprep.subr.bf16.mxu0 %v3333
        %3344 = vmatpush1.bf16.msra.mxu0 %v3332
        %3345 = vmatprep.subr.bf16.mxu0 %v3335
        %3346 = vmatpush1.bf16.msra.mxu0 %v3334
        %3347 = vmatprep.subr.bf16.mxu0 0
        %3348 = vmatpush1.bf16.msra.mxu0 0
        %3349 = vmatprep.subr.bf16.mxu0 0
        %3350 = vmatpush1.bf16.msra.mxu0 0
        %3351 = vmatprep.subr.bf16.mxu0 0
        %3352 = vmatpush1.bf16.msra.mxu0 0
        %3353 = vmatprep.subr.bf16.mxu0 0
        %3354 = vmatpush1.bf16.msra.mxu0 0
        %3355 = vmatprep.subr.bf16.mxu0 0
        %3356 = vmatpush1.bf16.msra.mxu0 0
        %3357 = vmatprep.subr.bf16.mxu0 0
        %3358 = vmatpush1.bf16.msra.mxu0 0
        %3359 = vmatprep.subr.bf16.mxu0 0
        %3360 = vmatpush1.bf16.msra.mxu0 0
        %3361 = vmatprep.subr.bf16.mxu0 0
        %3362 = vmatpush1.bf16.msra.mxu0 0
        %3363 = vmatprep.subr.bf16.mxu0 0
        %3364 = vmatpush1.bf16.msra.mxu0 0
        %3365 = vmatprep.subr.bf16.mxu0 0
        %3366 = vmatpush1.bf16.msra.mxu0 0
        %3367 = vmatprep.subr.bf16.mxu0 0
        %3368 = vmatpush1.bf16.msra.mxu0 0
        %3369 = vmatprep.subr.bf16.mxu0 0
        %3370 = vmatpush1.bf16.msra.mxu0 0
        %3371 = vmatprep.subr.bf16.mxu0 0
        %3372 = vmatpush1.bf16.msra.mxu0 0
        %3373 = vmatprep.subr.bf16.mxu0 0
        %3374 = vmatpush1.bf16.msra.mxu0 0
        %3375 = vmatprep.mubr.bf16.mxu0 0
        %3376 = vmatmul.mubr.bf16.gmra.mrb[0].mxu0 %v3341
        %v3377 = vpop.f32.mrb[0].mxu0
        %v3378 = vadd.f32 0.0, %v3377
        %v3379 = vpop.f32.mrb[0].mxu0
        %v3380 = vadd.f32 0.0, %v3379
        %v3381 = vpop.f32.mrb[0].mxu0
        %v3382 = vpop.f32.mrb[0].mxu0
        %3383 = vdwg.mxu0
        %v3384 = vadd.f32 %v3203, %v3378
        %v3385 = vadd.f32 %v3204, %v3380
        %3386 = vrot.lane.b32.xlu0 %v1629, 32
        %v3387 = vpop.permute.xlu0 %3386
        %3388 = vrot.lane.b32.xlu0 %v1877, 32
        %v3389 = vpop.permute.xlu0 %3388
        %v3391 = vsel %vm2126, %v3387, 0
        %v3394 = vsel %vm2126, %v3389, 0
        %3396 = vmatprep.subr.bf16.mxu0 0
        %3397 = vmatpush1.bf16.xpose.msra.mxu0 %v3394
        %3398 = vmatprep.subr.bf16.mxu0 0
        %3399 = vmatpush1.bf16.xpose.msra.mxu0 0
        %3400 = vmatprep.subr.bf16.mxu0 0
        %3401 = vmatpush1.bf16.xpose.msra.mxu0 0
        %3402 = vmatprep.subr.bf16.mxu0 0
        %3403 = vmatpush1.bf16.xpose.msra.mxu0 0
        %3404 = vmatprep.subr.bf16.mxu0 0
        %3405 = vmatpush1.bf16.xpose.msra.mxu0 0
        %3406 = vmatprep.subr.bf16.mxu0 0
        %3407 = vmatpush1.bf16.xpose.msra.mxu0 0
        %3408 = vmatprep.subr.bf16.mxu0 0
        %3409 = vmatpush1.bf16.xpose.msra.mxu0 0
        %3410 = vmatprep.subr.bf16.mxu0 0
        %3411 = vmatpush1.bf16.xpose.msra.mxu0 0
        %3412 = vmatprep.subr.bf16.mxu0 0
        %3413 = vmatpush1.bf16.xpose.msra.mxu0 0
        %3414 = vmatprep.subr.bf16.mxu0 0
        %3415 = vmatpush1.bf16.xpose.msra.mxu0 0
        %3416 = vmatprep.subr.bf16.mxu0 0
        %3417 = vmatpush1.bf16.xpose.msra.mxu0 0
        %3418 = vmatprep.subr.bf16.mxu0 0
        %3419 = vmatpush1.bf16.xpose.msra.mxu0 0
        %3420 = vmatprep.subr.bf16.mxu0 0
        %3421 = vmatpush1.bf16.xpose.msra.mxu0 0
        %3422 = vmatprep.subr.bf16.mxu0 0
        %3423 = vmatpush1.bf16.xpose.msra.mxu0 0
        %3424 = vmatprep.subr.bf16.mxu0 0
        %3425 = vmatpush1.bf16.xpose.msra.mxu0 0
        %3426 = vmatprep.subr.bf16.mxu0 0
        %3427 = vmatpush1.bf16.xpose.msra.mxu0 0
        %3428 = vmatprep.mubr.bf16.mxu0 0
        %3429 = vmatmul.mubr.bf16.gmra.mrb[0].mxu0 %v3391
        %v3430 = vpop.f32.mrb[0].mxu0
        %v3431 = vadd.f32 0.0, %v3430
        %v3432 = vpop.f32.mrb[0].mxu0
        %v3433 = vpop.f32.mrb[0].mxu0
        %v3434 = vpop.f32.mrb[0].mxu0
        %3435 = vdwg.mxu0
        %v3436 = vsel %vm2173, %v3431, -inf
        %3437 = vmax.xlane.f32.xlu0 %v3436
        %v3438 = vpop.xlane.xlu0 %3437
        %v3439 = vsub.f32 %v3431, %v3438
        %v3440 = vmul.f32 %v3439, 1.442695
        %v3441 = vpow.pop %v3440
        %v3442 = vsel %vm2173, %v3441, 0.0
        %3443 = vadd.xlane.f32.xlu0 %v3442
        %v3444 = vpop.xlane.xlu0 %3443
        %v3445 = vrcp.pop %v3444
        %v3446 = vmul.f32 %v3441, %v3445
        %v3447 = vpack.c.bf16 %v3446, %v3446
        %3448 = vrot.lane.b32.xlu0 %v2125, 32
        %v3449 = vpop.permute.xlu0 %3448
        %v3451 = vsel %vm2173, %v3447, 0
        %v3454 = vsel %vm2189, %v3449, 0
        %3456 = vmatprep.subr.bf16.mxu0 0
        %3457 = vmatpush1.bf16.msra.mxu0 %v3454
        %3458 = vmatprep.subr.bf16.mxu0 0
        %3459 = vmatpush1.bf16.msra.mxu0 0
        %3460 = vmatprep.subr.bf16.mxu0 0
        %3461 = vmatpush1.bf16.msra.mxu0 0
        %3462 = vmatprep.subr.bf16.mxu0 0
        %3463 = vmatpush1.bf16.msra.mxu0 0
        %3464 = vmatprep.subr.bf16.mxu0 0
        %3465 = vmatpush1.bf16.msra.mxu0 0
        %3466 = vmatprep.subr.bf16.mxu0 0
        %3467 = vmatpush1.bf16.msra.mxu0 0
        %3468 = vmatprep.subr.bf16.mxu0 0
        %3469 = vmatpush1.bf16.msra.mxu0 0
        %3470 = vmatprep.subr.bf16.mxu0 0
        %3471 = vmatpush1.bf16.msra.mxu0 0
        %3472 = vmatprep.subr.bf16.mxu0 0
        %3473 = vmatpush1.bf16.msra.mxu0 0
        %3474 = vmatprep.subr.bf16.mxu0 0
        %3475 = vmatpush1.bf16.msra.mxu0 0
        %3476 = vmatprep.subr.bf16.mxu0 0
        %3477 = vmatpush1.bf16.msra.mxu0 0
        %3478 = vmatprep.subr.bf16.mxu0 0
        %3479 = vmatpush1.bf16.msra.mxu0 0
        %3480 = vmatprep.subr.bf16.mxu0 0
        %3481 = vmatpush1.bf16.msra.mxu0 0
        %3482 = vmatprep.subr.bf16.mxu0 0
        %3483 = vmatpush1.bf16.msra.mxu0 0
        %3484 = vmatprep.subr.bf16.mxu0 0
        %3485 = vmatpush1.bf16.msra.mxu0 0
        %3486 = vmatprep.subr.bf16.mxu0 0
        %3487 = vmatpush1.bf16.msra.mxu0 0
        %3488 = vmatprep.mubr.bf16.mxu0 0
        %3489 = vmatmul.mubr.bf16.gmra.mrb[0].mxu0 %v3451
        %v3490 = vpop.f32.mrb[0].mxu0
        %v3491 = vadd.f32 0.0, %v3490
        %v3492 = vpop.f32.mrb[0].mxu0
        %v3493 = vpop.f32.mrb[0].mxu0
        %v3494 = vpop.f32.mrb[0].mxu0
        %3495 = vdwg.mxu0
        %v3496 = vpack.c.bf16 %v3491, %v3491
        %v3497 = vld [vmem:[#allocation17 + $0xe0] sm:$0xff]
        %v3498 = vld [vmem:[#allocation17 + $0xe8] sm:$0xff]
        %v3499 = vld [vmem:[#allocation17 + $0xf0] sm:$0xff]
        %v3500 = vld [vmem:[#allocation17 + $0xf8] sm:$0xff]
        %v3505 = vunpack.c.l.b16 %v3497
        %v3506 = vunpack.c.h.b16 %v3497
        %v3507 = vunpack.c.l.b16 %v3498
        %v3508 = vunpack.c.h.b16 %v3498
        %v3509 = vunpack.c.l.b16 %v3499
        %v3510 = vunpack.c.h.b16 %v3499
        %v3511 = vunpack.c.l.b16 %v3500
        %v3512 = vunpack.c.h.b16 %v3500
        %v3513 = vpack.c.b16 %v3507, %v3505
        %v3514 = vpack.c.b16 %v3508, %v3506
        %v3515 = vpack.c.b16 %v3511, %v3509
        %v3516 = vpack.c.b16 %v3512, %v3510
        %v3522 = vsel %vm2126, %v3496, 0
        %3524 = vmatprep.subr.bf16.mxu0 %v3514
        %3525 = vmatpush1.bf16.msra.mxu0 %v3513
        %3526 = vmatprep.subr.bf16.mxu0 %v3516
        %3527 = vmatpush1.bf16.msra.mxu0 %v3515
        %3528 = vmatprep.subr.bf16.mxu0 0
        %3529 = vmatpush1.bf16.msra.mxu0 0
        %3530 = vmatprep.subr.bf16.mxu0 0
        %3531 = vmatpush1.bf16.msra.mxu0 0
        %3532 = vmatprep.subr.bf16.mxu0 0
        %3533 = vmatpush1.bf16.msra.mxu0 0
        %3534 = vmatprep.subr.bf16.mxu0 0
        %3535 = vmatpush1.bf16.msra.mxu0 0
        %3536 = vmatprep.subr.bf16.mxu0 0
        %3537 = vmatpush1.bf16.msra.mxu0 0
        %3538 = vmatprep.subr.bf16.mxu0 0
        %3539 = vmatpush1.bf16.msra.mxu0 0
        %3540 = vmatprep.subr.bf16.mxu0 0
        %3541 = vmatpush1.bf16.msra.mxu0 0
        %3542 = vmatprep.subr.bf16.mxu0 0
        %3543 = vmatpush1.bf16.msra.mxu0 0
        %3544 = vmatprep.subr.bf16.mxu0 0
        %3545 = vmatpush1.bf16.msra.mxu0 0
        %3546 = vmatprep.subr.bf16.mxu0 0
        %3547 = vmatpush1.bf16.msra.mxu0 0
        %3548 = vmatprep.subr.bf16.mxu0 0
        %3549 = vmatpush1.bf16.msra.mxu0 0
        %3550 = vmatprep.subr.bf16.mxu0 0
        %3551 = vmatpush1.bf16.msra.mxu0 0
        %3552 = vmatprep.subr.bf16.mxu0 0
        %3553 = vmatpush1.bf16.msra.mxu0 0
        %3554 = vmatprep.subr.bf16.mxu0 0
        %3555 = vmatpush1.bf16.msra.mxu0 0
        %3556 = vmatprep.mubr.bf16.mxu0 0
        %3557 = vmatmul.mubr.bf16.gmra.mrb[0].mxu0 %v3522
        %v3558 = vpop.f32.mrb[0].mxu0
        %v3559 = vadd.f32 0.0, %v3558
        %v3560 = vpop.f32.mrb[0].mxu0
        %v3561 = vadd.f32 0.0, %v3560
        %v3562 = vpop.f32.mrb[0].mxu0
        %v3563 = vpop.f32.mrb[0].mxu0
        %3564 = vdwg.mxu0
        %v3565 = vadd.f32 %v3384, %v3559
        %v3566 = vadd.f32 %v3385, %v3561
        %s3567 = scalar_lea.vmem [#allocation7], 17
        %v3568 = vld [vmem:[%s3567] ss:$8 sm:$0x3]
        %v3570 = vlaneseq
        %v3571 = vshrl.u32 %v3570, 7
        %v3572 = vsub.s32 0, %v3571
        %v3573 = vrot.slane %v3568, %v3572
        %v3574 = vlaneseq
        %v3575 = vshrl.u32 %v3574, 7
        %v3576 = vsub.s32 1, %v3575
        %v3577 = vrot.slane %v3568, %v3576
        %v3580 = vadd.f32 %v3565, %v3573
        %v3581 = vadd.f32 %v3566, %v3577
        %v3582 = vrot.slane %v3580, 4
        %v3583 = vadd.f32 %v3580, %v3582
        %v3584 = vrot.slane %v3583, 2
        %v3585 = vadd.f32 %v3583, %v3584
        %v3586 = vrot.slane %v3585, 1
        %v3587 = vadd.f32 %v3585, %v3586
        %v3588 = vrot.slane %v3581, 4
        %v3589 = vadd.f32 %v3581, %v3588
        %v3590 = vrot.slane %v3589, 2
        %v3591 = vadd.f32 %v3589, %v3590
        %v3592 = vrot.slane %v3591, 1
        %v3593 = vadd.f32 %v3591, %v3592
        %v3594 = vrcp.pop 8.0
        %v3595 = vmul.f32 %v3587, %v3594
        %v3596 = vmul.f32 %v3593, %v3594
        %v3597 = vpack.c.bf16 %v3595, %v3595
        %v3598 = vpack.c.bf16 %v3596, %v3596
        %v3599 = vld [vmem:[#allocation19] sm:$0xff]
        %v3600 = vld [vmem:[#allocation19 + $0x8] sm:$0xff]
        %v3601 = vld [vmem:[#allocation19 + $0x10] sm:$0xff]
        %v3602 = vld [vmem:[#allocation19 + $0x18] sm:$0xff]
        %v3603 = vld [vmem:[#allocation19 + $0x20] sm:$0xff]
        %v3604 = vld [vmem:[#allocation19 + $0x28] sm:$0xff]
        %v3605 = vld [vmem:[#allocation19 + $0x30] sm:$0xff]
        %v3606 = vld [vmem:[#allocation19 + $0x38] sm:$0xff]
        %v3607 = vld [vmem:[#allocation19 + $0x40] sm:$0xff]
        %v3608 = vld [vmem:[#allocation19 + $0x48] sm:$0xff]
        %v3609 = vld [vmem:[#allocation19 + $0x50] sm:$0xff]
        %v3610 = vld [vmem:[#allocation19 + $0x58] sm:$0xff]
        %v3611 = vld [vmem:[#allocation19 + $0x60] sm:$0xff]
        %v3612 = vld [vmem:[#allocation19 + $0x68] sm:$0xff]
        %v3613 = vld [vmem:[#allocation19 + $0x70] sm:$0xff]
        %v3614 = vld [vmem:[#allocation19 + $0x78] sm:$0xff]
        %v3615 = vld [vmem:[#allocation19 + $0x80] sm:$0xff]
        %v3616 = vld [vmem:[#allocation19 + $0x88] sm:$0xff]
        %v3617 = vld [vmem:[#allocation19 + $0x90] sm:$0xff]
        %v3618 = vld [vmem:[#allocation19 + $0x98] sm:$0xff]
        %v3619 = vld [vmem:[#allocation19 + $0xa0] sm:$0xff]
        %v3620 = vld [vmem:[#allocation19 + $0xa8] sm:$0xff]
        %v3621 = vld [vmem:[#allocation19 + $0xb0] sm:$0xff]
        %v3622 = vld [vmem:[#allocation19 + $0xb8] sm:$0xff]
        %v3623 = vld [vmem:[#allocation19 + $0xc0] sm:$0xff]
        %v3624 = vld [vmem:[#allocation19 + $0xc8] sm:$0xff]
        %v3625 = vld [vmem:[#allocation19 + $0xd0] sm:$0xff]
        %v3626 = vld [vmem:[#allocation19 + $0xd8] sm:$0xff]
        %v3627 = vld [vmem:[#allocation19 + $0xe0] sm:$0xff]
        %v3628 = vld [vmem:[#allocation19 + $0xe8] sm:$0xff]
        %v3629 = vld [vmem:[#allocation19 + $0xf0] sm:$0xff]
        %v3630 = vld [vmem:[#allocation19 + $0xf8] sm:$0xff]
        %s3631 = scalar_lea.vmem [#allocation7], 18
        %v3632 = vld [vmem:[%s3631] ss:$8 sm:$0x3]
        %v3665 = vunpack.c.l.b16 %v3599
        %v3666 = vunpack.c.h.b16 %v3599
        %v3667 = vunpack.c.l.b16 %v3600
        %v3668 = vunpack.c.h.b16 %v3600
        %v3669 = vunpack.c.l.b16 %v3601
        %v3670 = vunpack.c.h.b16 %v3601
        %v3671 = vunpack.c.l.b16 %v3602
        %v3672 = vunpack.c.h.b16 %v3602
        %v3673 = vunpack.c.l.b16 %v3603
        %v3674 = vunpack.c.h.b16 %v3603
        %v3675 = vunpack.c.l.b16 %v3604
        %v3676 = vunpack.c.h.b16 %v3604
        %v3677 = vunpack.c.l.b16 %v3605
        %v3678 = vunpack.c.h.b16 %v3605
        %v3679 = vunpack.c.l.b16 %v3606
        %v3680 = vunpack.c.h.b16 %v3606
        %v3681 = vunpack.c.l.b16 %v3607
        %v3682 = vunpack.c.h.b16 %v3607
        %v3683 = vunpack.c.l.b16 %v3608
        %v3684 = vunpack.c.h.b16 %v3608
        %v3685 = vunpack.c.l.b16 %v3609
        %v3686 = vunpack.c.h.b16 %v3609
        %v3687 = vunpack.c.l.b16 %v3610
        %v3688 = vunpack.c.h.b16 %v3610
        %v3689 = vunpack.c.l.b16 %v3611
        %v3690 = vunpack.c.h.b16 %v3611
        %v3691 = vunpack.c.l.b16 %v3612
        %v3692 = vunpack.c.h.b16 %v3612
        %v3693 = vunpack.c.l.b16 %v3613
        %v3694 = vunpack.c.h.b16 %v3613
        %v3695 = vunpack.c.l.b16 %v3614
        %v3696 = vunpack.c.h.b16 %v3614
        %v3697 = vunpack.c.l.b16 %v3615
        %v3698 = vunpack.c.h.b16 %v3615
        %v3699 = vunpack.c.l.b16 %v3616
        %v3700 = vunpack.c.h.b16 %v3616
        %v3701 = vunpack.c.l.b16 %v3617
        %v3702 = vunpack.c.h.b16 %v3617
        %v3703 = vunpack.c.l.b16 %v3618
        %v3704 = vunpack.c.h.b16 %v3618
        %v3705 = vunpack.c.l.b16 %v3619
        %v3706 = vunpack.c.h.b16 %v3619
        %v3707 = vunpack.c.l.b16 %v3620
        %v3708 = vunpack.c.h.b16 %v3620
        %v3709 = vunpack.c.l.b16 %v3621
        %v3710 = vunpack.c.h.b16 %v3621
        %v3711 = vunpack.c.l.b16 %v3622
        %v3712 = vunpack.c.h.b16 %v3622
        %v3713 = vunpack.c.l.b16 %v3623
        %v3714 = vunpack.c.h.b16 %v3623
        %v3715 = vunpack.c.l.b16 %v3624
        %v3716 = vunpack.c.h.b16 %v3624
        %v3717 = vunpack.c.l.b16 %v3625
        %v3718 = vunpack.c.h.b16 %v3625
        %v3719 = vunpack.c.l.b16 %v3626
        %v3720 = vunpack.c.h.b16 %v3626
        %v3721 = vunpack.c.l.b16 %v3627
        %v3722 = vunpack.c.h.b16 %v3627
        %v3723 = vunpack.c.l.b16 %v3628
        %v3724 = vunpack.c.h.b16 %v3628
        %v3725 = vunpack.c.l.b16 %v3629
        %v3726 = vunpack.c.h.b16 %v3629
        %v3727 = vunpack.c.l.b16 %v3630
        %v3728 = vunpack.c.h.b16 %v3630
        %v3729 = vpack.c.b16 %v3667, %v3665
        %v3730 = vpack.c.b16 %v3668, %v3666
        %v3731 = vpack.c.b16 %v3671, %v3669
        %v3732 = vpack.c.b16 %v3672, %v3670
        %v3733 = vpack.c.b16 %v3675, %v3673
        %v3734 = vpack.c.b16 %v3676, %v3674
        %v3735 = vpack.c.b16 %v3679, %v3677
        %v3736 = vpack.c.b16 %v3680, %v3678
        %v3737 = vpack.c.b16 %v3683, %v3681
        %v3738 = vpack.c.b16 %v3684, %v3682
        %v3739 = vpack.c.b16 %v3687, %v3685
        %v3740 = vpack.c.b16 %v3688, %v3686
        %v3741 = vpack.c.b16 %v3691, %v3689
        %v3742 = vpack.c.b16 %v3692, %v3690
        %v3743 = vpack.c.b16 %v3695, %v3693
        %v3744 = vpack.c.b16 %v3696, %v3694
        %v3745 = vpack.c.b16 %v3699, %v3697
        %v3746 = vpack.c.b16 %v3700, %v3698
        %v3747 = vpack.c.b16 %v3703, %v3701
        %v3748 = vpack.c.b16 %v3704, %v3702
        %v3749 = vpack.c.b16 %v3707, %v3705
        %v3750 = vpack.c.b16 %v3708, %v3706
        %v3751 = vpack.c.b16 %v3711, %v3709
        %v3752 = vpack.c.b16 %v3712, %v3710
        %v3753 = vpack.c.b16 %v3715, %v3713
        %v3754 = vpack.c.b16 %v3716, %v3714
        %v3755 = vpack.c.b16 %v3719, %v3717
        %v3756 = vpack.c.b16 %v3720, %v3718
        %v3757 = vpack.c.b16 %v3723, %v3721
        %v3758 = vpack.c.b16 %v3724, %v3722
        %v3759 = vpack.c.b16 %v3727, %v3725
        %v3760 = vpack.c.b16 %v3728, %v3726
        %v3794 = vlaneseq
        %v3795 = vshrl.u32 %v3794, 7
        %v3796 = vsub.s32 0, %v3795
        %v3797 = vrot.slane %v3632, %v3796
        %v3798 = vlaneseq
        %v3799 = vshrl.u32 %v3798, 7
        %v3800 = vsub.s32 1, %v3799
        %v3801 = vrot.slane %v3632, %v3800
        %3804 = vmatprep.subr.bf16.mxu0 %v3730
        %3805 = vmatpush1.bf16.msra.mxu0 %v3729
        %3806 = vmatprep.subr.bf16.mxu0 %v3732
        %3807 = vmatpush1.bf16.msra.mxu0 %v3731
        %3808 = vmatprep.subr.bf16.mxu0 %v3734
        %3809 = vmatpush1.bf16.msra.mxu0 %v3733
        %3810 = vmatprep.subr.bf16.mxu0 %v3736
        %3811 = vmatpush1.bf16.msra.mxu0 %v3735
        %3812 = vmatprep.subr.bf16.mxu0 %v3738
        %3813 = vmatpush1.bf16.msra.mxu0 %v3737
        %3814 = vmatprep.subr.bf16.mxu0 %v3740
        %3815 = vmatpush1.bf16.msra.mxu0 %v3739
        %3816 = vmatprep.subr.bf16.mxu0 %v3742
        %3817 = vmatpush1.bf16.msra.mxu0 %v3741
        %3818 = vmatprep.subr.bf16.mxu0 %v3744
        %3819 = vmatpush1.bf16.msra.mxu0 %v3743
        %3820 = vmatprep.subr.bf16.mxu0 %v3746
        %3821 = vmatpush1.bf16.msra.mxu0 %v3745
        %3822 = vmatprep.subr.bf16.mxu0 %v3748
        %3823 = vmatpush1.bf16.msra.mxu0 %v3747
        %3824 = vmatprep.subr.bf16.mxu0 %v3750
        %3825 = vmatpush1.bf16.msra.mxu0 %v3749
        %3826 = vmatprep.subr.bf16.mxu0 %v3752
        %3827 = vmatpush1.bf16.msra.mxu0 %v3751
        %3828 = vmatprep.subr.bf16.mxu0 %v3754
        %3829 = vmatpush1.bf16.msra.mxu0 %v3753
        %3830 = vmatprep.subr.bf16.mxu0 %v3756
        %3831 = vmatpush1.bf16.msra.mxu0 %v3755
        %3832 = vmatprep.subr.bf16.mxu0 %v3758
        %3833 = vmatpush1.bf16.msra.mxu0 %v3757
        %3834 = vmatprep.subr.bf16.mxu0 %v3760
        %3835 = vmatpush1.bf16.msra.mxu0 %v3759
        %3836 = vmatprep.mubr.bf16.mxu0 %v3598
        %3837 = vmatmul.mubr.bf16.gmra.mrb[0].mxu0 %v3597
        %v3838 = vpop.f32.mrb[0].mxu0
        %v3839 = vadd.f32 %v3797, %v3838
        %v3840 = vpop.f32.mrb[0].mxu0
        %v3841 = vadd.f32 %v3801, %v3840
        %v3842 = vpop.f32.mrb[0].mxu0
        %v3843 = vpop.f32.mrb[0].mxu0
        %3844 = vdwg.mxu0
        %s3845 = scalar_lea.vmem [#allocation7], 19
        %v3846 = vld [vmem:[%s3845] ss:$8 sm:$0x3]
        %s3847 = scalar_lea.vmem [#allocation7], 20
        %v3848 = vld [vmem:[%s3847] ss:$8 sm:$0x3]
        %vm3849 = vcmask 1040384
        %v3850 = vsel %vm3849, %v3839, 0.0
        %v3851 = vsel %vm3849, %v3841, 0.0
        %v3852 = vadd.f32 %v3850, %v3851
        %3853 = vadd.xlane.f32.xlu0 %v3852
        %v3854 = vpop.xlane.xlu0 %3853
        %v3855 = vmul.f32 %v3854, %v1038
        %v3856 = vmul.f32 %v3839, %v3839
        %v3857 = vmul.f32 %v3841, %v3841
        %v3858 = vsel %vm3849, %v3856, 0.0
        %v3859 = vsel %vm3849, %v3857, 0.0
        %v3860 = vadd.f32 %v3858, %v3859
        %3861 = vadd.xlane.f32.xlu0 %v3860
        %v3862 = vpop.xlane.xlu0 %3861
        %v3863 = vmul.f32 %v3862, %v1038
        %v3864 = vmul.f32 %v3855, %v3855
        %v3865 = vsub.f32 %v3863, %v3864
        %v3866 = vsub.f32 %v3839, %v3855
        %v3867 = vsub.f32 %v3841, %v3855
        %v3868 = vadd.f32 %v3865, 1e-05
        %v3869 = vrsqrt.pop %v3868
        %v3870 = vmul.f32 %v3866, %v3869
        %v3871 = vmul.f32 %v3867, %v3869
        %v3873 = vlaneseq
        %v3874 = vshrl.u32 %v3873, 7
        %v3875 = vsub.s32 0, %v3874
        %v3876 = vrot.slane %v3846, %v3875
        %v3877 = vlaneseq
        %v3878 = vshrl.u32 %v3877, 7
        %v3879 = vsub.s32 1, %v3878
        %v3880 = vrot.slane %v3846, %v3879
        %v3883 = vmul.f32 %v3870, %v3876
        %v3884 = vmul.f32 %v3871, %v3880
        %v3886 = vlaneseq
        %v3887 = vshrl.u32 %v3886, 7
        %v3888 = vsub.s32 0, %v3887
        %v3889 = vrot.slane %v3848, %v3888
        %v3890 = vlaneseq
        %v3891 = vshrl.u32 %v3890, 7
        %v3892 = vsub.s32 1, %v3891
        %v3893 = vrot.slane %v3848, %v3892
        %v3896 = vadd.f32 %v3883, %v3889
        %v3897 = vadd.f32 %v3884, %v3893
        %v3898 = vmax.f32 %v3896, 0.0
        %v3899 = vmax.f32 %v3897, 0.0
        %v3900 = vpack.c.bf16 %v3898, %v3898
        %v3901 = vpack.c.bf16 %v3899, %v3899
        %v3902 = vld [vmem:[#allocation20] sm:$0xf]
        %v3903 = vld [vmem:[#allocation20 + $0x4] sm:$0xf]
        %v3904 = vld [vmem:[#allocation20 + $0x8] sm:$0xf]
        %v3905 = vld [vmem:[#allocation20 + $0xc] sm:$0xf]
        %v3906 = vld [vmem:[#allocation20 + $0x10] sm:$0xf]
        %v3907 = vld [vmem:[#allocation20 + $0x14] sm:$0xf]
        %v3908 = vld [vmem:[#allocation20 + $0x18] sm:$0xf]
        %v3909 = vld [vmem:[#allocation20 + $0x1c] sm:$0xf]
        %v3910 = vld [vmem:[#allocation20 + $0x20] sm:$0xf]
        %v3911 = vld [vmem:[#allocation20 + $0x24] sm:$0xf]
        %v3912 = vld [vmem:[#allocation20 + $0x28] sm:$0xf]
        %v3913 = vld [vmem:[#allocation20 + $0x2c] sm:$0xf]
        %v3914 = vld [vmem:[#allocation20 + $0x30] sm:$0xf]
        %v3915 = vld [vmem:[#allocation20 + $0x34] sm:$0xf]
        %v3916 = vld [vmem:[#allocation20 + $0x38] sm:$0xf]
        %v3917 = vld [vmem:[#allocation20 + $0x3c] sm:$0xf]
        %v3918 = vld [vmem:[#allocation20 + $0x40] sm:$0xf]
        %v3919 = vld [vmem:[#allocation20 + $0x44] sm:$0xf]
        %v3920 = vld [vmem:[#allocation20 + $0x48] sm:$0xf]
        %v3921 = vld [vmem:[#allocation20 + $0x4c] sm:$0xf]
        %v3922 = vld [vmem:[#allocation20 + $0x50] sm:$0xf]
        %v3923 = vld [vmem:[#allocation20 + $0x54] sm:$0xf]
        %v3924 = vld [vmem:[#allocation20 + $0x58] sm:$0xf]
        %v3925 = vld [vmem:[#allocation20 + $0x5c] sm:$0xf]
        %v3926 = vld [vmem:[#allocation20 + $0x60] sm:$0xf]
        %v3927 = vld [vmem:[#allocation20 + $0x64] sm:$0xf]
        %v3928 = vld [vmem:[#allocation20 + $0x68] sm:$0xf]
        %v3929 = vld [vmem:[#allocation20 + $0x6c] sm:$0xf]
        %v3930 = vld [vmem:[#allocation20 + $0x70] sm:$0xf]
        %v3931 = vld [vmem:[#allocation20 + $0x74] sm:$0xf]
        %v3932 = vld [vmem:[#allocation20 + $0x78] sm:$0xf]
        %v3933 = vld [vmem:[#allocation20 + $0x7c] sm:$0xf]
        %v3934 = vld [vmem:[#allocation7 + $0x15] ss:$0 sm:$0xff]
        %v3967 = vunpack.c.l.b16 %v3902
        %v3968 = vunpack.c.l.b16 %v3903
        %v3969 = vunpack.c.l.b16 %v3904
        %v3970 = vunpack.c.l.b16 %v3905
        %v3971 = vunpack.c.l.b16 %v3906
        %v3972 = vunpack.c.l.b16 %v3907
        %v3973 = vunpack.c.l.b16 %v3908
        %v3974 = vunpack.c.l.b16 %v3909
        %v3975 = vunpack.c.l.b16 %v3910
        %v3976 = vunpack.c.l.b16 %v3911
        %v3977 = vunpack.c.l.b16 %v3912
        %v3978 = vunpack.c.l.b16 %v3913
        %v3979 = vunpack.c.l.b16 %v3914
        %v3980 = vunpack.c.l.b16 %v3915
        %v3981 = vunpack.c.l.b16 %v3916
        %v3982 = vunpack.c.l.b16 %v3917
        %v3983 = vunpack.c.l.b16 %v3918
        %v3984 = vunpack.c.l.b16 %v3919
        %v3985 = vunpack.c.l.b16 %v3920
        %v3986 = vunpack.c.l.b16 %v3921
        %v3987 = vunpack.c.l.b16 %v3922
        %v3988 = vunpack.c.l.b16 %v3923
        %v3989 = vunpack.c.l.b16 %v3924
        %v3990 = vunpack.c.l.b16 %v3925
        %v3991 = vunpack.c.l.b16 %v3926
        %v3992 = vunpack.c.l.b16 %v3927
        %v3993 = vunpack.c.l.b16 %v3928
        %v3994 = vunpack.c.l.b16 %v3929
        %v3995 = vunpack.c.l.b16 %v3930
        %v3996 = vunpack.c.l.b16 %v3931
        %v3997 = vunpack.c.l.b16 %v3932
        %v3998 = vunpack.c.l.b16 %v3933
        %v3999 = vpack.c.b16 %v3968, %v3967
        %v4000 = vpack.c.b16 %v3970, %v3969
        %v4001 = vpack.c.b16 %v3972, %v3971
        %v4002 = vpack.c.b16 %v3974, %v3973
        %v4003 = vpack.c.b16 %v3976, %v3975
        %v4004 = vpack.c.b16 %v3978, %v3977
        %v4005 = vpack.c.b16 %v3980, %v3979
        %v4006 = vpack.c.b16 %v3982, %v3981
        %v4007 = vpack.c.b16 %v3984, %v3983
        %v4008 = vpack.c.b16 %v3986, %v3985
        %v4009 = vpack.c.b16 %v3988, %v3987
        %v4010 = vpack.c.b16 %v3990, %v3989
        %v4011 = vpack.c.b16 %v3992, %v3991
        %v4012 = vpack.c.b16 %v3994, %v3993
        %v4013 = vpack.c.b16 %v3996, %v3995
        %v4014 = vpack.c.b16 %v3998, %v3997
        %4031 = vmatprep.subr.bf16.mxu0 0
        %4032 = vmatpush1.bf16.msra.mxu0 %v3999
        %4033 = vmatprep.subr.bf16.mxu0 0
        %4034 = vmatpush1.bf16.msra.mxu0 %v4000
        %4035 = vmatprep.subr.bf16.mxu0 0
        %4036 = vmatpush1.bf16.msra.mxu0 %v4001
        %4037 = vmatprep.subr.bf16.mxu0 0
        %4038 = vmatpush1.bf16.msra.mxu0 %v4002
        %4039 = vmatprep.subr.bf16.mxu0 0
        %4040 = vmatpush1.bf16.msra.mxu0 %v4003
        %4041 = vmatprep.subr.bf16.mxu0 0
        %4042 = vmatpush1.bf16.msra.mxu0 %v4004
        %4043 = vmatprep.subr.bf16.mxu0 0
        %4044 = vmatpush1.bf16.msra.mxu0 %v4005
        %4045 = vmatprep.subr.bf16.mxu0 0
        %4046 = vmatpush1.bf16.msra.mxu0 %v4006
        %4047 = vmatprep.subr.bf16.mxu0 0
        %4048 = vmatpush1.bf16.msra.mxu0 %v4007
        %4049 = vmatprep.subr.bf16.mxu0 0
        %4050 = vmatpush1.bf16.msra.mxu0 %v4008
        %4051 = vmatprep.subr.bf16.mxu0 0
        %4052 = vmatpush1.bf16.msra.mxu0 %v4009
        %4053 = vmatprep.subr.bf16.mxu0 0
        %4054 = vmatpush1.bf16.msra.mxu0 %v4010
        %4055 = vmatprep.subr.bf16.mxu0 0
        %4056 = vmatpush1.bf16.msra.mxu0 %v4011
        %4057 = vmatprep.subr.bf16.mxu0 0
        %4058 = vmatpush1.bf16.msra.mxu0 %v4012
        %4059 = vmatprep.subr.bf16.mxu0 0
        %4060 = vmatpush1.bf16.msra.mxu0 %v4013
        %4061 = vmatprep.subr.bf16.mxu0 0
        %4062 = vmatpush1.bf16.msra.mxu0 %v4014
        %4063 = vmatprep.mubr.bf16.mxu0 %v3901
        %4064 = vmatmul.mubr.bf16.gmra.mrb[0].mxu0 %v3900
        %v4065 = vpop.f32.mrb[0].mxu0
        %v4066 = vadd.f32 %v3934, %v4065
        %v4067 = vpop.f32.mrb[0].mxu0
        %v4068 = vpop.f32.mrb[0].mxu0
        %v4069 = vpop.f32.mrb[0].mxu0
        %4070 = vdwg.mxu0
        %v4071 = vld [vmem:[#allocation7 + $0x16] ss:$0 sm:$0xff]
        %v4072 = vld [vmem:[#allocation7 + $0x17] ss:$0 sm:$0xff]
        %v4073 = vsel %vm3849, %v4066, 0.0
        %4074 = vadd.xlane.f32.xlu0 %v4073
        %v4075 = vpop.xlane.xlu0 %4074
        %v4076 = vrcp.pop 128.0
        %v4077 = vmul.f32 %v4075, %v4076
        %v4078 = vmul.f32 %v4066, %v4066
        %v4079 = vsel %vm3849, %v4078, 0.0
        %4080 = vadd.xlane.f32.xlu0 %v4079
        %v4081 = vpop.xlane.xlu0 %4080
        %v4082 = vmul.f32 %v4081, %v4076
        %v4083 = vmul.f32 %v4077, %v4077
        %v4084 = vsub.f32 %v4082, %v4083
        %v4085 = vsub.f32 %v4066, %v4077
        %v4086 = vadd.f32 %v4084, 1e-05
        %v4087 = vrsqrt.pop %v4086
        %v4088 = vmul.f32 %v4085, %v4087
        %v4089 = vmul.f32 %v4088, %v4071
        %v4090 = vadd.f32 %v4089, %v4072
        %v4091 = vmax.f32 %v4090, 0.0
        %v4092 = vpack.c.bf16 %v4091, %v4091
        %v4093 = vld [vmem:[#allocation22] sm:$0xff]
        %v4094 = vld [vmem:[#allocation22 + $0x8] sm:$0xff]
        %v4095 = vld [vmem:[#allocation22 + $0x10] sm:$0xff]
        %v4096 = vld [vmem:[#allocation22 + $0x18] sm:$0xff]
        %v4097 = vld [vmem:[#allocation22 + $0x20] sm:$0xff]
        %v4098 = vld [vmem:[#allocation22 + $0x28] sm:$0xff]
        %v4099 = vld [vmem:[#allocation22 + $0x30] sm:$0xff]
        %v4100 = vld [vmem:[#allocation22 + $0x38] sm:$0xff]
        %v4101 = vld [vmem:[#allocation22 + $0x40] sm:$0xff]
        %v4102 = vld [vmem:[#allocation22 + $0x48] sm:$0xff]
        %v4103 = vld [vmem:[#allocation22 + $0x50] sm:$0xff]
        %v4104 = vld [vmem:[#allocation22 + $0x58] sm:$0xff]
        %v4105 = vld [vmem:[#allocation22 + $0x60] sm:$0xff]
        %v4106 = vld [vmem:[#allocation22 + $0x68] sm:$0xff]
        %v4107 = vld [vmem:[#allocation22 + $0x70] sm:$0xff]
        %v4108 = vld [vmem:[#allocation22 + $0x78] sm:$0xff]
        %s4109 = scalar_lea.vmem [#allocation7], 32
        %v4110 = vld [vmem:[%s4109] ss:$8 sm:$0x3]
        %v4127 = vunpack.c.l.b16 %v4093
        %v4128 = vunpack.c.h.b16 %v4093
        %v4129 = vunpack.c.l.b16 %v4094
        %v4130 = vunpack.c.h.b16 %v4094
        %v4131 = vunpack.c.l.b16 %v4095
        %v4132 = vunpack.c.h.b16 %v4095
        %v4133 = vunpack.c.l.b16 %v4096
        %v4134 = vunpack.c.h.b16 %v4096
        %v4135 = vunpack.c.l.b16 %v4097
        %v4136 = vunpack.c.h.b16 %v4097
        %v4137 = vunpack.c.l.b16 %v4098
        %v4138 = vunpack.c.h.b16 %v4098
        %v4139 = vunpack.c.l.b16 %v4099
        %v4140 = vunpack.c.h.b16 %v4099
        %v4141 = vunpack.c.l.b16 %v4100
        %v4142 = vunpack.c.h.b16 %v4100
        %v4143 = vunpack.c.l.b16 %v4101
        %v4144 = vunpack.c.h.b16 %v4101
        %v4145 = vunpack.c.l.b16 %v4102
        %v4146 = vunpack.c.h.b16 %v4102
        %v4147 = vunpack.c.l.b16 %v4103
        %v4148 = vunpack.c.h.b16 %v4103
        %v4149 = vunpack.c.l.b16 %v4104
        %v4150 = vunpack.c.h.b16 %v4104
        %v4151 = vunpack.c.l.b16 %v4105
        %v4152 = vunpack.c.h.b16 %v4105
        %v4153 = vunpack.c.l.b16 %v4106
        %v4154 = vunpack.c.h.b16 %v4106
        %v4155 = vunpack.c.l.b16 %v4107
        %v4156 = vunpack.c.h.b16 %v4107
        %v4157 = vunpack.c.l.b16 %v4108
        %v4158 = vunpack.c.h.b16 %v4108
        %v4159 = vpack.c.b16 %v4129, %v4127
        %v4160 = vpack.c.b16 %v4130, %v4128
        %v4161 = vpack.c.b16 %v4133, %v4131
        %v4162 = vpack.c.b16 %v4134, %v4132
        %v4163 = vpack.c.b16 %v4137, %v4135
        %v4164 = vpack.c.b16 %v4138, %v4136
        %v4165 = vpack.c.b16 %v4141, %v4139
        %v4166 = vpack.c.b16 %v4142, %v4140
        %v4167 = vpack.c.b16 %v4145, %v4143
        %v4168 = vpack.c.b16 %v4146, %v4144
        %v4169 = vpack.c.b16 %v4149, %v4147
        %v4170 = vpack.c.b16 %v4150, %v4148
        %v4171 = vpack.c.b16 %v4153, %v4151
        %v4172 = vpack.c.b16 %v4154, %v4152
        %v4173 = vpack.c.b16 %v4157, %v4155
        %v4174 = vpack.c.b16 %v4158, %v4156
        %v4192 = vlaneseq
        %v4193 = vshrl.u32 %v4192, 7
        %v4194 = vsub.s32 0, %v4193
        %v4195 = vrot.slane %v4110, %v4194
        %v4196 = vlaneseq
        %v4197 = vshrl.u32 %v4196, 7
        %v4198 = vsub.s32 1, %v4197
        %v4199 = vrot.slane %v4110, %v4198
        %4202 = vmatprep.subr.bf16.mxu0 %v4160
        %4203 = vmatpush1.bf16.msra.mxu0 %v4159
        %4204 = vmatprep.subr.bf16.mxu0 %v4162
        %4205 = vmatpush1.bf16.msra.mxu0 %v4161
        %4206 = vmatprep.subr.bf16.mxu0 %v4164
        %4207 = vmatpush1.bf16.msra.mxu0 %v4163
        %4208 = vmatprep.subr.bf16.mxu0 %v4166
        %4209 = vmatpush1.bf16.msra.mxu0 %v4165
        %4210 = vmatprep.subr.bf16.mxu0 %v4168
        %4211 = vmatpush1.bf16.msra.mxu0 %v4167
        %4212 = vmatprep.subr.bf16.mxu0 %v4170
        %4213 = vmatpush1.bf16.msra.mxu0 %v4169
        %4214 = vmatprep.subr.bf16.mxu0 %v4172
        %4215 = vmatpush1.bf16.msra.mxu0 %v4171
        %4216 = vmatprep.subr.bf16.mxu0 %v4174
        %4217 = vmatpush1.bf16.msra.mxu0 %v4173
        %4218 = vmatprep.subr.bf16.mxu0 0
        %4219 = vmatpush1.bf16.msra.mxu0 0
        %4220 = vmatprep.subr.bf16.mxu0 0
        %4221 = vmatpush1.bf16.msra.mxu0 0
        %4222 = vmatprep.subr.bf16.mxu0 0
        %4223 = vmatpush1.bf16.msra.mxu0 0
        %4224 = vmatprep.subr.bf16.mxu0 0
        %4225 = vmatpush1.bf16.msra.mxu0 0
        %4226 = vmatprep.subr.bf16.mxu0 0
        %4227 = vmatpush1.bf16.msra.mxu0 0
        %4228 = vmatprep.subr.bf16.mxu0 0
        %4229 = vmatpush1.bf16.msra.mxu0 0
        %4230 = vmatprep.subr.bf16.mxu0 0
        %4231 = vmatpush1.bf16.msra.mxu0 0
        %4232 = vmatprep.subr.bf16.mxu0 0
        %4233 = vmatpush1.bf16.msra.mxu0 0
        %4234 = vmatprep.mubr.bf16.mxu0 0
        %4235 = vmatmul.mubr.bf16.gmra.mrb[0].mxu0 %v4092
        %v4236 = vpop.f32.mrb[0].mxu0
        %v4237 = vadd.f32 %v4195, %v4236
        %v4238 = vpop.f32.mrb[0].mxu0
        %v4239 = vadd.f32 %v4199, %v4238
        %v4240 = vpop.f32.mrb[0].mxu0
        %v4241 = vpop.f32.mrb[0].mxu0
        %4242 = vdwg.mxu0
        %v4245 = vcombine.low %v4237, %v4239
        %v4247 = vunpack.c.l.s4 1966171168
        %v4248 = vunpack.c.0.s8 %v4247
        %v4249 = vlaneseq
        %v4250 = vshrl.u32 %v4249, 7
        %v4251 = vsub.s32 %v4248, %v4250
        %v4252 = vrot.slane %v4245, %v4251
        %v4254 = vunpack.c.l.s4 1966171168
        %v4255 = vunpack.c.0.s8 %v4254
        %v4256 = vlaneseq
        %v4257 = vshrl.u32 %v4256, 7
        %v4258 = vsub.s32 %v4255, %v4257
        %v4259 = vrot.slane %v4252, %v4258
        %v4261 = vlaneseq
        %vm4262 = vcmp.ge.s32.totalorder %v4261, 0
        %vm4263 = vcmp.lt.s32.totalorder %v4261, 256
        %vm4264 = vmand %vm4262, %vm4263
        %4265 = vst.msk [vmem:[%s652] sm:$0x3] %vm4264, %v4259
        %s4266 = sand.u32 %s329, 1
        %s4267 = scalar_lea.sflag [#allocation4], %s4266
        %s4268 = sand.u32 %s329, 1
        %s4269 = smul.addr %s4268, 2
        %s4270 = scalar_lea.vmem [#allocation23], %s4269
        // Predicated region
        $region125: #{tpu_custom_call.1} parent=71 // pred_check
          %p4271 = pneg %p339
        $region126: #{tpu_custom_call.1} parent=71 // pred_check_branch
          %4273 = sbr.rel (%p4271) target = $region128
        $region127: #{tpu_custom_call.1} parent=71 // pred_region
          %s4275 = ssub.s32 32, 32
          %4276 = vsyncadd %s4267, %s4275
          %s4277 = smul.addr %s38, 2
          %s4278 = smul.addr %s4277, 16
          %s4279 = scalar_lea.hbm %s13, %s4278
          %s4281 = sshll.u32 %s4270, 4
          %s4282 = int_to_ptr.vmem [resolvable:$true] %s4281
          %4284 = dma.vmem_to_hbm [thread:$0]  %s4282, 32, %s4279, %s4267
        $region128: #{tpu_custom_call.1} parent=71 // pred_fallthru
          _
      $region72: #{tpu_custom_call.1} parent=5 // pred_fallthru
        _
      %p4285 = scmp.le.s32.totalorder 2, %s33
      // Predicated region
      $region129: #{tpu_custom_call.1} parent=5 // pred_check
        %p4286 = pneg %p4285
      $region130: #{tpu_custom_call.1} parent=5 // pred_check_branch
        %4288 = sbr.rel (%p4286) target = $region132
      $region131: #{tpu_custom_call.1} parent=5 // pred_region
        %s4289 = ssub.s32 %s33, 2
        // Predicated region
        $region133: #{tpu_custom_call.1} parent=131 // pred_check
          %p4290 = pneg %p345
        $region134: #{tpu_custom_call.1} parent=131 // pred_check_branch
          %4292 = sbr.rel (%p4290) target = $region136
        $region135: #{tpu_custom_call.1} parent=131 // pred_region
          %s4293 = sand.u32 %s330, 1
          %s4294 = scalar_lea.sflag [#allocation4], %s4293
          %s4295 = sand.u32 %s330, 1
          %s4296 = smul.addr %s4295, 2
          %s4297 = scalar_lea.vmem [#allocation23], %s4296
          %4298 = dma.done %s4294, 32
        $region136: #{tpu_custom_call.1} parent=131 // pred_fallthru
          _
      $region132: #{tpu_custom_call.1} parent=5 // pred_fallthru
        _
    $region6: #{tpu_custom_call.1} parent=1 // loop_footer
      %s37 = sadd.s32 1, %s33
    $region7: #{tpu_custom_call.1} parent=1 // loop_footer_branch
      %32 = sbr.rel target = $region3
    $region8: #{tpu_custom_call.1} parent=1 // loop_exit
      _
    %4299 = vsyncpa [#allocation3], 1
    %s4300 = scalar_lea.sflag [#allocation3], 1
    %4301 = vsyncpa %s4300, 1
    %4302 = vsyncpa [#allocation6], 1
    %s4303 = scalar_lea.sflag [#allocation6], 1
    %4304 = vsyncpa %s4303, 1
    %4305 = vsyncpa [#allocation9], 1
    %4306 = vsyncpa [#allocation12], 1
    %4307 = vsyncpa [#allocation15], 1
    %4308 = vsyncpa [#allocation18], 1
    %4309 = vsyncpa [#allocation21], 1
    %4310 = vsyncpa [#allocation4], 1
    %s4311 = scalar_lea.sflag [#allocation4], 1
    %4312 = vsyncpa %s4311, 1

</llo_original>
